<compile_context>
chip_gen: v6e
topology: v6e:2x2x1
jax: 0.10.0
libtpu: 0.0.40
codegen_flags: <defaults>
</compile_context>

<pallas_src>
import functools

import jax
import jax.numpy as jnp
from jax import lax
from jax.experimental import pallas as pl
from jax.experimental.pallas import tpu as pltpu

# ----- ViewTransformer.__init__ configuration -----
NUM_VIEWS = 4
BEV_SIZE = (10.0, 10.0, 1.25)      # (range_x, range_y, resolution)
GRID_SIZE = (16, 16)               # (W_bev, H_bev)
GRID_QUANT_SCALE = 1.0 / 512.0     # unused in float mode


def get_min_max_coords(bev_size):
    bev_min_x = -bev_size[0] + bev_size[2] / 2.0
    bev_max_x = bev_size[0] - bev_size[2] / 2.0
    bev_min_y = -bev_size[1] + bev_size[2] / 2.0
    bev_max_y = bev_size[1] - bev_size[2] / 2.0
    return bev_min_x, bev_max_x, bev_min_y, bev_max_y


def gen_2d_points():
    """ViewTransformer._gen_2d_points -> (Hbev*Wbev, 3) homogeneous coords."""
    bev_min_x, bev_max_x, bev_min_y, bev_max_y = get_min_max_coords(BEV_SIZE)
    W, H = GRID_SIZE[0], GRID_SIZE[1]
    x = jnp.tile(jnp.linspace(bev_min_x, bev_max_x, W).reshape(1, W), (H, 1))
    y = jnp.tile(jnp.linspace(bev_min_y, bev_max_y, H).reshape(H, 1), (1, W))
    ones = jnp.ones((H, W))
    coords = jnp.stack([x, y, ones], axis=-1)          # (H, W, 3)
    return coords.reshape(H * W, 3).astype(jnp.float32)


def _view_transform_kernel(tgt_ref, w_ref, feat_ref, out_ref, *,
                           num_views, hw, k_chunk):
    """One batch per grid step.

    For each view and each K-chunk of its feature pixels, build the
    transposed bilinear sampling slice s_t (k_chunk, Nbev) by comparing the
    in-chunk row iota against the four precomputed per-corner target rows
    (zeros padding / OOB already folded into the weights), then accumulate
    feat_chunk (C, k_chunk) @ s_t on the MXU.  The view sum (floatFs.add) is
    the K accumulation itself.
    """
    nbev = out_ref.shape[2]
    c_out = out_ref.shape[1]
    tgt = tgt_ref[...]                                   # (1, N, 4, Nbev) i32
    wts = w_ref[...]                                     # (1, N, 4, Nbev) f32

    # In-chunk row iota, generated once in-kernel (no HBM input, no resident
    # VMEM buffer); the chunk offset is folded into the (1, Nbev) targets.
    row = lax.broadcasted_iota(jnp.int32, (k_chunk, nbev), 0)

    acc = jnp.zeros((c_out, nbev), jnp.float32)
    n_chunks = hw // k_chunk
    for n in range(num_views):                           # static unroll
        for c in range(n_chunks):
            start = c * k_chunk
            # Targets {base, base+1, base+Wf, base+Wf+1} are pairwise
            # distinct (Wf >= 2), so at most one corner matches a given row.
            # OOB / clamped corners already carry zero weight (wrapper).
            t0 = tgt[0, n, 0:1, :] - start
            t1 = tgt[0, n, 1:2, :] - start
            t2 = tgt[0, n, 2:3, :] - start
            t3 = tgt[0, n, 3:4, :] - start
            s_t = jnp.where(row == t0, wts[0, n, 0:1, :],
                  jnp.where(row == t1, wts[0, n, 1:2, :],
                  jnp.where(row == t2, wts[0, n, 2:3, :],
                  jnp.where(row == t3, wts[0, n, 3:4, :], 0.0))))
            k0 = n * hw + start
            feat_chunk = feat_ref[0, :, k0:k0 + k_chunk]     # (C, k_chunk)
            acc = acc + jnp.dot(feat_chunk, s_t,
                                preferred_element_type=jnp.float32)
    out_ref[0] = acc.astype(out_ref.dtype)


def view_transformer_forward(feats, meta, compile_model=False):
    """ViewTransformer.forward.

    feats: (B*num_views, C, Hf, Wf) float32, NCHW (PyTorch layout).
    meta:  {'ego2img': (B*num_views, 4, 4), 'img_hw': (Horig, Worig)}.
    Returns (bev_feats (B, C, Hbev, Wbev), None).
    """
    BN, C, Hf, Wf = feats.shape
    assert Wf >= 2, "sampling-matrix targets require Wf >= 2"
    B = BN // NUM_VIEWS
    Wb, Hb = GRID_SIZE
    Nbev = Hb * Wb
    HW = Hf * Wf
    k_chunk = 128 if HW % 128 == 0 else HW

    # ---- _get_homography (no_grad path; compile_model path would pass the
    # same precomputed reference points through meta). ----
    Horig, Worig = meta["img_hw"]
    ego2img = meta["ego2img"].astype(jnp.float32)
    view = jnp.eye(4, dtype=jnp.float32)
    view = view.at[0, 0].set(Wf / Worig).at[1, 1].set(Hf / Horig)
    homo = jnp.einsum("ij,njk->nik", view, ego2img)                 # (BN,4,4)
    h3 = homo[:, :3][:, :, jnp.array([0, 1, 3])]                    # (BN,3,3)

    # ---- _gen_reference_point: project BEV grid, precompute lane-dense
    # per-corner target flat rows + bilinear weights (zeros padding folded). ----
    pts = gen_2d_points()                                           # (Nbev, 3)
    x = pts[:, 0][None]                                             # (1, Nbev)
    y = pts[:, 1][None]
    u = h3[:, 0, 0:1] * x + h3[:, 0, 1:2] * y + h3[:, 0, 2:3]
    v = h3[:, 1, 0:1] * x + h3[:, 1, 1:2] * y + h3[:, 1, 2:3]
    d = jnp.maximum(h3[:, 2, 0:1] * x + h3[:, 2, 1:2] * y + h3[:, 2, 2:3],
                    1e-5)                                           # clamp depth
    u = u / d                                                       # (BN, Nbev)
    v = v / d
    # Clamp to a window where all four corners are OOB anyway (identical
    # zeros-padding semantics) but float->int32 conversion cannot overflow.
    u = jnp.clip(u, -2.0, float(Wf + 1))
    v = jnp.clip(v, -2.0, float(Hf + 1))
    u0f = jnp.floor(u)
    v0f = jnp.floor(v)
    au = u - u0f
    av = v - v0f
    u0 = u0f.astype(jnp.int32)
    v0 = v0f.astype(jnp.int32)
    base = v0 * Wf + u0                                             # (BN, Nbev)
    tgts = jnp.stack([base, base + 1, base + Wf, base + Wf + 1],
                     axis=1).astype(jnp.int32)                      # (BN,4,Nbev)

    def corner_w(iy, ix, w):
        inb = (ix >= 0) & (ix < Wf) & (iy >= 0) & (iy < Hf)
        return jnp.where(inb, w, 0.0)

    w00 = corner_w(v0, u0, (1.0 - av) * (1.0 - au))
    w01 = corner_w(v0, u0 + 1, (1.0 - av) * au)
    w10 = corner_w(v0 + 1, u0, av * (1.0 - au))
    w11 = corner_w(v0 + 1, u0 + 1, av * au)
    wts = jnp.stack([w00, w01, w10, w11], axis=1).astype(jnp.float32)

    tgts = tgts.reshape(B, NUM_VIEWS, 4, Nbev)
    wts = wts.reshape(B, NUM_VIEWS, 4, Nbev)
    # Views concatenated along the contraction axis -> one matmul chain/batch.
    feats_k = (feats.reshape(B, NUM_VIEWS, C, HW)
                    .transpose(0, 2, 1, 3)
                    .reshape(B, C, NUM_VIEWS * HW))

    kernel = functools.partial(_view_transform_kernel, num_views=NUM_VIEWS,
                               hw=HW, k_chunk=k_chunk)

    out = pl.pallas_call(
        kernel,
        out_shape=jax.ShapeDtypeStruct((B, C, Nbev), jnp.float32),
        grid=(B,),
        in_specs=[
            pl.BlockSpec((1, NUM_VIEWS, 4, Nbev),
                         lambda b: (b, 0, 0, 0)),                   # targets
            pl.BlockSpec((1, NUM_VIEWS, 4, Nbev),
                         lambda b: (b, 0, 0, 0)),                   # weights
            pl.BlockSpec((1, C, NUM_VIEWS * HW),
                         lambda b: (b, 0, 0)),                      # features
        ],
        out_specs=pl.BlockSpec((1, C, Nbev), lambda b: (b, 0, 0)),
        compiler_params=pltpu.CompilerParams(
            dimension_semantics=("parallel",)),
    )(tgts, wts, feats_k)

    bev = out.reshape(B, C, Hb, Wb)   # already NCHW -> no transpose needed
    return bev, None


def reference_forward(feats, meta):
    """Pure-JAX reference (gather-based bilinear grid_sample + view sum)."""
    BN, C, Hf, Wf = feats.shape
    B = BN // NUM_VIEWS
    Wb, Hb = GRID_SIZE
    Horig, Worig = meta["img_hw"]
    ego2img = meta["ego2img"].astype(jnp.float32)
    view = jnp.eye(4, dtype=jnp.float32).at[0, 0].set(Wf / Worig).at[1, 1].set(Hf / Horig)
    homo = jnp.einsum("ij,njk->nik", view, ego2img)
    h3 = homo[:, :3][:, :, jnp.array([0, 1, 3])]                    # (BN,3,3)
    pts = gen_2d_points()
    x = pts[:, 0][None]
    y = pts[:, 1][None]
    u_num = h3[:, 0, 0:1] * x + h3[:, 0, 1:2] * y + h3[:, 0, 2:3]
    v_num = h3[:, 1, 0:1] * x + h3[:, 1, 1:2] * y + h3[:, 1, 2:3]
    d = jnp.maximum(h3[:, 2, 0:1] * x + h3[:, 2, 1:2] * y + h3[:, 2, 2:3], 1e-5)
    u = jnp.clip(u_num / d, -2.0, float(Wf + 1))
    v = jnp.clip(v_num / d, -2.0, float(Hf + 1))                    # (BN, Nbev)
    u0 = jnp.floor(u)
    v0 = jnp.floor(v)
    au = u - u0
    av = v - v0
    u0 = u0.astype(jnp.int32)
    v0 = v0.astype(jnp.int32)
    featf = feats.reshape(BN, C, Hf * Wf)

    def g(iy, ix, w):
        inb = (ix >= 0) & (ix < Wf) & (iy >= 0) & (iy < Hf)
        flat = jnp.clip(iy * Wf + ix, 0, Hf * Wf - 1)
        idx = jnp.broadcast_to(flat[:, None, :], (BN, C, flat.shape[-1]))
        vals = jnp.take_along_axis(featf, idx, axis=2)
        return jnp.where(inb[:, None, :], vals, 0.0) * w[:, None, :]

    samp = (g(v0, u0, (1.0 - av) * (1.0 - au))
            + g(v0, u0 + 1, (1.0 - av) * au)
            + g(v0 + 1, u0, av * (1.0 - au))
            + g(v0 + 1, u0 + 1, av * au))                           # (BN, C, Nbev)
    samp = samp.reshape(B, NUM_VIEWS, C, Hb, Wb).sum(axis=1)
    return samp


if __name__ == "__main__":
    B, C, Hf, Wf = 2, 8, 16, 16
    Horig, Worig = 64, 64

    key = jax.random.PRNGKey(0)
    feats = jax.random.normal(key, (B * NUM_VIEWS, C, Hf, Wf), dtype=jnp.float32)

    # Deterministic synthetic ego->image homographies (positive depth over
    # the BEV range, coords roughly covering the feature map).
    ego_list = []
    for b in range(B):
        for n in range(NUM_VIEWS):
            ego_list.append([
                [2.0 + 0.15 * n, 0.30 - 0.05 * n, 0.0, 30.0 + 2.0 * b + n],
                [0.20, 2.0 - 0.10 * n, 0.0, 34.0 - 2.0 * b],
                [0.01 * n, 0.015, 0.0, 1.0],
                [0.0, 0.0, 0.0, 1.0],
            ])
    ego2img = jnp.asarray(ego_list, dtype=jnp.float32)
    meta = {"ego2img": ego2img, "img_hw": (Horig, Worig)}

    bev, aux = view_transformer_forward(feats, meta, compile_model=False)
    bev = jax.block_until_ready(bev)

    assert bev.shape == (B, C, GRID_SIZE[1], GRID_SIZE[0])
    assert aux is None

    ref = reference_forward(feats, meta)
    err = float(jnp.max(jnp.abs(bev - ref)))
    if err > 2e-3:
        raise AssertionError(f"mismatch vs reference: max abs err {err}")

    print("KERNEL_OK")
</pallas_src>

<mosaic_0001>
module attributes {stable_mosaic.version = 11 : i64} {
  func.func @_view_transform_kernel(%arg0: i32, %arg1: memref<1x4x4x256xi32, #tpu.memory_space<vmem>>, %arg2: memref<1x4x4x256xf32, #tpu.memory_space<vmem>>, %arg3: memref<1x8x1024xf32, #tpu.memory_space<vmem>>, %arg4: memref<1x8x256xf32, #tpu.memory_space<vmem>>) attributes {dimension_semantics = [#tpu.dimension_semantics<parallel>], iteration_bounds = array<i64: 2>, scalar_prefetch = 0 : i64, scratch_operands = 0 : i64, tpu.core_type = #tpu.core_type<tc>, window_params = [{transform_indices = @transform_0, window_bounds = array<i64: 1, 4, 4, 256>}, {transform_indices = @transform_1, window_bounds = array<i64: 1, 4, 4, 256>}, {transform_indices = @transform_2, window_bounds = array<i64: 1, 8, 1024>}, {transform_indices = @transform_3, window_bounds = array<i64: 1, 8, 256>}]} {
    %c0 = arith.constant 0 : index
    %c0_0 = arith.constant 0 : index
    %c0_1 = arith.constant 0 : index
    %c0_2 = arith.constant 0 : index
    %0 = vector.load %arg1[%c0, %c0_0, %c0_1, %c0_2] : memref<1x4x4x256xi32, #tpu.memory_space<vmem>>, vector<1x4x4x256xi32>
    %c0_3 = arith.constant 0 : index
    %c0_4 = arith.constant 0 : index
    %c0_5 = arith.constant 0 : index
    %c0_6 = arith.constant 0 : index
    %1 = vector.load %arg2[%c0_3, %c0_4, %c0_5, %c0_6] : memref<1x4x4x256xf32, #tpu.memory_space<vmem>>, vector<1x4x4x256xf32>
    %2 = tpu.iota {dimensions = array<i32: 0>} : vector<128x256xi32>
    %cst = arith.constant 0.000000e+00 : f32
    %3 = vector.broadcast %cst : f32 to vector<8x256xf32>
    %4 = vector.extract_strided_slice %0 {offsets = [0, 0, 0, 0], sizes = [1, 1, 1, 256], strides = [1, 1, 1, 1]} : vector<1x4x4x256xi32> to vector<1x1x1x256xi32>
    %5 = vector.shape_cast %4 : vector<1x1x1x256xi32> to vector<1x256xi32>
    %c0_i32 = arith.constant 0 : i32
    %6 = vector.broadcast %c0_i32 : i32 to vector<1x256xi32>
    %7 = arith.subi %5, %6 : vector<1x256xi32>
    %8 = vector.extract_strided_slice %0 {offsets = [0, 0, 1, 0], sizes = [1, 1, 1, 256], strides = [1, 1, 1, 1]} : vector<1x4x4x256xi32> to vector<1x1x1x256xi32>
    %9 = vector.shape_cast %8 : vector<1x1x1x256xi32> to vector<1x256xi32>
    %c0_i32_7 = arith.constant 0 : i32
    %10 = vector.broadcast %c0_i32_7 : i32 to vector<1x256xi32>
    %11 = arith.subi %9, %10 : vector<1x256xi32>
    %12 = vector.extract_strided_slice %0 {offsets = [0, 0, 2, 0], sizes = [1, 1, 1, 256], strides = [1, 1, 1, 1]} : vector<1x4x4x256xi32> to vector<1x1x1x256xi32>
    %13 = vector.shape_cast %12 : vector<1x1x1x256xi32> to vector<1x256xi32>
    %c0_i32_8 = arith.constant 0 : i32
    %14 = vector.broadcast %c0_i32_8 : i32 to vector<1x256xi32>
    %15 = arith.subi %13, %14 : vector<1x256xi32>
    %16 = vector.extract_strided_slice %0 {offsets = [0, 0, 3, 0], sizes = [1, 1, 1, 256], strides = [1, 1, 1, 1]} : vector<1x4x4x256xi32> to vector<1x1x1x256xi32>
    %17 = vector.shape_cast %16 : vector<1x1x1x256xi32> to vector<1x256xi32>
    %c0_i32_9 = arith.constant 0 : i32
    %18 = vector.broadcast %c0_i32_9 : i32 to vector<1x256xi32>
    %19 = arith.subi %17, %18 : vector<1x256xi32>
    %20 = vector.broadcast %7 : vector<1x256xi32> to vector<128x256xi32>
    %21 = arith.cmpi eq, %2, %20 : vector<128x256xi32>
    %22 = vector.extract_strided_slice %1 {offsets = [0, 0, 0, 0], sizes = [1, 1, 1, 256], strides = [1, 1, 1, 1]} : vector<1x4x4x256xf32> to vector<1x1x1x256xf32>
    %23 = vector.shape_cast %22 : vector<1x1x1x256xf32> to vector<1x256xf32>
    %24 = vector.broadcast %11 : vector<1x256xi32> to vector<128x256xi32>
    %25 = arith.cmpi eq, %2, %24 : vector<128x256xi32>
    %26 = vector.extract_strided_slice %1 {offsets = [0, 0, 1, 0], sizes = [1, 1, 1, 256], strides = [1, 1, 1, 1]} : vector<1x4x4x256xf32> to vector<1x1x1x256xf32>
    %27 = vector.shape_cast %26 : vector<1x1x1x256xf32> to vector<1x256xf32>
    %28 = vector.broadcast %15 : vector<1x256xi32> to vector<128x256xi32>
    %29 = arith.cmpi eq, %2, %28 : vector<128x256xi32>
    %30 = vector.extract_strided_slice %1 {offsets = [0, 0, 2, 0], sizes = [1, 1, 1, 256], strides = [1, 1, 1, 1]} : vector<1x4x4x256xf32> to vector<1x1x1x256xf32>
    %31 = vector.shape_cast %30 : vector<1x1x1x256xf32> to vector<1x256xf32>
    %32 = vector.broadcast %19 : vector<1x256xi32> to vector<128x256xi32>
    %33 = arith.cmpi eq, %2, %32 : vector<128x256xi32>
    %34 = vector.extract_strided_slice %1 {offsets = [0, 0, 3, 0], sizes = [1, 1, 1, 256], strides = [1, 1, 1, 1]} : vector<1x4x4x256xf32> to vector<1x1x1x256xf32>
    %35 = vector.shape_cast %34 : vector<1x1x1x256xf32> to vector<1x256xf32>
    %cst_10 = arith.constant 0.000000e+00 : f32
    %36 = vector.shape_cast %35 : vector<1x256xf32> to vector<1x256xf32>
    %37 = vector.broadcast %36 : vector<1x256xf32> to vector<128x256xf32>
    %38 = vector.broadcast %cst_10 : f32 to vector<128x256xf32>
    %39 = arith.select %33, %37, %38 : vector<128x256xi1>, vector<128x256xf32>
    %40 = vector.shape_cast %31 : vector<1x256xf32> to vector<1x256xf32>
    %41 = vector.broadcast %40 : vector<1x256xf32> to vector<128x256xf32>
    %42 = arith.select %29, %41, %39 : vector<128x256xi1>, vector<128x256xf32>
    %43 = vector.shape_cast %27 : vector<1x256xf32> to vector<1x256xf32>
    %44 = vector.broadcast %43 : vector<1x256xf32> to vector<128x256xf32>
    %45 = arith.select %25, %44, %42 : vector<128x256xi1>, vector<128x256xf32>
    %46 = vector.shape_cast %23 : vector<1x256xf32> to vector<1x256xf32>
    %47 = vector.broadcast %46 : vector<1x256xf32> to vector<128x256xf32>
    %48 = arith.select %21, %47, %45 : vector<128x256xi1>, vector<128x256xf32>
    %c0_11 = arith.constant 0 : index
    %c0_12 = arith.constant 0 : index
    %c0_13 = arith.constant 0 : index
    %49 = vector.load %arg3[%c0_11, %c0_12, %c0_13] : memref<1x8x1024xf32, #tpu.memory_space<vmem>>, vector<1x8x128xf32>
    %50 = vector.shape_cast %49 : vector<1x8x128xf32> to vector<8x128xf32>
    %cst_14 = arith.constant dense<0.000000e+00> : vector<8x256xf32>
    %51 = tpu.matmul %50, %48, %cst_14 {dimension_numbers = #tpu.dot_dimension_numbers<[1], [0], [0], [1], [0, 0, 1, 1], [], []>} : vector<8x128xf32>, vector<128x256xf32>, vector<8x256xf32> -> vector<8x256xf32>
    %52 = arith.addf %3, %51 : vector<8x256xf32>
    %53 = vector.extract_strided_slice %0 {offsets = [0, 0, 0, 0], sizes = [1, 1, 1, 256], strides = [1, 1, 1, 1]} : vector<1x4x4x256xi32> to vector<1x1x1x256xi32>
    %54 = vector.shape_cast %53 : vector<1x1x1x256xi32> to vector<1x256xi32>
    %c128_i32 = arith.constant 128 : i32
    %55 = vector.broadcast %c128_i32 : i32 to vector<1x256xi32>
    %56 = arith.subi %54, %55 : vector<1x256xi32>
    %57 = vector.extract_strided_slice %0 {offsets = [0, 0, 1, 0], sizes = [1, 1, 1, 256], strides = [1, 1, 1, 1]} : vector<1x4x4x256xi32> to vector<1x1x1x256xi32>
    %58 = vector.shape_cast %57 : vector<1x1x1x256xi32> to vector<1x256xi32>
    %c128_i32_15 = arith.constant 128 : i32
    %59 = vector.broadcast %c128_i32_15 : i32 to vector<1x256xi32>
    %60 = arith.subi %58, %59 : vector<1x256xi32>
    %61 = vector.extract_strided_slice %0 {offsets = [0, 0, 2, 0], sizes = [1, 1, 1, 256], strides = [1, 1, 1, 1]} : vector<1x4x4x256xi32> to vector<1x1x1x256xi32>
    %62 = vector.shape_cast %61 : vector<1x1x1x256xi32> to vector<1x256xi32>
    %c128_i32_16 = arith.constant 128 : i32
    %63 = vector.broadcast %c128_i32_16 : i32 to vector<1x256xi32>
    %64 = arith.subi %62, %63 : vector<1x256xi32>
    %65 = vector.extract_strided_slice %0 {offsets = [0, 0, 3, 0], sizes = [1, 1, 1, 256], strides = [1, 1, 1, 1]} : vector<1x4x4x256xi32> to vector<1x1x1x256xi32>
    %66 = vector.shape_cast %65 : vector<1x1x1x256xi32> to vector<1x256xi32>
    %c128_i32_17 = arith.constant 128 : i32
    %67 = vector.broadcast %c128_i32_17 : i32 to vector<1x256xi32>
    %68 = arith.subi %66, %67 : vector<1x256xi32>
    %69 = vector.broadcast %56 : vector<1x256xi32> to vector<128x256xi32>
    %70 = arith.cmpi eq, %2, %69 : vector<128x256xi32>
    %71 = vector.extract_strided_slice %1 {offsets = [0, 0, 0, 0], sizes = [1, 1, 1, 256], strides = [1, 1, 1, 1]} : vector<1x4x4x256xf32> to vector<1x1x1x256xf32>
    %72 = vector.shape_cast %71 : vector<1x1x1x256xf32> to vector<1x256xf32>
    %73 = vector.broadcast %60 : vector<1x256xi32> to vector<128x256xi32>
    %74 = arith.cmpi eq, %2, %73 : vector<128x256xi32>
    %75 = vector.extract_strided_slice %1 {offsets = [0, 0, 1, 0], sizes = [1, 1, 1, 256], strides = [1, 1, 1, 1]} : vector<1x4x4x256xf32> to vector<1x1x1x256xf32>
    %76 = vector.shape_cast %75 : vector<1x1x1x256xf32> to vector<1x256xf32>
    %77 = vector.broadcast %64 : vector<1x256xi32> to vector<128x256xi32>
    %78 = arith.cmpi eq, %2, %77 : vector<128x256xi32>
    %79 = vector.extract_strided_slice %1 {offsets = [0, 0, 2, 0], sizes = [1, 1, 1, 256], strides = [1, 1, 1, 1]} : vector<1x4x4x256xf32> to vector<1x1x1x256xf32>
    %80 = vector.shape_cast %79 : vector<1x1x1x256xf32> to vector<1x256xf32>
    %81 = vector.broadcast %68 : vector<1x256xi32> to vector<128x256xi32>
    %82 = arith.cmpi eq, %2, %81 : vector<128x256xi32>
    %83 = vector.extract_strided_slice %1 {offsets = [0, 0, 3, 0], sizes = [1, 1, 1, 256], strides = [1, 1, 1, 1]} : vector<1x4x4x256xf32> to vector<1x1x1x256xf32>
    %84 = vector.shape_cast %83 : vector<1x1x1x256xf32> to vector<1x256xf32>
    %cst_18 = arith.constant 0.000000e+00 : f32
    %85 = vector.shape_cast %84 : vector<1x256xf32> to vector<1x256xf32>
    %86 = vector.broadcast %85 : vector<1x256xf32> to vector<128x256xf32>
    %87 = vector.broadcast %cst_18 : f32 to vector<128x256xf32>
    %88 = arith.select %82, %86, %87 : vector<128x256xi1>, vector<128x256xf32>
    %89 = vector.shape_cast %80 : vector<1x256xf32> to vector<1x256xf32>
    %90 = vector.broadcast %89 : vector<1x256xf32> to vector<128x256xf32>
    %91 = arith.select %78, %90, %88 : vector<128x256xi1>, vector<128x256xf32>
    %92 = vector.shape_cast %76 : vector<1x256xf32> to vector<1x256xf32>
    %93 = vector.broadcast %92 : vector<1x256xf32> to vector<128x256xf32>
    %94 = arith.select %74, %93, %91 : vector<128x256xi1>, vector<128x256xf32>
    %95 = vector.shape_cast %72 : vector<1x256xf32> to vector<1x256xf32>
    %96 = vector.broadcast %95 : vector<1x256xf32> to vector<128x256xf32>
    %97 = arith.select %70, %96, %94 : vector<128x256xi1>, vector<128x256xf32>
    %c0_19 = arith.constant 0 : index
    %c0_20 = arith.constant 0 : index
    %c128 = arith.constant 128 : index
    %98 = vector.load %arg3[%c0_19, %c0_20, %c128] : memref<1x8x1024xf32, #tpu.memory_space<vmem>>, vector<1x8x128xf32>
    %99 = vector.shape_cast %98 : vector<1x8x128xf32> to vector<8x128xf32>
    %cst_21 = arith.constant dense<0.000000e+00> : vector<8x256xf32>
    %100 = tpu.matmul %99, %97, %cst_21 {dimension_numbers = #tpu.dot_dimension_numbers<[1], [0], [0], [1], [0, 0, 1, 1], [], []>} : vector<8x128xf32>, vector<128x256xf32>, vector<8x256xf32> -> vector<8x256xf32>
    %101 = arith.addf %52, %100 : vector<8x256xf32>
    %102 = vector.extract_strided_slice %0 {offsets = [0, 1, 0, 0], sizes = [1, 1, 1, 256], strides = [1, 1, 1, 1]} : vector<1x4x4x256xi32> to vector<1x1x1x256xi32>
    %103 = vector.shape_cast %102 : vector<1x1x1x256xi32> to vector<1x256xi32>
    %c0_i32_22 = arith.constant 0 : i32
    %104 = vector.broadcast %c0_i32_22 : i32 to vector<1x256xi32>
    %105 = arith.subi %103, %104 : vector<1x256xi32>
    %106 = vector.extract_strided_slice %0 {offsets = [0, 1, 1, 0], sizes = [1, 1, 1, 256], strides = [1, 1, 1, 1]} : vector<1x4x4x256xi32> to vector<1x1x1x256xi32>
    %107 = vector.shape_cast %106 : vector<1x1x1x256xi32> to vector<1x256xi32>
    %c0_i32_23 = arith.constant 0 : i32
    %108 = vector.broadcast %c0_i32_23 : i32 to vector<1x256xi32>
    %109 = arith.subi %107, %108 : vector<1x256xi32>
    %110 = vector.extract_strided_slice %0 {offsets = [0, 1, 2, 0], sizes = [1, 1, 1, 256], strides = [1, 1, 1, 1]} : vector<1x4x4x256xi32> to vector<1x1x1x256xi32>
    %111 = vector.shape_cast %110 : vector<1x1x1x256xi32> to vector<1x256xi32>
    %c0_i32_24 = arith.constant 0 : i32
    %112 = vector.broadcast %c0_i32_24 : i32 to vector<1x256xi32>
    %113 = arith.subi %111, %112 : vector<1x256xi32>
    %114 = vector.extract_strided_slice %0 {offsets = [0, 1, 3, 0], sizes = [1, 1, 1, 256], strides = [1, 1, 1, 1]} : vector<1x4x4x256xi32> to vector<1x1x1x256xi32>
    %115 = vector.shape_cast %114 : vector<1x1x1x256xi32> to vector<1x256xi32>
    %c0_i32_25 = arith.constant 0 : i32
    %116 = vector.broadcast %c0_i32_25 : i32 to vector<1x256xi32>
    %117 = arith.subi %115, %116 : vector<1x256xi32>
    %118 = vector.broadcast %105 : vector<1x256xi32> to vector<128x256xi32>
    %119 = arith.cmpi eq, %2, %118 : vector<128x256xi32>
    %120 = vector.extract_strided_slice %1 {offsets = [0, 1, 0, 0], sizes = [1, 1, 1, 256], strides = [1, 1, 1, 1]} : vector<1x4x4x256xf32> to vector<1x1x1x256xf32>
    %121 = vector.shape_cast %120 : vector<1x1x1x256xf32> to vector<1x256xf32>
    %122 = vector.broadcast %109 : vector<1x256xi32> to vector<128x256xi32>
    %123 = arith.cmpi eq, %2, %122 : vector<128x256xi32>
    %124 = vector.extract_strided_slice %1 {offsets = [0, 1, 1, 0], sizes = [1, 1, 1, 256], strides = [1, 1, 1, 1]} : vector<1x4x4x256xf32> to vector<1x1x1x256xf32>
    %125 = vector.shape_cast %124 : vector<1x1x1x256xf32> to vector<1x256xf32>
    %126 = vector.broadcast %113 : vector<1x256xi32> to vector<128x256xi32>
    %127 = arith.cmpi eq, %2, %126 : vector<128x256xi32>
    %128 = vector.extract_strided_slice %1 {offsets = [0, 1, 2, 0], sizes = [1, 1, 1, 256], strides = [1, 1, 1, 1]} : vector<1x4x4x256xf32> to vector<1x1x1x256xf32>
    %129 = vector.shape_cast %128 : vector<1x1x1x256xf32> to vector<1x256xf32>
    %130 = vector.broadcast %117 : vector<1x256xi32> to vector<128x256xi32>
    %131 = arith.cmpi eq, %2, %130 : vector<128x256xi32>
    %132 = vector.extract_strided_slice %1 {offsets = [0, 1, 3, 0], sizes = [1, 1, 1, 256], strides = [1, 1, 1, 1]} : vector<1x4x4x256xf32> to vector<1x1x1x256xf32>
    %133 = vector.shape_cast %132 : vector<1x1x1x256xf32> to vector<1x256xf32>
    %cst_26 = arith.constant 0.000000e+00 : f32
    %134 = vector.shape_cast %133 : vector<1x256xf32> to vector<1x256xf32>
    %135 = vector.broadcast %134 : vector<1x256xf32> to vector<128x256xf32>
    %136 = vector.broadcast %cst_26 : f32 to vector<128x256xf32>
    %137 = arith.select %131, %135, %136 : vector<128x256xi1>, vector<128x256xf32>
    %138 = vector.shape_cast %129 : vector<1x256xf32> to vector<1x256xf32>
    %139 = vector.broadcast %138 : vector<1x256xf32> to vector<128x256xf32>
    %140 = arith.select %127, %139, %137 : vector<128x256xi1>, vector<128x256xf32>
    %141 = vector.shape_cast %125 : vector<1x256xf32> to vector<1x256xf32>
    %142 = vector.broadcast %141 : vector<1x256xf32> to vector<128x256xf32>
    %143 = arith.select %123, %142, %140 : vector<128x256xi1>, vector<128x256xf32>
    %144 = vector.shape_cast %121 : vector<1x256xf32> to vector<1x256xf32>
    %145 = vector.broadcast %144 : vector<1x256xf32> to vector<128x256xf32>
    %146 = arith.select %119, %145, %143 : vector<128x256xi1>, vector<128x256xf32>
    %c0_27 = arith.constant 0 : index
    %c0_28 = arith.constant 0 : index
    %c256 = arith.constant 256 : index
    %147 = vector.load %arg3[%c0_27, %c0_28, %c256] : memref<1x8x1024xf32, #tpu.memory_space<vmem>>, vector<1x8x128xf32>
    %148 = vector.shape_cast %147 : vector<1x8x128xf32> to vector<8x128xf32>
    %cst_29 = arith.constant dense<0.000000e+00> : vector<8x256xf32>
    %149 = tpu.matmul %148, %146, %cst_29 {dimension_numbers = #tpu.dot_dimension_numbers<[1], [0], [0], [1], [0, 0, 1, 1], [], []>} : vector<8x128xf32>, vector<128x256xf32>, vector<8x256xf32> -> vector<8x256xf32>
    %150 = arith.addf %101, %149 : vector<8x256xf32>
    %151 = vector.extract_strided_slice %0 {offsets = [0, 1, 0, 0], sizes = [1, 1, 1, 256], strides = [1, 1, 1, 1]} : vector<1x4x4x256xi32> to vector<1x1x1x256xi32>
    %152 = vector.shape_cast %151 : vector<1x1x1x256xi32> to vector<1x256xi32>
    %c128_i32_30 = arith.constant 128 : i32
    %153 = vector.broadcast %c128_i32_30 : i32 to vector<1x256xi32>
    %154 = arith.subi %152, %153 : vector<1x256xi32>
    %155 = vector.extract_strided_slice %0 {offsets = [0, 1, 1, 0], sizes = [1, 1, 1, 256], strides = [1, 1, 1, 1]} : vector<1x4x4x256xi32> to vector<1x1x1x256xi32>
    %156 = vector.shape_cast %155 : vector<1x1x1x256xi32> to vector<1x256xi32>
    %c128_i32_31 = arith.constant 128 : i32
    %157 = vector.broadcast %c128_i32_31 : i32 to vector<1x256xi32>
    %158 = arith.subi %156, %157 : vector<1x256xi32>
    %159 = vector.extract_strided_slice %0 {offsets = [0, 1, 2, 0], sizes = [1, 1, 1, 256], strides = [1, 1, 1, 1]} : vector<1x4x4x256xi32> to vector<1x1x1x256xi32>
    %160 = vector.shape_cast %159 : vector<1x1x1x256xi32> to vector<1x256xi32>
    %c128_i32_32 = arith.constant 128 : i32
    %161 = vector.broadcast %c128_i32_32 : i32 to vector<1x256xi32>
    %162 = arith.subi %160, %161 : vector<1x256xi32>
    %163 = vector.extract_strided_slice %0 {offsets = [0, 1, 3, 0], sizes = [1, 1, 1, 256], strides = [1, 1, 1, 1]} : vector<1x4x4x256xi32> to vector<1x1x1x256xi32>
    %164 = vector.shape_cast %163 : vector<1x1x1x256xi32> to vector<1x256xi32>
    %c128_i32_33 = arith.constant 128 : i32
    %165 = vector.broadcast %c128_i32_33 : i32 to vector<1x256xi32>
    %166 = arith.subi %164, %165 : vector<1x256xi32>
    %167 = vector.broadcast %154 : vector<1x256xi32> to vector<128x256xi32>
    %168 = arith.cmpi eq, %2, %167 : vector<128x256xi32>
    %169 = vector.extract_strided_slice %1 {offsets = [0, 1, 0, 0], sizes = [1, 1, 1, 256], strides = [1, 1, 1, 1]} : vector<1x4x4x256xf32> to vector<1x1x1x256xf32>
    %170 = vector.shape_cast %169 : vector<1x1x1x256xf32> to vector<1x256xf32>
    %171 = vector.broadcast %158 : vector<1x256xi32> to vector<128x256xi32>
    %172 = arith.cmpi eq, %2, %171 : vector<128x256xi32>
    %173 = vector.extract_strided_slice %1 {offsets = [0, 1, 1, 0], sizes = [1, 1, 1, 256], strides = [1, 1, 1, 1]} : vector<1x4x4x256xf32> to vector<1x1x1x256xf32>
    %174 = vector.shape_cast %173 : vector<1x1x1x256xf32> to vector<1x256xf32>
    %175 = vector.broadcast %162 : vector<1x256xi32> to vector<128x256xi32>
    %176 = arith.cmpi eq, %2, %175 : vector<128x256xi32>
    %177 = vector.extract_strided_slice %1 {offsets = [0, 1, 2, 0], sizes = [1, 1, 1, 256], strides = [1, 1, 1, 1]} : vector<1x4x4x256xf32> to vector<1x1x1x256xf32>
    %178 = vector.shape_cast %177 : vector<1x1x1x256xf32> to vector<1x256xf32>
    %179 = vector.broadcast %166 : vector<1x256xi32> to vector<128x256xi32>
    %180 = arith.cmpi eq, %2, %179 : vector<128x256xi32>
    %181 = vector.extract_strided_slice %1 {offsets = [0, 1, 3, 0], sizes = [1, 1, 1, 256], strides = [1, 1, 1, 1]} : vector<1x4x4x256xf32> to vector<1x1x1x256xf32>
    %182 = vector.shape_cast %181 : vector<1x1x1x256xf32> to vector<1x256xf32>
    %cst_34 = arith.constant 0.000000e+00 : f32
    %183 = vector.shape_cast %182 : vector<1x256xf32> to vector<1x256xf32>
    %184 = vector.broadcast %183 : vector<1x256xf32> to vector<128x256xf32>
    %185 = vector.broadcast %cst_34 : f32 to vector<128x256xf32>
    %186 = arith.select %180, %184, %185 : vector<128x256xi1>, vector<128x256xf32>
    %187 = vector.shape_cast %178 : vector<1x256xf32> to vector<1x256xf32>
    %188 = vector.broadcast %187 : vector<1x256xf32> to vector<128x256xf32>
    %189 = arith.select %176, %188, %186 : vector<128x256xi1>, vector<128x256xf32>
    %190 = vector.shape_cast %174 : vector<1x256xf32> to vector<1x256xf32>
    %191 = vector.broadcast %190 : vector<1x256xf32> to vector<128x256xf32>
    %192 = arith.select %172, %191, %189 : vector<128x256xi1>, vector<128x256xf32>
    %193 = vector.shape_cast %170 : vector<1x256xf32> to vector<1x256xf32>
    %194 = vector.broadcast %193 : vector<1x256xf32> to vector<128x256xf32>
    %195 = arith.select %168, %194, %192 : vector<128x256xi1>, vector<128x256xf32>
    %c0_35 = arith.constant 0 : index
    %c0_36 = arith.constant 0 : index
    %c384 = arith.constant 384 : index
    %196 = vector.load %arg3[%c0_35, %c0_36, %c384] : memref<1x8x1024xf32, #tpu.memory_space<vmem>>, vector<1x8x128xf32>
    %197 = vector.shape_cast %196 : vector<1x8x128xf32> to vector<8x128xf32>
    %cst_37 = arith.constant dense<0.000000e+00> : vector<8x256xf32>
    %198 = tpu.matmul %197, %195, %cst_37 {dimension_numbers = #tpu.dot_dimension_numbers<[1], [0], [0], [1], [0, 0, 1, 1], [], []>} : vector<8x128xf32>, vector<128x256xf32>, vector<8x256xf32> -> vector<8x256xf32>
    %199 = arith.addf %150, %198 : vector<8x256xf32>
    %200 = vector.extract_strided_slice %0 {offsets = [0, 2, 0, 0], sizes = [1, 1, 1, 256], strides = [1, 1, 1, 1]} : vector<1x4x4x256xi32> to vector<1x1x1x256xi32>
    %201 = vector.shape_cast %200 : vector<1x1x1x256xi32> to vector<1x256xi32>
    %c0_i32_38 = arith.constant 0 : i32
    %202 = vector.broadcast %c0_i32_38 : i32 to vector<1x256xi32>
    %203 = arith.subi %201, %202 : vector<1x256xi32>
    %204 = vector.extract_strided_slice %0 {offsets = [0, 2, 1, 0], sizes = [1, 1, 1, 256], strides = [1, 1, 1, 1]} : vector<1x4x4x256xi32> to vector<1x1x1x256xi32>
    %205 = vector.shape_cast %204 : vector<1x1x1x256xi32> to vector<1x256xi32>
    %c0_i32_39 = arith.constant 0 : i32
    %206 = vector.broadcast %c0_i32_39 : i32 to vector<1x256xi32>
    %207 = arith.subi %205, %206 : vector<1x256xi32>
    %208 = vector.extract_strided_slice %0 {offsets = [0, 2, 2, 0], sizes = [1, 1, 1, 256], strides = [1, 1, 1, 1]} : vector<1x4x4x256xi32> to vector<1x1x1x256xi32>
    %209 = vector.shape_cast %208 : vector<1x1x1x256xi32> to vector<1x256xi32>
    %c0_i32_40 = arith.constant 0 : i32
    %210 = vector.broadcast %c0_i32_40 : i32 to vector<1x256xi32>
    %211 = arith.subi %209, %210 : vector<1x256xi32>
    %212 = vector.extract_strided_slice %0 {offsets = [0, 2, 3, 0], sizes = [1, 1, 1, 256], strides = [1, 1, 1, 1]} : vector<1x4x4x256xi32> to vector<1x1x1x256xi32>
    %213 = vector.shape_cast %212 : vector<1x1x1x256xi32> to vector<1x256xi32>
    %c0_i32_41 = arith.constant 0 : i32
    %214 = vector.broadcast %c0_i32_41 : i32 to vector<1x256xi32>
    %215 = arith.subi %213, %214 : vector<1x256xi32>
    %216 = vector.broadcast %203 : vector<1x256xi32> to vector<128x256xi32>
    %217 = arith.cmpi eq, %2, %216 : vector<128x256xi32>
    %218 = vector.extract_strided_slice %1 {offsets = [0, 2, 0, 0], sizes = [1, 1, 1, 256], strides = [1, 1, 1, 1]} : vector<1x4x4x256xf32> to vector<1x1x1x256xf32>
    %219 = vector.shape_cast %218 : vector<1x1x1x256xf32> to vector<1x256xf32>
    %220 = vector.broadcast %207 : vector<1x256xi32> to vector<128x256xi32>
    %221 = arith.cmpi eq, %2, %220 : vector<128x256xi32>
    %222 = vector.extract_strided_slice %1 {offsets = [0, 2, 1, 0], sizes = [1, 1, 1, 256], strides = [1, 1, 1, 1]} : vector<1x4x4x256xf32> to vector<1x1x1x256xf32>
    %223 = vector.shape_cast %222 : vector<1x1x1x256xf32> to vector<1x256xf32>
    %224 = vector.broadcast %211 : vector<1x256xi32> to vector<128x256xi32>
    %225 = arith.cmpi eq, %2, %224 : vector<128x256xi32>
    %226 = vector.extract_strided_slice %1 {offsets = [0, 2, 2, 0], sizes = [1, 1, 1, 256], strides = [1, 1, 1, 1]} : vector<1x4x4x256xf32> to vector<1x1x1x256xf32>
    %227 = vector.shape_cast %226 : vector<1x1x1x256xf32> to vector<1x256xf32>
    %228 = vector.broadcast %215 : vector<1x256xi32> to vector<128x256xi32>
    %229 = arith.cmpi eq, %2, %228 : vector<128x256xi32>
    %230 = vector.extract_strided_slice %1 {offsets = [0, 2, 3, 0], sizes = [1, 1, 1, 256], strides = [1, 1, 1, 1]} : vector<1x4x4x256xf32> to vector<1x1x1x256xf32>
    %231 = vector.shape_cast %230 : vector<1x1x1x256xf32> to vector<1x256xf32>
    %cst_42 = arith.constant 0.000000e+00 : f32
    %232 = vector.shape_cast %231 : vector<1x256xf32> to vector<1x256xf32>
    %233 = vector.broadcast %232 : vector<1x256xf32> to vector<128x256xf32>
    %234 = vector.broadcast %cst_42 : f32 to vector<128x256xf32>
    %235 = arith.select %229, %233, %234 : vector<128x256xi1>, vector<128x256xf32>
    %236 = vector.shape_cast %227 : vector<1x256xf32> to vector<1x256xf32>
    %237 = vector.broadcast %236 : vector<1x256xf32> to vector<128x256xf32>
    %238 = arith.select %225, %237, %235 : vector<128x256xi1>, vector<128x256xf32>
    %239 = vector.shape_cast %223 : vector<1x256xf32> to vector<1x256xf32>
    %240 = vector.broadcast %239 : vector<1x256xf32> to vector<128x256xf32>
    %241 = arith.select %221, %240, %238 : vector<128x256xi1>, vector<128x256xf32>
    %242 = vector.shape_cast %219 : vector<1x256xf32> to vector<1x256xf32>
    %243 = vector.broadcast %242 : vector<1x256xf32> to vector<128x256xf32>
    %244 = arith.select %217, %243, %241 : vector<128x256xi1>, vector<128x256xf32>
    %c0_43 = arith.constant 0 : index
    %c0_44 = arith.constant 0 : index
    %c512 = arith.constant 512 : index
    %245 = vector.load %arg3[%c0_43, %c0_44, %c512] : memref<1x8x1024xf32, #tpu.memory_space<vmem>>, vector<1x8x128xf32>
    %246 = vector.shape_cast %245 : vector<1x8x128xf32> to vector<8x128xf32>
    %cst_45 = arith.constant dense<0.000000e+00> : vector<8x256xf32>
    %247 = tpu.matmul %246, %244, %cst_45 {dimension_numbers = #tpu.dot_dimension_numbers<[1], [0], [0], [1], [0, 0, 1, 1], [], []>} : vector<8x128xf32>, vector<128x256xf32>, vector<8x256xf32> -> vector<8x256xf32>
    %248 = arith.addf %199, %247 : vector<8x256xf32>
    %249 = vector.extract_strided_slice %0 {offsets = [0, 2, 0, 0], sizes = [1, 1, 1, 256], strides = [1, 1, 1, 1]} : vector<1x4x4x256xi32> to vector<1x1x1x256xi32>
    %250 = vector.shape_cast %249 : vector<1x1x1x256xi32> to vector<1x256xi32>
    %c128_i32_46 = arith.constant 128 : i32
    %251 = vector.broadcast %c128_i32_46 : i32 to vector<1x256xi32>
    %252 = arith.subi %250, %251 : vector<1x256xi32>
    %253 = vector.extract_strided_slice %0 {offsets = [0, 2, 1, 0], sizes = [1, 1, 1, 256], strides = [1, 1, 1, 1]} : vector<1x4x4x256xi32> to vector<1x1x1x256xi32>
    %254 = vector.shape_cast %253 : vector<1x1x1x256xi32> to vector<1x256xi32>
    %c128_i32_47 = arith.constant 128 : i32
    %255 = vector.broadcast %c128_i32_47 : i32 to vector<1x256xi32>
    %256 = arith.subi %254, %255 : vector<1x256xi32>
    %257 = vector.extract_strided_slice %0 {offsets = [0, 2, 2, 0], sizes = [1, 1, 1, 256], strides = [1, 1, 1, 1]} : vector<1x4x4x256xi32> to vector<1x1x1x256xi32>
    %258 = vector.shape_cast %257 : vector<1x1x1x256xi32> to vector<1x256xi32>
    %c128_i32_48 = arith.constant 128 : i32
    %259 = vector.broadcast %c128_i32_48 : i32 to vector<1x256xi32>
    %260 = arith.subi %258, %259 : vector<1x256xi32>
    %261 = vector.extract_strided_slice %0 {offsets = [0, 2, 3, 0], sizes = [1, 1, 1, 256], strides = [1, 1, 1, 1]} : vector<1x4x4x256xi32> to vector<1x1x1x256xi32>
    %262 = vector.shape_cast %261 : vector<1x1x1x256xi32> to vector<1x256xi32>
    %c128_i32_49 = arith.constant 128 : i32
    %263 = vector.broadcast %c128_i32_49 : i32 to vector<1x256xi32>
    %264 = arith.subi %262, %263 : vector<1x256xi32>
    %265 = vector.broadcast %252 : vector<1x256xi32> to vector<128x256xi32>
    %266 = arith.cmpi eq, %2, %265 : vector<128x256xi32>
    %267 = vector.extract_strided_slice %1 {offsets = [0, 2, 0, 0], sizes = [1, 1, 1, 256], strides = [1, 1, 1, 1]} : vector<1x4x4x256xf32> to vector<1x1x1x256xf32>
    %268 = vector.shape_cast %267 : vector<1x1x1x256xf32> to vector<1x256xf32>
    %269 = vector.broadcast %256 : vector<1x256xi32> to vector<128x256xi32>
    %270 = arith.cmpi eq, %2, %269 : vector<128x256xi32>
    %271 = vector.extract_strided_slice %1 {offsets = [0, 2, 1, 0], sizes = [1, 1, 1, 256], strides = [1, 1, 1, 1]} : vector<1x4x4x256xf32> to vector<1x1x1x256xf32>
    %272 = vector.shape_cast %271 : vector<1x1x1x256xf32> to vector<1x256xf32>
    %273 = vector.broadcast %260 : vector<1x256xi32> to vector<128x256xi32>
    %274 = arith.cmpi eq, %2, %273 : vector<128x256xi32>
    %275 = vector.extract_strided_slice %1 {offsets = [0, 2, 2, 0], sizes = [1, 1, 1, 256], strides = [1, 1, 1, 1]} : vector<1x4x4x256xf32> to vector<1x1x1x256xf32>
    %276 = vector.shape_cast %275 : vector<1x1x1x256xf32> to vector<1x256xf32>
    %277 = vector.broadcast %264 : vector<1x256xi32> to vector<128x256xi32>
    %278 = arith.cmpi eq, %2, %277 : vector<128x256xi32>
    %279 = vector.extract_strided_slice %1 {offsets = [0, 2, 3, 0], sizes = [1, 1, 1, 256], strides = [1, 1, 1, 1]} : vector<1x4x4x256xf32> to vector<1x1x1x256xf32>
    %280 = vector.shape_cast %279 : vector<1x1x1x256xf32> to vector<1x256xf32>
    %cst_50 = arith.constant 0.000000e+00 : f32
    %281 = vector.shape_cast %280 : vector<1x256xf32> to vector<1x256xf32>
    %282 = vector.broadcast %281 : vector<1x256xf32> to vector<128x256xf32>
    %283 = vector.broadcast %cst_50 : f32 to vector<128x256xf32>
    %284 = arith.select %278, %282, %283 : vector<128x256xi1>, vector<128x256xf32>
    %285 = vector.shape_cast %276 : vector<1x256xf32> to vector<1x256xf32>
    %286 = vector.broadcast %285 : vector<1x256xf32> to vector<128x256xf32>
    %287 = arith.select %274, %286, %284 : vector<128x256xi1>, vector<128x256xf32>
    %288 = vector.shape_cast %272 : vector<1x256xf32> to vector<1x256xf32>
    %289 = vector.broadcast %288 : vector<1x256xf32> to vector<128x256xf32>
    %290 = arith.select %270, %289, %287 : vector<128x256xi1>, vector<128x256xf32>
    %291 = vector.shape_cast %268 : vector<1x256xf32> to vector<1x256xf32>
    %292 = vector.broadcast %291 : vector<1x256xf32> to vector<128x256xf32>
    %293 = arith.select %266, %292, %290 : vector<128x256xi1>, vector<128x256xf32>
    %c0_51 = arith.constant 0 : index
    %c0_52 = arith.constant 0 : index
    %c640 = arith.constant 640 : index
    %294 = vector.load %arg3[%c0_51, %c0_52, %c640] : memref<1x8x1024xf32, #tpu.memory_space<vmem>>, vector<1x8x128xf32>
    %295 = vector.shape_cast %294 : vector<1x8x128xf32> to vector<8x128xf32>
    %cst_53 = arith.constant dense<0.000000e+00> : vector<8x256xf32>
    %296 = tpu.matmul %295, %293, %cst_53 {dimension_numbers = #tpu.dot_dimension_numbers<[1], [0], [0], [1], [0, 0, 1, 1], [], []>} : vector<8x128xf32>, vector<128x256xf32>, vector<8x256xf32> -> vector<8x256xf32>
    %297 = arith.addf %248, %296 : vector<8x256xf32>
    %298 = vector.extract_strided_slice %0 {offsets = [0, 3, 0, 0], sizes = [1, 1, 1, 256], strides = [1, 1, 1, 1]} : vector<1x4x4x256xi32> to vector<1x1x1x256xi32>
    %299 = vector.shape_cast %298 : vector<1x1x1x256xi32> to vector<1x256xi32>
    %c0_i32_54 = arith.constant 0 : i32
    %300 = vector.broadcast %c0_i32_54 : i32 to vector<1x256xi32>
    %301 = arith.subi %299, %300 : vector<1x256xi32>
    %302 = vector.extract_strided_slice %0 {offsets = [0, 3, 1, 0], sizes = [1, 1, 1, 256], strides = [1, 1, 1, 1]} : vector<1x4x4x256xi32> to vector<1x1x1x256xi32>
    %303 = vector.shape_cast %302 : vector<1x1x1x256xi32> to vector<1x256xi32>
    %c0_i32_55 = arith.constant 0 : i32
    %304 = vector.broadcast %c0_i32_55 : i32 to vector<1x256xi32>
    %305 = arith.subi %303, %304 : vector<1x256xi32>
    %306 = vector.extract_strided_slice %0 {offsets = [0, 3, 2, 0], sizes = [1, 1, 1, 256], strides = [1, 1, 1, 1]} : vector<1x4x4x256xi32> to vector<1x1x1x256xi32>
    %307 = vector.shape_cast %306 : vector<1x1x1x256xi32> to vector<1x256xi32>
    %c0_i32_56 = arith.constant 0 : i32
    %308 = vector.broadcast %c0_i32_56 : i32 to vector<1x256xi32>
    %309 = arith.subi %307, %308 : vector<1x256xi32>
    %310 = vector.extract_strided_slice %0 {offsets = [0, 3, 3, 0], sizes = [1, 1, 1, 256], strides = [1, 1, 1, 1]} : vector<1x4x4x256xi32> to vector<1x1x1x256xi32>
    %311 = vector.shape_cast %310 : vector<1x1x1x256xi32> to vector<1x256xi32>
    %c0_i32_57 = arith.constant 0 : i32
    %312 = vector.broadcast %c0_i32_57 : i32 to vector<1x256xi32>
    %313 = arith.subi %311, %312 : vector<1x256xi32>
    %314 = vector.broadcast %301 : vector<1x256xi32> to vector<128x256xi32>
    %315 = arith.cmpi eq, %2, %314 : vector<128x256xi32>
    %316 = vector.extract_strided_slice %1 {offsets = [0, 3, 0, 0], sizes = [1, 1, 1, 256], strides = [1, 1, 1, 1]} : vector<1x4x4x256xf32> to vector<1x1x1x256xf32>
    %317 = vector.shape_cast %316 : vector<1x1x1x256xf32> to vector<1x256xf32>
    %318 = vector.broadcast %305 : vector<1x256xi32> to vector<128x256xi32>
    %319 = arith.cmpi eq, %2, %318 : vector<128x256xi32>
    %320 = vector.extract_strided_slice %1 {offsets = [0, 3, 1, 0], sizes = [1, 1, 1, 256], strides = [1, 1, 1, 1]} : vector<1x4x4x256xf32> to vector<1x1x1x256xf32>
    %321 = vector.shape_cast %320 : vector<1x1x1x256xf32> to vector<1x256xf32>
    %322 = vector.broadcast %309 : vector<1x256xi32> to vector<128x256xi32>
    %323 = arith.cmpi eq, %2, %322 : vector<128x256xi32>
    %324 = vector.extract_strided_slice %1 {offsets = [0, 3, 2, 0], sizes = [1, 1, 1, 256], strides = [1, 1, 1, 1]} : vector<1x4x4x256xf32> to vector<1x1x1x256xf32>
    %325 = vector.shape_cast %324 : vector<1x1x1x256xf32> to vector<1x256xf32>
    %326 = vector.broadcast %313 : vector<1x256xi32> to vector<128x256xi32>
    %327 = arith.cmpi eq, %2, %326 : vector<128x256xi32>
    %328 = vector.extract_strided_slice %1 {offsets = [0, 3, 3, 0], sizes = [1, 1, 1, 256], strides = [1, 1, 1, 1]} : vector<1x4x4x256xf32> to vector<1x1x1x256xf32>
    %329 = vector.shape_cast %328 : vector<1x1x1x256xf32> to vector<1x256xf32>
    %cst_58 = arith.constant 0.000000e+00 : f32
    %330 = vector.shape_cast %329 : vector<1x256xf32> to vector<1x256xf32>
    %331 = vector.broadcast %330 : vector<1x256xf32> to vector<128x256xf32>
    %332 = vector.broadcast %cst_58 : f32 to vector<128x256xf32>
    %333 = arith.select %327, %331, %332 : vector<128x256xi1>, vector<128x256xf32>
    %334 = vector.shape_cast %325 : vector<1x256xf32> to vector<1x256xf32>
    %335 = vector.broadcast %334 : vector<1x256xf32> to vector<128x256xf32>
    %336 = arith.select %323, %335, %333 : vector<128x256xi1>, vector<128x256xf32>
    %337 = vector.shape_cast %321 : vector<1x256xf32> to vector<1x256xf32>
    %338 = vector.broadcast %337 : vector<1x256xf32> to vector<128x256xf32>
    %339 = arith.select %319, %338, %336 : vector<128x256xi1>, vector<128x256xf32>
    %340 = vector.shape_cast %317 : vector<1x256xf32> to vector<1x256xf32>
    %341 = vector.broadcast %340 : vector<1x256xf32> to vector<128x256xf32>
    %342 = arith.select %315, %341, %339 : vector<128x256xi1>, vector<128x256xf32>
    %c0_59 = arith.constant 0 : index
    %c0_60 = arith.constant 0 : index
    %c768 = arith.constant 768 : index
    %343 = vector.load %arg3[%c0_59, %c0_60, %c768] : memref<1x8x1024xf32, #tpu.memory_space<vmem>>, vector<1x8x128xf32>
    %344 = vector.shape_cast %343 : vector<1x8x128xf32> to vector<8x128xf32>
    %cst_61 = arith.constant dense<0.000000e+00> : vector<8x256xf32>
    %345 = tpu.matmul %344, %342, %cst_61 {dimension_numbers = #tpu.dot_dimension_numbers<[1], [0], [0], [1], [0, 0, 1, 1], [], []>} : vector<8x128xf32>, vector<128x256xf32>, vector<8x256xf32> -> vector<8x256xf32>
    %346 = arith.addf %297, %345 : vector<8x256xf32>
    %347 = vector.extract_strided_slice %0 {offsets = [0, 3, 0, 0], sizes = [1, 1, 1, 256], strides = [1, 1, 1, 1]} : vector<1x4x4x256xi32> to vector<1x1x1x256xi32>
    %348 = vector.shape_cast %347 : vector<1x1x1x256xi32> to vector<1x256xi32>
    %c128_i32_62 = arith.constant 128 : i32
    %349 = vector.broadcast %c128_i32_62 : i32 to vector<1x256xi32>
    %350 = arith.subi %348, %349 : vector<1x256xi32>
    %351 = vector.extract_strided_slice %0 {offsets = [0, 3, 1, 0], sizes = [1, 1, 1, 256], strides = [1, 1, 1, 1]} : vector<1x4x4x256xi32> to vector<1x1x1x256xi32>
    %352 = vector.shape_cast %351 : vector<1x1x1x256xi32> to vector<1x256xi32>
    %c128_i32_63 = arith.constant 128 : i32
    %353 = vector.broadcast %c128_i32_63 : i32 to vector<1x256xi32>
    %354 = arith.subi %352, %353 : vector<1x256xi32>
    %355 = vector.extract_strided_slice %0 {offsets = [0, 3, 2, 0], sizes = [1, 1, 1, 256], strides = [1, 1, 1, 1]} : vector<1x4x4x256xi32> to vector<1x1x1x256xi32>
    %356 = vector.shape_cast %355 : vector<1x1x1x256xi32> to vector<1x256xi32>
    %c128_i32_64 = arith.constant 128 : i32
    %357 = vector.broadcast %c128_i32_64 : i32 to vector<1x256xi32>
    %358 = arith.subi %356, %357 : vector<1x256xi32>
    %359 = vector.extract_strided_slice %0 {offsets = [0, 3, 3, 0], sizes = [1, 1, 1, 256], strides = [1, 1, 1, 1]} : vector<1x4x4x256xi32> to vector<1x1x1x256xi32>
    %360 = vector.shape_cast %359 : vector<1x1x1x256xi32> to vector<1x256xi32>
    %c128_i32_65 = arith.constant 128 : i32
    %361 = vector.broadcast %c128_i32_65 : i32 to vector<1x256xi32>
    %362 = arith.subi %360, %361 : vector<1x256xi32>
    %363 = vector.broadcast %350 : vector<1x256xi32> to vector<128x256xi32>
    %364 = arith.cmpi eq, %2, %363 : vector<128x256xi32>
    %365 = vector.extract_strided_slice %1 {offsets = [0, 3, 0, 0], sizes = [1, 1, 1, 256], strides = [1, 1, 1, 1]} : vector<1x4x4x256xf32> to vector<1x1x1x256xf32>
    %366 = vector.shape_cast %365 : vector<1x1x1x256xf32> to vector<1x256xf32>
    %367 = vector.broadcast %354 : vector<1x256xi32> to vector<128x256xi32>
    %368 = arith.cmpi eq, %2, %367 : vector<128x256xi32>
    %369 = vector.extract_strided_slice %1 {offsets = [0, 3, 1, 0], sizes = [1, 1, 1, 256], strides = [1, 1, 1, 1]} : vector<1x4x4x256xf32> to vector<1x1x1x256xf32>
    %370 = vector.shape_cast %369 : vector<1x1x1x256xf32> to vector<1x256xf32>
    %371 = vector.broadcast %358 : vector<1x256xi32> to vector<128x256xi32>
    %372 = arith.cmpi eq, %2, %371 : vector<128x256xi32>
    %373 = vector.extract_strided_slice %1 {offsets = [0, 3, 2, 0], sizes = [1, 1, 1, 256], strides = [1, 1, 1, 1]} : vector<1x4x4x256xf32> to vector<1x1x1x256xf32>
    %374 = vector.shape_cast %373 : vector<1x1x1x256xf32> to vector<1x256xf32>
    %375 = vector.broadcast %362 : vector<1x256xi32> to vector<128x256xi32>
    %376 = arith.cmpi eq, %2, %375 : vector<128x256xi32>
    %377 = vector.extract_strided_slice %1 {offsets = [0, 3, 3, 0], sizes = [1, 1, 1, 256], strides = [1, 1, 1, 1]} : vector<1x4x4x256xf32> to vector<1x1x1x256xf32>
    %378 = vector.shape_cast %377 : vector<1x1x1x256xf32> to vector<1x256xf32>
    %cst_66 = arith.constant 0.000000e+00 : f32
    %379 = vector.shape_cast %378 : vector<1x256xf32> to vector<1x256xf32>
    %380 = vector.broadcast %379 : vector<1x256xf32> to vector<128x256xf32>
    %381 = vector.broadcast %cst_66 : f32 to vector<128x256xf32>
    %382 = arith.select %376, %380, %381 : vector<128x256xi1>, vector<128x256xf32>
    %383 = vector.shape_cast %374 : vector<1x256xf32> to vector<1x256xf32>
    %384 = vector.broadcast %383 : vector<1x256xf32> to vector<128x256xf32>
    %385 = arith.select %372, %384, %382 : vector<128x256xi1>, vector<128x256xf32>
    %386 = vector.shape_cast %370 : vector<1x256xf32> to vector<1x256xf32>
    %387 = vector.broadcast %386 : vector<1x256xf32> to vector<128x256xf32>
    %388 = arith.select %368, %387, %385 : vector<128x256xi1>, vector<128x256xf32>
    %389 = vector.shape_cast %366 : vector<1x256xf32> to vector<1x256xf32>
    %390 = vector.broadcast %389 : vector<1x256xf32> to vector<128x256xf32>
    %391 = arith.select %364, %390, %388 : vector<128x256xi1>, vector<128x256xf32>
    %c0_67 = arith.constant 0 : index
    %c0_68 = arith.constant 0 : index
    %c896 = arith.constant 896 : index
    %392 = vector.load %arg3[%c0_67, %c0_68, %c896] : memref<1x8x1024xf32, #tpu.memory_space<vmem>>, vector<1x8x128xf32>
    %393 = vector.shape_cast %392 : vector<1x8x128xf32> to vector<8x128xf32>
    %cst_69 = arith.constant dense<0.000000e+00> : vector<8x256xf32>
    %394 = tpu.matmul %393, %391, %cst_69 {dimension_numbers = #tpu.dot_dimension_numbers<[1], [0], [0], [1], [0, 0, 1, 1], [], []>} : vector<8x128xf32>, vector<128x256xf32>, vector<8x256xf32> -> vector<8x256xf32>
    %395 = arith.addf %346, %394 : vector<8x256xf32>
    %c0_70 = arith.constant 0 : index
    %c0_71 = arith.constant 0 : index
    %c0_72 = arith.constant 0 : index
    %396 = vector.load %arg4[%c0_70, %c0_71, %c0_72] : memref<1x8x256xf32, #tpu.memory_space<vmem>>, vector<1x8x256xf32>
    %397 = vector.shape_cast %396 : vector<1x8x256xf32> to vector<8x256xf32>
    %398 = vector.shape_cast %395 : vector<8x256xf32> to vector<1x8x256xf32>
    tpu.vector_store %arg4[%c0_70, %c0_71, %c0_72], %398 {strides = array<i32>} : memref<1x8x256xf32, #tpu.memory_space<vmem>>, vector<1x8x256xf32>,
    return
  }
  func.func @transform_0(%arg0: i32) -> (i32, i32, i32, i32) {
    %c0_i32 = arith.constant 0 : i32
    %c0_i32_0 = arith.constant 0 : i32
    %c0_i32_1 = arith.constant 0 : i32
    %c0_i32_2 = arith.constant 0 : i32
    return %arg0, %c0_i32, %c0_i32_0, %c0_i32_1 : i32, i32, i32, i32
  }
  func.func @transform_1(%arg0: i32) -> (i32, i32, i32, i32) {
    %c0_i32 = arith.constant 0 : i32
    %c0_i32_0 = arith.constant 0 : i32
    %c0_i32_1 = arith.constant 0 : i32
    %c0_i32_2 = arith.constant 0 : i32
    return %arg0, %c0_i32, %c0_i32_0, %c0_i32_1 : i32, i32, i32, i32
  }
  func.func @transform_2(%arg0: i32) -> (i32, i32, i32) {
    %c0_i32 = arith.constant 0 : i32
    %c0_i32_0 = arith.constant 0 : i32
    %c0_i32_1 = arith.constant 0 : i32
    return %arg0, %c0_i32, %c0_i32_0 : i32, i32, i32
  }
  func.func @transform_3(%arg0: i32) -> (i32, i32, i32) {
    %c0_i32 = arith.constant 0 : i32
    %c0_i32_0 = arith.constant 0 : i32
    %c0_i32_1 = arith.constant 0 : i32
    return %arg0, %c0_i32, %c0_i32_0 : i32, i32, i32
  }
}

</mosaic_0001>

<llo_original>
// kernel: tpu_custom_call.1
$region0: #{tpu_custom_call.1}
  #allocation0 [shape = 'u32[]', space=smem, size = 0x4, offset = 0x4, fixed_abs, tag = 'smem constant byte address 0x4 - core index']
  #allocation1 [shape = 'u32[144,128]{1,0:T(1,128)}', space=vmem, size = 0x12000, scoped, tag = 'internal scratch']
  %s0 = inlined_call_operand.hbm [shape: s32[2,4,4,256], index: 0, kind: input, shape index: {}]
  %s1 = inlined_call_operand.hbm [shape: f32[2,4,4,256], index: 1, kind: input, shape index: {}]
  %s2 = inlined_call_operand.hbm [shape: f32[2,8,1024], index: 2, kind: input, shape index: {}]
  %s3 = inlined_call_operand.hbm [shape: f32[2,8,256], index: 3, kind: output, shape index: {}]
  %s4 = sld [smem:[#allocation0]]
  $region57: #{tpu_custom_call.1} parent=0
    _
  %s6 = ssub.s32 1, %s4
  %s7 = scalar_select 0, %s6, %s4
  $region1: #{tpu_custom_call.1} parent=0
    #allocation2 [shape = 'u8[32768]{0}', space=vmem, size = 0x8000, scoped, tag = 'input window, operand 0']
    #allocation3 [shape = 's32[2]{0}', space=sflag, size = 0x8, scoped, tag = 'scoped memory for tpu_custom_call.1']
    #allocation4 [shape = 's32[2]{0}', space=sflag, size = 0x8, scoped, tag = 'scoped memory for tpu_custom_call.1']
    #allocation5 [shape = 'u8[32768]{0}', space=vmem, size = 0x8000, scoped, tag = 'input window, operand 1']
    #allocation6 [shape = 's32[2]{0}', space=sflag, size = 0x8, scoped, tag = 'scoped memory for tpu_custom_call.1']
    #allocation7 [shape = 'u8[65536]{0}', space=vmem, size = 0x10000, scoped, tag = 'input window, operand 2']
    #allocation8 [shape = 'u8[16384]{0}', space=vmem, size = 0x4000, scoped, tag = 'output window, operand 0']
    %8 = vsyncpa [#allocation3], 0
    %s9 = scalar_lea.sflag [#allocation3], 1
    %10 = vsyncpa %s9, 0
    %11 = vsyncpa [#allocation6], 0
    %s12 = scalar_lea.sflag [#allocation6], 1
    %13 = vsyncpa %s12, 0
    %14 = vsyncpa [#allocation4], 0
    %s15 = scalar_lea.sflag [#allocation4], 1
    %16 = vsyncpa %s15, 0
    loop: start=0, step=1, limit=4
    $region2: #{tpu_custom_call.1} parent=1 // loop_pre_header
      _
    $region3: #{tpu_custom_call.1} parent=1 // loop_header
      %s18 = sphi 0, %s22
      %p19 = scmp.ge.s32.totalorder %s18, 4
      %s28 = sphi 0, %s30
      %s31 = sphi 0, %s28
      %s32 = sphi 0, %s31
      %s48 = sphi 0, %s32
      %s54 = sphi 0, %s56
      %s57 = sphi 0, %s54
      %s58 = sphi 0, %s57
      %s74 = sphi 0, %s58
      %s80 = sphi 0, %s82
      %s83 = sphi 0, %s80
      %s84 = sphi 0, %s83
      %s100 = sphi 0, %s84
      %s106 = sphi 0, %s108
      %s109 = sphi 0, %s106
      %s110 = sphi 0, %s109
      %s126 = sphi 0, %s110
    $region4: #{tpu_custom_call.1} parent=1 // loop_header_branch
      %21 = sbr.rel (%p19) target = $region8
    $region5: #{tpu_custom_call.1} parent=1 // loop_body
      %s23 = ssub.s32 %s18, 1
      %s24 = ssub.s32 %s18, 2
      %s25 = sadd.s32 %s18, 1
      %s26 = ssub.s32 %s18, %s25
      %p27 = scmp.eq.s32.totalorder %s26, 0
      %s29 = sadd.s32 %s28, 1
      %s30 = scalar_select %p27, %s28, %s29
      %p33 = pneg %p27
      %p34 = scmp.eq.s32.totalorder %s18, 1
      %p35 = por %p33, %p34
      %p36 = scmp.ne.s32.totalorder %s28, %s31
      %p37 = scmp.eq.s32.totalorder %s18, 0
      %p38 = por %p36, %p37
      %p39 = scmp.ne.s32.totalorder %s28, %s31
      %p40 = scmp.eq.s32.totalorder %s23, 1
      %p41 = por %p39, %p40
      %p42 = scmp.ne.s32.totalorder %s31, %s32
      %p43 = scmp.eq.s32.totalorder %s23, 0
      %p44 = por %p42, %p43
      %p45 = scmp.ne.s32.totalorder %s31, %s32
      %p46 = scmp.eq.s32.totalorder %s24, 1
      %p47 = por %p45, %p46
      %p49 = scmp.ne.s32.totalorder %s32, %s48
      %p50 = scmp.eq.s32.totalorder %s24, 0
      %p51 = por %p49, %p50
      %s52 = ssub.s32 %s18, %s25
      %p53 = scmp.eq.s32.totalorder %s52, 0
      %s55 = sadd.s32 %s54, 1
      %s56 = scalar_select %p53, %s54, %s55
      %p59 = pneg %p53
      %p60 = scmp.eq.s32.totalorder %s18, 1
      %p61 = por %p59, %p60
      %p62 = scmp.ne.s32.totalorder %s54, %s57
      %p63 = scmp.eq.s32.totalorder %s18, 0
      %p64 = por %p62, %p63
      %p65 = scmp.ne.s32.totalorder %s54, %s57
      %p66 = scmp.eq.s32.totalorder %s23, 1
      %p67 = por %p65, %p66
      %p68 = scmp.ne.s32.totalorder %s57, %s58
      %p69 = scmp.eq.s32.totalorder %s23, 0
      %p70 = por %p68, %p69
      %p71 = scmp.ne.s32.totalorder %s57, %s58
      %p72 = scmp.eq.s32.totalorder %s24, 1
      %p73 = por %p71, %p72
      %p75 = scmp.ne.s32.totalorder %s58, %s74
      %p76 = scmp.eq.s32.totalorder %s24, 0
      %p77 = por %p75, %p76
      %s78 = ssub.s32 %s18, %s25
      %p79 = scmp.eq.s32.totalorder %s78, 0
      %s81 = sadd.s32 %s80, 1
      %s82 = scalar_select %p79, %s80, %s81
      %p85 = pneg %p79
      %p86 = scmp.eq.s32.totalorder %s18, 1
      %p87 = por %p85, %p86
      %p88 = scmp.ne.s32.totalorder %s80, %s83
      %p89 = scmp.eq.s32.totalorder %s18, 0
      %p90 = por %p88, %p89
      %p91 = scmp.ne.s32.totalorder %s80, %s83
      %p92 = scmp.eq.s32.totalorder %s23, 1
      %p93 = por %p91, %p92
      %p94 = scmp.ne.s32.totalorder %s83, %s84
      %p95 = scmp.eq.s32.totalorder %s23, 0
      %p96 = por %p94, %p95
      %p97 = scmp.ne.s32.totalorder %s83, %s84
      %p98 = scmp.eq.s32.totalorder %s24, 1
      %p99 = por %p97, %p98
      %p101 = scmp.ne.s32.totalorder %s84, %s100
      %p102 = scmp.eq.s32.totalorder %s24, 0
      %p103 = por %p101, %p102
      %s104 = ssub.s32 %s18, %s25
      %p105 = scmp.eq.s32.totalorder %s104, 0
      %s107 = sadd.s32 %s106, 1
      %s108 = scalar_select %p105, %s106, %s107
      %p111 = pneg %p105
      %p112 = scmp.eq.s32.totalorder %s18, 1
      %p113 = por %p111, %p112
      %p114 = scmp.ne.s32.totalorder %s106, %s109
      %p115 = scmp.eq.s32.totalorder %s18, 0
      %p116 = por %p114, %p115
      %p117 = scmp.ne.s32.totalorder %s106, %s109
      %p118 = scmp.eq.s32.totalorder %s23, 1
      %p119 = por %p117, %p118
      %p120 = scmp.ne.s32.totalorder %s109, %s110
      %p121 = scmp.eq.s32.totalorder %s23, 0
      %p122 = por %p120, %p121
      %p123 = scmp.ne.s32.totalorder %s109, %s110
      %p124 = scmp.eq.s32.totalorder %s24, 1
      %p125 = por %p123, %p124
      %p127 = scmp.ne.s32.totalorder %s110, %s126
      %p128 = scmp.eq.s32.totalorder %s24, 0
      %p129 = por %p127, %p128
      %p130 = scmp.le.s32.totalorder 1, %s18
      %p131 = scmp.lt.s32.totalorder %s18, 3
      %p132 = pnand %p130, %p131
      %p133 = pneg %p132
      // Predicated region
      $region9: #{tpu_custom_call.1} parent=5 // pred_check
        _
      $region10: #{tpu_custom_call.1} parent=5 // pred_check_branch
        %135 = sbr.rel (%p132) target = $region12
      $region11: #{tpu_custom_call.1} parent=5 // pred_region
        %s136 = ssub.s32 %s18, 1
      $region12: #{tpu_custom_call.1} parent=5 // pred_fallthru
        _
      %p137 = scmp.lt.s32.totalorder %s18, 2
      // Predicated region
      $region13: #{tpu_custom_call.1} parent=5 // pred_check
        %p138 = pneg %p137
      $region14: #{tpu_custom_call.1} parent=5 // pred_check_branch
        %140 = sbr.rel (%p138) target = $region16
      $region15: #{tpu_custom_call.1} parent=5 // pred_region
        // Predicated region
        $region17: #{tpu_custom_call.1} parent=15 // pred_check
          %p141 = pneg %p38
        $region18: #{tpu_custom_call.1} parent=15 // pred_check_branch
          %143 = sbr.rel (%p141) target = $region20
        $region19: #{tpu_custom_call.1} parent=15 // pred_region
          %s144 = sand.u32 %s28, 1
          %s145 = scalar_lea.sflag [#allocation3], %s144
          %s146 = sand.u32 %s28, 1
          %s147 = smul.addr %s146, 32
          %s148 = scalar_lea.vmem [#allocation2], %s147
          %s150 = ssub.s32 512, 512
          %151 = vsyncadd %s145, %s150
          %s152 = smul.addr %s18, 8
          %s153 = smul.addr %s152, 64
          %s154 = scalar_lea.hbm %s0, %s153
          %s155 = sshll.u32 %s148, 4
          %s156 = int_to_ptr.vmem [resolvable:$true] %s155
          %161 = dma.hbm_to_vmem [thread:$0]  %s154, 512, %s156, %s145, 128, 128, 8
        $region20: #{tpu_custom_call.1} parent=15 // pred_fallthru
          _
        // Predicated region
        $region21: #{tpu_custom_call.1} parent=15 // pred_check
          %p162 = pneg %p64
        $region22: #{tpu_custom_call.1} parent=15 // pred_check_branch
          %164 = sbr.rel (%p162) target = $region24
        $region23: #{tpu_custom_call.1} parent=15 // pred_region
          %s165 = sand.u32 %s18, 1
          %s166 = scalar_lea.sflag [#allocation6], %s165
          %s167 = sand.u32 %s54, 1
          %s168 = smul.addr %s167, 32
          %s169 = scalar_lea.vmem [#allocation5], %s168
          %s171 = ssub.s32 512, 512
          %172 = vsyncadd %s166, %s171
          %s173 = smul.addr %s18, 8
          %s174 = smul.addr %s173, 64
          %s175 = scalar_lea.hbm %s1, %s174
          %s176 = sshll.u32 %s169, 4
          %s177 = int_to_ptr.vmem [resolvable:$true] %s176
          %182 = dma.hbm_to_vmem [thread:$0]  %s175, 512, %s177, %s166, 128, 128, 8
        $region24: #{tpu_custom_call.1} parent=15 // pred_fallthru
          _
        // Predicated region
        $region25: #{tpu_custom_call.1} parent=15 // pred_check
          %p183 = pneg %p90
        $region26: #{tpu_custom_call.1} parent=15 // pred_check_branch
          %185 = sbr.rel (%p183) target = $region28
        $region27: #{tpu_custom_call.1} parent=15 // pred_region
          %s186 = sand.u32 %s18, 1
          %s187 = scalar_lea.sflag [#allocation6], %s186
          %s188 = sand.u32 %s80, 1
          %s189 = smul.addr %s188, 64
          %s190 = scalar_lea.vmem [#allocation7], %s189
          %s192 = ssub.s32 1024, 1024
          %193 = vsyncadd %s187, %s192
          %s194 = smul.addr %s18, 8
          %s195 = smul.addr %s194, 128
          %s196 = scalar_lea.hbm %s2, %s195
          %s198 = sshll.u32 %s190, 4
          %s199 = int_to_ptr.vmem [resolvable:$true] %s198
          %201 = dma.hbm_to_vmem [thread:$0]  %s196, 1024, %s199, %s187
        $region28: #{tpu_custom_call.1} parent=15 // pred_fallthru
          _
      $region16: #{tpu_custom_call.1} parent=5 // pred_fallthru
        _
      %p202 = scmp.le.s32.totalorder 1, %s18
      %p203 = scmp.lt.s32.totalorder %s18, 3
      %p204 = pnand %p202, %p203
      %p205 = pneg %p204
      // Predicated region
      $region29: #{tpu_custom_call.1} parent=5 // pred_check
        _
      $region30: #{tpu_custom_call.1} parent=5 // pred_check_branch
        %207 = sbr.rel (%p204) target = $region32
      $region31: #{tpu_custom_call.1} parent=5 // pred_region
        %s208 = ssub.s32 %s18, 1
        %s209 = sand.u32 %s31, 1
        %s210 = scalar_lea.sflag [#allocation3], %s209
        %s211 = sand.u32 %s31, 1
        %s212 = smul.addr %s211, 32
        %s213 = scalar_lea.vmem [#allocation2], %s212
        // Predicated region
        $region33: #{tpu_custom_call.1} parent=31 // pred_check
          %p214 = pneg %p44
        $region34: #{tpu_custom_call.1} parent=31 // pred_check_branch
          %216 = sbr.rel (%p214) target = $region36
        $region35: #{tpu_custom_call.1} parent=31 // pred_region
          %217 = dma.done %s210, 512
        $region36: #{tpu_custom_call.1} parent=31 // pred_fallthru
          _
        %s218 = sand.u32 %s23, 1
        %s219 = scalar_lea.sflag [#allocation6], %s218
        %s220 = sand.u32 %s57, 1
        %s221 = smul.addr %s220, 32
        %s222 = scalar_lea.vmem [#allocation5], %s221
        // Predicated region
        $region37: #{tpu_custom_call.1} parent=31 // pred_check
          %p223 = pneg %p70
        $region38: #{tpu_custom_call.1} parent=31 // pred_check_branch
          %225 = sbr.rel (%p223) target = $region40
        $region39: #{tpu_custom_call.1} parent=31 // pred_region
          %226 = dma.done %s219, 512
        $region40: #{tpu_custom_call.1} parent=31 // pred_fallthru
          _
        %s227 = sand.u32 %s23, 1
        %s228 = scalar_lea.sflag [#allocation6], %s227
        %s229 = sand.u32 %s83, 1
        %s230 = smul.addr %s229, 64
        %s231 = scalar_lea.vmem [#allocation7], %s230
        // Predicated region
        $region41: #{tpu_custom_call.1} parent=31 // pred_check
          %p232 = pneg %p96
        $region42: #{tpu_custom_call.1} parent=31 // pred_check_branch
          %234 = sbr.rel (%p232) target = $region44
        $region43: #{tpu_custom_call.1} parent=31 // pred_region
          %235 = dma.done %s228, 1024
        $region44: #{tpu_custom_call.1} parent=31 // pred_fallthru
          _
        %s236 = sand.u32 %s31, 1
        %s237 = scalar_lea.sflag [#allocation3], %s236
        %s238 = sand.u32 %s31, 1
        %s239 = smul.addr %s238, 32
        %s240 = scalar_lea.vmem [#allocation2], %s239
        %p241 = pneg %p44
        %p242 = pneg %p41
        %s243 = sand.u32 %s23, 1
        %s244 = scalar_lea.sflag [#allocation6], %s243
        %s245 = sand.u32 %s57, 1
        %s246 = smul.addr %s245, 32
        %s247 = scalar_lea.vmem [#allocation5], %s246
        %p248 = pneg %p70
        %p249 = pneg %p67
        %s250 = sand.u32 %s23, 1
        %s251 = scalar_lea.sflag [#allocation6], %s250
        %s252 = sand.u32 %s83, 1
        %s253 = smul.addr %s252, 64
        %s254 = scalar_lea.vmem [#allocation7], %s253
        %p255 = pneg %p96
        %p256 = pneg %p93
        %p257 = pneg %p122
        %p258 = pneg %p119
        %s259 = sand.u32 %s109, 1
        %s260 = scalar_lea.sflag [#allocation4], %s259
        %s261 = sand.u32 %s109, 1
        %s262 = smul.addr %s261, 16
        %s263 = scalar_lea.vmem [#allocation8], %s262
        %v264 = vld [vmem:[%s213] sm:$0xff]
        %v265 = vld [vmem:[%s213 + $0x8] sm:$0xff]
        %v266 = vld [vmem:[%s213 + $0x10] sm:$0xff]
        %v267 = vld [vmem:[%s213 + $0x18] sm:$0xff]
        %v268 = vld [vmem:[%s222] sm:$0xff]
        %v269 = vld [vmem:[%s222 + $0x8] sm:$0xff]
        %v270 = vld [vmem:[%s222 + $0x10] sm:$0xff]
        %v271 = vld [vmem:[%s222 + $0x18] sm:$0xff]
        %v272 = vlaneseq
        %v273 = vshrl.u32 %v272, 7
        %v274 = vadd.s32 %v273, 8
        %v275 = vadd.s32 %v273, 16
        %v276 = vadd.s32 %v273, 24
        %v277 = vadd.s32 %v273, 32
        %v278 = vadd.s32 %v273, 40
        %v279 = vadd.s32 %v273, 48
        %v280 = vadd.s32 %v273, 56
        %v281 = vadd.s32 %v273, 64
        %v282 = vadd.s32 %v273, 72
        %v283 = vadd.s32 %v273, 80
        %v284 = vadd.s32 %v273, 88
        %v285 = vadd.s32 %v273, 96
        %v286 = vadd.s32 %v273, 104
        %v287 = vadd.s32 %v273, 112
        %v288 = vadd.s32 %v273, 120
        %v289 = vlaneseq
        %v290 = vshrl.u32 %v289, 7
        %v291 = vsub.s32 0, %v290
        %v292 = vrot.slane %v264, %v291
        %v293 = vlaneseq
        %v294 = vshrl.u32 %v293, 7
        %v295 = vsub.s32 4, %v294
        %v296 = vrot.slane %v264, %v295
        %v297 = vlaneseq
        %v298 = vshrl.u32 %v297, 7
        %v299 = vsub.s32 0, %v298
        %v300 = vrot.slane %v292, %v299
        %v301 = vlaneseq
        %v302 = vshrl.u32 %v301, 7
        %v303 = vsub.s32 0, %v302
        %v304 = vrot.slane %v296, %v303
        %vm305 = vcmp.eq.s32.totalorder %v273, %v300
        %vm306 = vcmp.eq.s32.totalorder %v273, %v304
        %vm307 = vcmp.eq.s32.totalorder %v274, %v300
        %vm308 = vcmp.eq.s32.totalorder %v274, %v304
        %vm309 = vcmp.eq.s32.totalorder %v275, %v300
        %vm310 = vcmp.eq.s32.totalorder %v275, %v304
        %vm311 = vcmp.eq.s32.totalorder %v276, %v300
        %vm312 = vcmp.eq.s32.totalorder %v276, %v304
        %vm313 = vcmp.eq.s32.totalorder %v277, %v300
        %vm314 = vcmp.eq.s32.totalorder %v277, %v304
        %vm315 = vcmp.eq.s32.totalorder %v278, %v300
        %vm316 = vcmp.eq.s32.totalorder %v278, %v304
        %vm317 = vcmp.eq.s32.totalorder %v279, %v300
        %vm318 = vcmp.eq.s32.totalorder %v279, %v304
        %vm319 = vcmp.eq.s32.totalorder %v280, %v300
        %vm320 = vcmp.eq.s32.totalorder %v280, %v304
        %vm321 = vcmp.eq.s32.totalorder %v281, %v300
        %vm322 = vcmp.eq.s32.totalorder %v281, %v304
        %vm323 = vcmp.eq.s32.totalorder %v282, %v300
        %vm324 = vcmp.eq.s32.totalorder %v282, %v304
        %vm325 = vcmp.eq.s32.totalorder %v283, %v300
        %vm326 = vcmp.eq.s32.totalorder %v283, %v304
        %vm327 = vcmp.eq.s32.totalorder %v284, %v300
        %vm328 = vcmp.eq.s32.totalorder %v284, %v304
        %vm329 = vcmp.eq.s32.totalorder %v285, %v300
        %vm330 = vcmp.eq.s32.totalorder %v285, %v304
        %vm331 = vcmp.eq.s32.totalorder %v286, %v300
        %vm332 = vcmp.eq.s32.totalorder %v286, %v304
        %vm333 = vcmp.eq.s32.totalorder %v287, %v300
        %vm334 = vcmp.eq.s32.totalorder %v287, %v304
        %vm335 = vcmp.eq.s32.totalorder %v288, %v300
        %vm336 = vcmp.eq.s32.totalorder %v288, %v304
        %v337 = vlaneseq
        %v338 = vshrl.u32 %v337, 7
        %v339 = vsub.s32 1, %v338
        %v340 = vrot.slane %v264, %v339
        %v341 = vlaneseq
        %v342 = vshrl.u32 %v341, 7
        %v343 = vsub.s32 5, %v342
        %v344 = vrot.slane %v264, %v343
        %v345 = vlaneseq
        %v346 = vshrl.u32 %v345, 7
        %v347 = vsub.s32 1, %v346
        %v348 = vrot.slane %v340, %v347
        %v349 = vlaneseq
        %v350 = vshrl.u32 %v349, 7
        %v351 = vsub.s32 1, %v350
        %v352 = vrot.slane %v344, %v351
        %vm353 = vcmp.eq.s32.totalorder %v273, %v348
        %vm354 = vcmp.eq.s32.totalorder %v273, %v352
        %vm355 = vcmp.eq.s32.totalorder %v274, %v348
        %vm356 = vcmp.eq.s32.totalorder %v274, %v352
        %vm357 = vcmp.eq.s32.totalorder %v275, %v348
        %vm358 = vcmp.eq.s32.totalorder %v275, %v352
        %vm359 = vcmp.eq.s32.totalorder %v276, %v348
        %vm360 = vcmp.eq.s32.totalorder %v276, %v352
        %vm361 = vcmp.eq.s32.totalorder %v277, %v348
        %vm362 = vcmp.eq.s32.totalorder %v277, %v352
        %vm363 = vcmp.eq.s32.totalorder %v278, %v348
        %vm364 = vcmp.eq.s32.totalorder %v278, %v352
        %vm365 = vcmp.eq.s32.totalorder %v279, %v348
        %vm366 = vcmp.eq.s32.totalorder %v279, %v352
        %vm367 = vcmp.eq.s32.totalorder %v280, %v348
        %vm368 = vcmp.eq.s32.totalorder %v280, %v352
        %vm369 = vcmp.eq.s32.totalorder %v281, %v348
        %vm370 = vcmp.eq.s32.totalorder %v281, %v352
        %vm371 = vcmp.eq.s32.totalorder %v282, %v348
        %vm372 = vcmp.eq.s32.totalorder %v282, %v352
        %vm373 = vcmp.eq.s32.totalorder %v283, %v348
        %vm374 = vcmp.eq.s32.totalorder %v283, %v352
        %vm375 = vcmp.eq.s32.totalorder %v284, %v348
        %vm376 = vcmp.eq.s32.totalorder %v284, %v352
        %vm377 = vcmp.eq.s32.totalorder %v285, %v348
        %vm378 = vcmp.eq.s32.totalorder %v285, %v352
        %vm379 = vcmp.eq.s32.totalorder %v286, %v348
        %vm380 = vcmp.eq.s32.totalorder %v286, %v352
        %vm381 = vcmp.eq.s32.totalorder %v287, %v348
        %vm382 = vcmp.eq.s32.totalorder %v287, %v352
        %vm383 = vcmp.eq.s32.totalorder %v288, %v348
        %vm384 = vcmp.eq.s32.totalorder %v288, %v352
        %v385 = vlaneseq
        %v386 = vshrl.u32 %v385, 7
        %v387 = vsub.s32 2, %v386
        %v388 = vrot.slane %v264, %v387
        %v389 = vlaneseq
        %v390 = vshrl.u32 %v389, 7
        %v391 = vsub.s32 6, %v390
        %v392 = vrot.slane %v264, %v391
        %v393 = vlaneseq
        %v394 = vshrl.u32 %v393, 7
        %v395 = vsub.s32 2, %v394
        %v396 = vrot.slane %v388, %v395
        %v397 = vlaneseq
        %v398 = vshrl.u32 %v397, 7
        %v399 = vsub.s32 2, %v398
        %v400 = vrot.slane %v392, %v399
        %vm401 = vcmp.eq.s32.totalorder %v273, %v396
        %vm402 = vcmp.eq.s32.totalorder %v273, %v400
        %vm403 = vcmp.eq.s32.totalorder %v274, %v396
        %vm404 = vcmp.eq.s32.totalorder %v274, %v400
        %vm405 = vcmp.eq.s32.totalorder %v275, %v396
        %vm406 = vcmp.eq.s32.totalorder %v275, %v400
        %vm407 = vcmp.eq.s32.totalorder %v276, %v396
        %vm408 = vcmp.eq.s32.totalorder %v276, %v400
        %vm409 = vcmp.eq.s32.totalorder %v277, %v396
        %vm410 = vcmp.eq.s32.totalorder %v277, %v400
        %vm411 = vcmp.eq.s32.totalorder %v278, %v396
        %vm412 = vcmp.eq.s32.totalorder %v278, %v400
        %vm413 = vcmp.eq.s32.totalorder %v279, %v396
        %vm414 = vcmp.eq.s32.totalorder %v279, %v400
        %vm415 = vcmp.eq.s32.totalorder %v280, %v396
        %vm416 = vcmp.eq.s32.totalorder %v280, %v400
        %vm417 = vcmp.eq.s32.totalorder %v281, %v396
        %vm418 = vcmp.eq.s32.totalorder %v281, %v400
        %vm419 = vcmp.eq.s32.totalorder %v282, %v396
        %vm420 = vcmp.eq.s32.totalorder %v282, %v400
        %vm421 = vcmp.eq.s32.totalorder %v283, %v396
        %vm422 = vcmp.eq.s32.totalorder %v283, %v400
        %vm423 = vcmp.eq.s32.totalorder %v284, %v396
        %vm424 = vcmp.eq.s32.totalorder %v284, %v400
        %vm425 = vcmp.eq.s32.totalorder %v285, %v396
        %vm426 = vcmp.eq.s32.totalorder %v285, %v400
        %vm427 = vcmp.eq.s32.totalorder %v286, %v396
        %vm428 = vcmp.eq.s32.totalorder %v286, %v400
        %vm429 = vcmp.eq.s32.totalorder %v287, %v396
        %vm430 = vcmp.eq.s32.totalorder %v287, %v400
        %vm431 = vcmp.eq.s32.totalorder %v288, %v396
        %vm432 = vcmp.eq.s32.totalorder %v288, %v400
        %v433 = vlaneseq
        %v434 = vshrl.u32 %v433, 7
        %v435 = vsub.s32 3, %v434
        %v436 = vrot.slane %v264, %v435
        %v437 = vlaneseq
        %v438 = vshrl.u32 %v437, 7
        %v439 = vsub.s32 7, %v438
        %v440 = vrot.slane %v264, %v439
        %v441 = vlaneseq
        %v442 = vshrl.u32 %v441, 7
        %v443 = vsub.s32 3, %v442
        %v444 = vrot.slane %v436, %v443
        %v445 = vlaneseq
        %v446 = vshrl.u32 %v445, 7
        %v447 = vsub.s32 3, %v446
        %v448 = vrot.slane %v440, %v447
        %vm449 = vcmp.eq.s32.totalorder %v273, %v444
        %vm450 = vcmp.eq.s32.totalorder %v273, %v448
        %vm451 = vcmp.eq.s32.totalorder %v274, %v444
        %vm452 = vcmp.eq.s32.totalorder %v274, %v448
        %vm453 = vcmp.eq.s32.totalorder %v275, %v444
        %vm454 = vcmp.eq.s32.totalorder %v275, %v448
        %vm455 = vcmp.eq.s32.totalorder %v276, %v444
        %vm456 = vcmp.eq.s32.totalorder %v276, %v448
        %vm457 = vcmp.eq.s32.totalorder %v277, %v444
        %vm458 = vcmp.eq.s32.totalorder %v277, %v448
        %vm459 = vcmp.eq.s32.totalorder %v278, %v444
        %vm460 = vcmp.eq.s32.totalorder %v278, %v448
        %vm461 = vcmp.eq.s32.totalorder %v279, %v444
        %vm462 = vcmp.eq.s32.totalorder %v279, %v448
        %vm463 = vcmp.eq.s32.totalorder %v280, %v444
        %vm464 = vcmp.eq.s32.totalorder %v280, %v448
        %vm465 = vcmp.eq.s32.totalorder %v281, %v444
        %vm466 = vcmp.eq.s32.totalorder %v281, %v448
        %vm467 = vcmp.eq.s32.totalorder %v282, %v444
        %vm468 = vcmp.eq.s32.totalorder %v282, %v448
        %vm469 = vcmp.eq.s32.totalorder %v283, %v444
        %vm470 = vcmp.eq.s32.totalorder %v283, %v448
        %vm471 = vcmp.eq.s32.totalorder %v284, %v444
        %vm472 = vcmp.eq.s32.totalorder %v284, %v448
        %vm473 = vcmp.eq.s32.totalorder %v285, %v444
        %vm474 = vcmp.eq.s32.totalorder %v285, %v448
        %vm475 = vcmp.eq.s32.totalorder %v286, %v444
        %vm476 = vcmp.eq.s32.totalorder %v286, %v448
        %vm477 = vcmp.eq.s32.totalorder %v287, %v444
        %vm478 = vcmp.eq.s32.totalorder %v287, %v448
        %vm479 = vcmp.eq.s32.totalorder %v288, %v444
        %vm480 = vcmp.eq.s32.totalorder %v288, %v448
        %v482 = vlaneseq
        %v483 = vshrl.u32 %v482, 7
        %v484 = vsub.s32 3, %v483
        %v485 = vrot.slane %v268, %v484
        %v486 = vlaneseq
        %v487 = vshrl.u32 %v486, 7
        %v488 = vsub.s32 7, %v487
        %v489 = vrot.slane %v268, %v488
        %v492 = vlaneseq
        %v493 = vshrl.u32 %v492, 7
        %v494 = vsub.s32 3, %v493
        %v495 = vrot.slane %v485, %v494
        %v496 = vlaneseq
        %v497 = vshrl.u32 %v496, 7
        %v498 = vsub.s32 3, %v497
        %v499 = vrot.slane %v489, %v498
        %v500 = vsel %vm449, %v495, 0.0
        %v501 = vsel %vm450, %v499, 0.0
        %v502 = vsel %vm451, %v495, 0.0
        %v503 = vsel %vm452, %v499, 0.0
        %v504 = vsel %vm453, %v495, 0.0
        %v505 = vsel %vm454, %v499, 0.0
        %v506 = vsel %vm455, %v495, 0.0
        %v507 = vsel %vm456, %v499, 0.0
        %v508 = vsel %vm457, %v495, 0.0
        %v509 = vsel %vm458, %v499, 0.0
        %v510 = vsel %vm459, %v495, 0.0
        %v511 = vsel %vm460, %v499, 0.0
        %v512 = vsel %vm461, %v495, 0.0
        %v513 = vsel %vm462, %v499, 0.0
        %v514 = vsel %vm463, %v495, 0.0
        %v515 = vsel %vm464, %v499, 0.0
        %v516 = vsel %vm465, %v495, 0.0
        %v517 = vsel %vm466, %v499, 0.0
        %v518 = vsel %vm467, %v495, 0.0
        %v519 = vsel %vm468, %v499, 0.0
        %v520 = vsel %vm469, %v495, 0.0
        %v521 = vsel %vm470, %v499, 0.0
        %v522 = vsel %vm471, %v495, 0.0
        %v523 = vsel %vm472, %v499, 0.0
        %v524 = vsel %vm473, %v495, 0.0
        %v525 = vsel %vm474, %v499, 0.0
        %v526 = vsel %vm475, %v495, 0.0
        %v527 = vsel %vm476, %v499, 0.0
        %v528 = vsel %vm477, %v495, 0.0
        %v529 = vsel %vm478, %v499, 0.0
        %v530 = vsel %vm479, %v495, 0.0
        %v531 = vsel %vm480, %v499, 0.0
        %v532 = vlaneseq
        %v533 = vshrl.u32 %v532, 7
        %v534 = vsub.s32 2, %v533
        %v535 = vrot.slane %v268, %v534
        %v536 = vlaneseq
        %v537 = vshrl.u32 %v536, 7
        %v538 = vsub.s32 6, %v537
        %v539 = vrot.slane %v268, %v538
        %v542 = vlaneseq
        %v543 = vshrl.u32 %v542, 7
        %v544 = vsub.s32 2, %v543
        %v545 = vrot.slane %v535, %v544
        %v546 = vlaneseq
        %v547 = vshrl.u32 %v546, 7
        %v548 = vsub.s32 2, %v547
        %v549 = vrot.slane %v539, %v548
        %v550 = vsel %vm401, %v545, %v500
        %v551 = vsel %vm402, %v549, %v501
        %v552 = vsel %vm403, %v545, %v502
        %v553 = vsel %vm404, %v549, %v503
        %v554 = vsel %vm405, %v545, %v504
        %v555 = vsel %vm406, %v549, %v505
        %v556 = vsel %vm407, %v545, %v506
        %v557 = vsel %vm408, %v549, %v507
        %v558 = vsel %vm409, %v545, %v508
        %v559 = vsel %vm410, %v549, %v509
        %v560 = vsel %vm411, %v545, %v510
        %v561 = vsel %vm412, %v549, %v511
        %v562 = vsel %vm413, %v545, %v512
        %v563 = vsel %vm414, %v549, %v513
        %v564 = vsel %vm415, %v545, %v514
        %v565 = vsel %vm416, %v549, %v515
        %v566 = vsel %vm417, %v545, %v516
        %v567 = vsel %vm418, %v549, %v517
        %v568 = vsel %vm419, %v545, %v518
        %v569 = vsel %vm420, %v549, %v519
        %v570 = vsel %vm421, %v545, %v520
        %v571 = vsel %vm422, %v549, %v521
        %v572 = vsel %vm423, %v545, %v522
        %v573 = vsel %vm424, %v549, %v523
        %v574 = vsel %vm425, %v545, %v524
        %v575 = vsel %vm426, %v549, %v525
        %v576 = vsel %vm427, %v545, %v526
        %v577 = vsel %vm428, %v549, %v527
        %v578 = vsel %vm429, %v545, %v528
        %v579 = vsel %vm430, %v549, %v529
        %v580 = vsel %vm431, %v545, %v530
        %v581 = vsel %vm432, %v549, %v531
        %v582 = vlaneseq
        %v583 = vshrl.u32 %v582, 7
        %v584 = vsub.s32 1, %v583
        %v585 = vrot.slane %v268, %v584
        %v586 = vlaneseq
        %v587 = vshrl.u32 %v586, 7
        %v588 = vsub.s32 5, %v587
        %v589 = vrot.slane %v268, %v588
        %v592 = vlaneseq
        %v593 = vshrl.u32 %v592, 7
        %v594 = vsub.s32 1, %v593
        %v595 = vrot.slane %v585, %v594
        %v596 = vlaneseq
        %v597 = vshrl.u32 %v596, 7
        %v598 = vsub.s32 1, %v597
        %v599 = vrot.slane %v589, %v598
        %v600 = vsel %vm353, %v595, %v550
        %v601 = vsel %vm354, %v599, %v551
        %v602 = vsel %vm355, %v595, %v552
        %v603 = vsel %vm356, %v599, %v553
        %v604 = vsel %vm357, %v595, %v554
        %v605 = vsel %vm358, %v599, %v555
        %v606 = vsel %vm359, %v595, %v556
        %v607 = vsel %vm360, %v599, %v557
        %v608 = vsel %vm361, %v595, %v558
        %v609 = vsel %vm362, %v599, %v559
        %v610 = vsel %vm363, %v595, %v560
        %v611 = vsel %vm364, %v599, %v561
        %v612 = vsel %vm365, %v595, %v562
        %v613 = vsel %vm366, %v599, %v563
        %v614 = vsel %vm367, %v595, %v564
        %v615 = vsel %vm368, %v599, %v565
        %v616 = vsel %vm369, %v595, %v566
        %v617 = vsel %vm370, %v599, %v567
        %v618 = vsel %vm371, %v595, %v568
        %v619 = vsel %vm372, %v599, %v569
        %v620 = vsel %vm373, %v595, %v570
        %v621 = vsel %vm374, %v599, %v571
        %v622 = vsel %vm375, %v595, %v572
        %v623 = vsel %vm376, %v599, %v573
        %v624 = vsel %vm377, %v595, %v574
        %v625 = vsel %vm378, %v599, %v575
        %v626 = vsel %vm379, %v595, %v576
        %v627 = vsel %vm380, %v599, %v577
        %v628 = vsel %vm381, %v595, %v578
        %v629 = vsel %vm382, %v599, %v579
        %v630 = vsel %vm383, %v595, %v580
        %v631 = vsel %vm384, %v599, %v581
        %v632 = vlaneseq
        %v633 = vshrl.u32 %v632, 7
        %v634 = vsub.s32 0, %v633
        %v635 = vrot.slane %v268, %v634
        %v636 = vlaneseq
        %v637 = vshrl.u32 %v636, 7
        %v638 = vsub.s32 4, %v637
        %v639 = vrot.slane %v268, %v638
        %v642 = vlaneseq
        %v643 = vshrl.u32 %v642, 7
        %v644 = vsub.s32 0, %v643
        %v645 = vrot.slane %v635, %v644
        %v646 = vlaneseq
        %v647 = vshrl.u32 %v646, 7
        %v648 = vsub.s32 0, %v647
        %v649 = vrot.slane %v639, %v648
        %v650 = vsel %vm305, %v645, %v600
        %v651 = vsel %vm306, %v649, %v601
        %v652 = vsel %vm307, %v645, %v602
        %v653 = vsel %vm308, %v649, %v603
        %v654 = vsel %vm309, %v645, %v604
        %v655 = vsel %vm310, %v649, %v605
        %v656 = vsel %vm311, %v645, %v606
        %v657 = vsel %vm312, %v649, %v607
        %v658 = vsel %vm313, %v645, %v608
        %v659 = vsel %vm314, %v649, %v609
        %v660 = vsel %vm315, %v645, %v610
        %v661 = vsel %vm316, %v649, %v611
        %v662 = vsel %vm317, %v645, %v612
        %v663 = vsel %vm318, %v649, %v613
        %v664 = vsel %vm319, %v645, %v614
        %v665 = vsel %vm320, %v649, %v615
        %v666 = vsel %vm321, %v645, %v616
        %v667 = vsel %vm322, %v649, %v617
        %v668 = vsel %vm323, %v645, %v618
        %v669 = vsel %vm324, %v649, %v619
        %v670 = vsel %vm325, %v645, %v620
        %v671 = vsel %vm326, %v649, %v621
        %v672 = vsel %vm327, %v645, %v622
        %v673 = vsel %vm328, %v649, %v623
        %v674 = vsel %vm329, %v645, %v624
        %v675 = vsel %vm330, %v649, %v625
        %v676 = vsel %vm331, %v645, %v626
        %v677 = vsel %vm332, %v649, %v627
        %v678 = vsel %vm333, %v645, %v628
        %v679 = vsel %vm334, %v649, %v629
        %v680 = vsel %vm335, %v645, %v630
        %v681 = vsel %vm336, %v649, %v631
        %v682 = vld [vmem:[%s231] sm:$0xff]
        %v683 = vsub.s32 %v264, 128
        %v684 = vlaneseq
        %v685 = vshrl.u32 %v684, 7
        %v686 = vsub.s32 0, %v685
        %v687 = vrot.slane %v683, %v686
        %v688 = vlaneseq
        %v689 = vshrl.u32 %v688, 7
        %v690 = vsub.s32 4, %v689
        %v691 = vrot.slane %v683, %v690
        %v692 = vlaneseq
        %v693 = vshrl.u32 %v692, 7
        %v694 = vsub.s32 0, %v693
        %v695 = vrot.slane %v687, %v694
        %v696 = vlaneseq
        %v697 = vshrl.u32 %v696, 7
        %v698 = vsub.s32 0, %v697
        %v699 = vrot.slane %v691, %v698
        %vm700 = vcmp.eq.s32.totalorder %v273, %v695
        %vm701 = vcmp.eq.s32.totalorder %v273, %v699
        %vm702 = vcmp.eq.s32.totalorder %v274, %v695
        %vm703 = vcmp.eq.s32.totalorder %v274, %v699
        %vm704 = vcmp.eq.s32.totalorder %v275, %v695
        %vm705 = vcmp.eq.s32.totalorder %v275, %v699
        %vm706 = vcmp.eq.s32.totalorder %v276, %v695
        %vm707 = vcmp.eq.s32.totalorder %v276, %v699
        %vm708 = vcmp.eq.s32.totalorder %v277, %v695
        %vm709 = vcmp.eq.s32.totalorder %v277, %v699
        %vm710 = vcmp.eq.s32.totalorder %v278, %v695
        %vm711 = vcmp.eq.s32.totalorder %v278, %v699
        %vm712 = vcmp.eq.s32.totalorder %v279, %v695
        %vm713 = vcmp.eq.s32.totalorder %v279, %v699
        %vm714 = vcmp.eq.s32.totalorder %v280, %v695
        %vm715 = vcmp.eq.s32.totalorder %v280, %v699
        %vm716 = vcmp.eq.s32.totalorder %v281, %v695
        %vm717 = vcmp.eq.s32.totalorder %v281, %v699
        %vm718 = vcmp.eq.s32.totalorder %v282, %v695
        %vm719 = vcmp.eq.s32.totalorder %v282, %v699
        %vm720 = vcmp.eq.s32.totalorder %v283, %v695
        %vm721 = vcmp.eq.s32.totalorder %v283, %v699
        %vm722 = vcmp.eq.s32.totalorder %v284, %v695
        %vm723 = vcmp.eq.s32.totalorder %v284, %v699
        %vm724 = vcmp.eq.s32.totalorder %v285, %v695
        %vm725 = vcmp.eq.s32.totalorder %v285, %v699
        %vm726 = vcmp.eq.s32.totalorder %v286, %v695
        %vm727 = vcmp.eq.s32.totalorder %v286, %v699
        %vm728 = vcmp.eq.s32.totalorder %v287, %v695
        %vm729 = vcmp.eq.s32.totalorder %v287, %v699
        %vm730 = vcmp.eq.s32.totalorder %v288, %v695
        %vm731 = vcmp.eq.s32.totalorder %v288, %v699
        %v732 = vlaneseq
        %v733 = vshrl.u32 %v732, 7
        %v734 = vsub.s32 1, %v733
        %v735 = vrot.slane %v683, %v734
        %v736 = vlaneseq
        %v737 = vshrl.u32 %v736, 7
        %v738 = vsub.s32 5, %v737
        %v739 = vrot.slane %v683, %v738
        %v740 = vlaneseq
        %v741 = vshrl.u32 %v740, 7
        %v742 = vsub.s32 1, %v741
        %v743 = vrot.slane %v735, %v742
        %v744 = vlaneseq
        %v745 = vshrl.u32 %v744, 7
        %v746 = vsub.s32 1, %v745
        %v747 = vrot.slane %v739, %v746
        %vm748 = vcmp.eq.s32.totalorder %v273, %v743
        %vm749 = vcmp.eq.s32.totalorder %v273, %v747
        %vm750 = vcmp.eq.s32.totalorder %v274, %v743
        %vm751 = vcmp.eq.s32.totalorder %v274, %v747
        %vm752 = vcmp.eq.s32.totalorder %v275, %v743
        %vm753 = vcmp.eq.s32.totalorder %v275, %v747
        %vm754 = vcmp.eq.s32.totalorder %v276, %v743
        %vm755 = vcmp.eq.s32.totalorder %v276, %v747
        %vm756 = vcmp.eq.s32.totalorder %v277, %v743
        %vm757 = vcmp.eq.s32.totalorder %v277, %v747
        %vm758 = vcmp.eq.s32.totalorder %v278, %v743
        %vm759 = vcmp.eq.s32.totalorder %v278, %v747
        %vm760 = vcmp.eq.s32.totalorder %v279, %v743
        %vm761 = vcmp.eq.s32.totalorder %v279, %v747
        %vm762 = vcmp.eq.s32.totalorder %v280, %v743
        %vm763 = vcmp.eq.s32.totalorder %v280, %v747
        %vm764 = vcmp.eq.s32.totalorder %v281, %v743
        %vm765 = vcmp.eq.s32.totalorder %v281, %v747
        %vm766 = vcmp.eq.s32.totalorder %v282, %v743
        %vm767 = vcmp.eq.s32.totalorder %v282, %v747
        %vm768 = vcmp.eq.s32.totalorder %v283, %v743
        %vm769 = vcmp.eq.s32.totalorder %v283, %v747
        %vm770 = vcmp.eq.s32.totalorder %v284, %v743
        %vm771 = vcmp.eq.s32.totalorder %v284, %v747
        %vm772 = vcmp.eq.s32.totalorder %v285, %v743
        %vm773 = vcmp.eq.s32.totalorder %v285, %v747
        %vm774 = vcmp.eq.s32.totalorder %v286, %v743
        %vm775 = vcmp.eq.s32.totalorder %v286, %v747
        %vm776 = vcmp.eq.s32.totalorder %v287, %v743
        %vm777 = vcmp.eq.s32.totalorder %v287, %v747
        %vm778 = vcmp.eq.s32.totalorder %v288, %v743
        %vm779 = vcmp.eq.s32.totalorder %v288, %v747
        %v780 = vlaneseq
        %v781 = vshrl.u32 %v780, 7
        %v782 = vsub.s32 2, %v781
        %v783 = vrot.slane %v683, %v782
        %v784 = vlaneseq
        %v785 = vshrl.u32 %v784, 7
        %v786 = vsub.s32 6, %v785
        %v787 = vrot.slane %v683, %v786
        %v788 = vlaneseq
        %v789 = vshrl.u32 %v788, 7
        %v790 = vsub.s32 2, %v789
        %v791 = vrot.slane %v783, %v790
        %v792 = vlaneseq
        %v793 = vshrl.u32 %v792, 7
        %v794 = vsub.s32 2, %v793
        %v795 = vrot.slane %v787, %v794
        %vm796 = vcmp.eq.s32.totalorder %v273, %v791
        %vm797 = vcmp.eq.s32.totalorder %v273, %v795
        %vm798 = vcmp.eq.s32.totalorder %v274, %v791
        %vm799 = vcmp.eq.s32.totalorder %v274, %v795
        %vm800 = vcmp.eq.s32.totalorder %v275, %v791
        %vm801 = vcmp.eq.s32.totalorder %v275, %v795
        %vm802 = vcmp.eq.s32.totalorder %v276, %v791
        %vm803 = vcmp.eq.s32.totalorder %v276, %v795
        %vm804 = vcmp.eq.s32.totalorder %v277, %v791
        %vm805 = vcmp.eq.s32.totalorder %v277, %v795
        %vm806 = vcmp.eq.s32.totalorder %v278, %v791
        %vm807 = vcmp.eq.s32.totalorder %v278, %v795
        %vm808 = vcmp.eq.s32.totalorder %v279, %v791
        %vm809 = vcmp.eq.s32.totalorder %v279, %v795
        %vm810 = vcmp.eq.s32.totalorder %v280, %v791
        %vm811 = vcmp.eq.s32.totalorder %v280, %v795
        %vm812 = vcmp.eq.s32.totalorder %v281, %v791
        %vm813 = vcmp.eq.s32.totalorder %v281, %v795
        %vm814 = vcmp.eq.s32.totalorder %v282, %v791
        %vm815 = vcmp.eq.s32.totalorder %v282, %v795
        %vm816 = vcmp.eq.s32.totalorder %v283, %v791
        %vm817 = vcmp.eq.s32.totalorder %v283, %v795
        %vm818 = vcmp.eq.s32.totalorder %v284, %v791
        %vm819 = vcmp.eq.s32.totalorder %v284, %v795
        %vm820 = vcmp.eq.s32.totalorder %v285, %v791
        %vm821 = vcmp.eq.s32.totalorder %v285, %v795
        %vm822 = vcmp.eq.s32.totalorder %v286, %v791
        %vm823 = vcmp.eq.s32.totalorder %v286, %v795
        %vm824 = vcmp.eq.s32.totalorder %v287, %v791
        %vm825 = vcmp.eq.s32.totalorder %v287, %v795
        %vm826 = vcmp.eq.s32.totalorder %v288, %v791
        %vm827 = vcmp.eq.s32.totalorder %v288, %v795
        %v828 = vlaneseq
        %v829 = vshrl.u32 %v828, 7
        %v830 = vsub.s32 3, %v829
        %v831 = vrot.slane %v683, %v830
        %v832 = vlaneseq
        %v833 = vshrl.u32 %v832, 7
        %v834 = vsub.s32 7, %v833
        %v835 = vrot.slane %v683, %v834
        %v836 = vlaneseq
        %v837 = vshrl.u32 %v836, 7
        %v838 = vsub.s32 3, %v837
        %v839 = vrot.slane %v831, %v838
        %v840 = vlaneseq
        %v841 = vshrl.u32 %v840, 7
        %v842 = vsub.s32 3, %v841
        %v843 = vrot.slane %v835, %v842
        %vm844 = vcmp.eq.s32.totalorder %v273, %v839
        %vm845 = vcmp.eq.s32.totalorder %v273, %v843
        %vm846 = vcmp.eq.s32.totalorder %v274, %v839
        %vm847 = vcmp.eq.s32.totalorder %v274, %v843
        %vm848 = vcmp.eq.s32.totalorder %v275, %v839
        %vm849 = vcmp.eq.s32.totalorder %v275, %v843
        %vm850 = vcmp.eq.s32.totalorder %v276, %v839
        %vm851 = vcmp.eq.s32.totalorder %v276, %v843
        %vm852 = vcmp.eq.s32.totalorder %v277, %v839
        %vm853 = vcmp.eq.s32.totalorder %v277, %v843
        %vm854 = vcmp.eq.s32.totalorder %v278, %v839
        %vm855 = vcmp.eq.s32.totalorder %v278, %v843
        %vm856 = vcmp.eq.s32.totalorder %v279, %v839
        %vm857 = vcmp.eq.s32.totalorder %v279, %v843
        %vm858 = vcmp.eq.s32.totalorder %v280, %v839
        %vm859 = vcmp.eq.s32.totalorder %v280, %v843
        %vm860 = vcmp.eq.s32.totalorder %v281, %v839
        %vm861 = vcmp.eq.s32.totalorder %v281, %v843
        %vm862 = vcmp.eq.s32.totalorder %v282, %v839
        %vm863 = vcmp.eq.s32.totalorder %v282, %v843
        %vm864 = vcmp.eq.s32.totalorder %v283, %v839
        %vm865 = vcmp.eq.s32.totalorder %v283, %v843
        %vm866 = vcmp.eq.s32.totalorder %v284, %v839
        %vm867 = vcmp.eq.s32.totalorder %v284, %v843
        %vm868 = vcmp.eq.s32.totalorder %v285, %v839
        %vm869 = vcmp.eq.s32.totalorder %v285, %v843
        %vm870 = vcmp.eq.s32.totalorder %v286, %v839
        %vm871 = vcmp.eq.s32.totalorder %v286, %v843
        %vm872 = vcmp.eq.s32.totalorder %v287, %v839
        %vm873 = vcmp.eq.s32.totalorder %v287, %v843
        %vm874 = vcmp.eq.s32.totalorder %v288, %v839
        %vm875 = vcmp.eq.s32.totalorder %v288, %v843
        %v876 = vsel %vm844, %v495, 0.0
        %v877 = vsel %vm845, %v499, 0.0
        %v878 = vsel %vm846, %v495, 0.0
        %v879 = vsel %vm847, %v499, 0.0
        %v880 = vsel %vm848, %v495, 0.0
        %v881 = vsel %vm849, %v499, 0.0
        %v882 = vsel %vm850, %v495, 0.0
        %v883 = vsel %vm851, %v499, 0.0
        %v884 = vsel %vm852, %v495, 0.0
        %v885 = vsel %vm853, %v499, 0.0
        %v886 = vsel %vm854, %v495, 0.0
        %v887 = vsel %vm855, %v499, 0.0
        %v888 = vsel %vm856, %v495, 0.0
        %v889 = vsel %vm857, %v499, 0.0
        %v890 = vsel %vm858, %v495, 0.0
        %v891 = vsel %vm859, %v499, 0.0
        %v892 = vsel %vm860, %v495, 0.0
        %v893 = vsel %vm861, %v499, 0.0
        %v894 = vsel %vm862, %v495, 0.0
        %v895 = vsel %vm863, %v499, 0.0
        %v896 = vsel %vm864, %v495, 0.0
        %v897 = vsel %vm865, %v499, 0.0
        %v898 = vsel %vm866, %v495, 0.0
        %v899 = vsel %vm867, %v499, 0.0
        %v900 = vsel %vm868, %v495, 0.0
        %v901 = vsel %vm869, %v499, 0.0
        %v902 = vsel %vm870, %v495, 0.0
        %v903 = vsel %vm871, %v499, 0.0
        %v904 = vsel %vm872, %v495, 0.0
        %v905 = vsel %vm873, %v499, 0.0
        %v906 = vsel %vm874, %v495, 0.0
        %v907 = vsel %vm875, %v499, 0.0
        %v908 = vsel %vm796, %v545, %v876
        %v909 = vsel %vm797, %v549, %v877
        %v910 = vsel %vm798, %v545, %v878
        %v911 = vsel %vm799, %v549, %v879
        %v912 = vsel %vm800, %v545, %v880
        %v913 = vsel %vm801, %v549, %v881
        %v914 = vsel %vm802, %v545, %v882
        %v915 = vsel %vm803, %v549, %v883
        %v916 = vsel %vm804, %v545, %v884
        %v917 = vsel %vm805, %v549, %v885
        %v918 = vsel %vm806, %v545, %v886
        %v919 = vsel %vm807, %v549, %v887
        %v920 = vsel %vm808, %v545, %v888
        %v921 = vsel %vm809, %v549, %v889
        %v922 = vsel %vm810, %v545, %v890
        %v923 = vsel %vm811, %v549, %v891
        %v924 = vsel %vm812, %v545, %v892
        %v925 = vsel %vm813, %v549, %v893
        %v926 = vsel %vm814, %v545, %v894
        %v927 = vsel %vm815, %v549, %v895
        %v928 = vsel %vm816, %v545, %v896
        %v929 = vsel %vm817, %v549, %v897
        %v930 = vsel %vm818, %v545, %v898
        %v931 = vsel %vm819, %v549, %v899
        %v932 = vsel %vm820, %v545, %v900
        %v933 = vsel %vm821, %v549, %v901
        %v934 = vsel %vm822, %v545, %v902
        %v935 = vsel %vm823, %v549, %v903
        %v936 = vsel %vm824, %v545, %v904
        %v937 = vsel %vm825, %v549, %v905
        %v938 = vsel %vm826, %v545, %v906
        %v939 = vsel %vm827, %v549, %v907
        %v940 = vsel %vm748, %v595, %v908
        %v941 = vsel %vm749, %v599, %v909
        %v942 = vsel %vm750, %v595, %v910
        %v943 = vsel %vm751, %v599, %v911
        %v944 = vsel %vm752, %v595, %v912
        %v945 = vsel %vm753, %v599, %v913
        %v946 = vsel %vm754, %v595, %v914
        %v947 = vsel %vm755, %v599, %v915
        %v948 = vsel %vm756, %v595, %v916
        %v949 = vsel %vm757, %v599, %v917
        %v950 = vsel %vm758, %v595, %v918
        %v951 = vsel %vm759, %v599, %v919
        %v952 = vsel %vm760, %v595, %v920
        %v953 = vsel %vm761, %v599, %v921
        %v954 = vsel %vm762, %v595, %v922
        %v955 = vsel %vm763, %v599, %v923
        %v956 = vsel %vm764, %v595, %v924
        %v957 = vsel %vm765, %v599, %v925
        %v958 = vsel %vm766, %v595, %v926
        %v959 = vsel %vm767, %v599, %v927
        %v960 = vsel %vm768, %v595, %v928
        %v961 = vsel %vm769, %v599, %v929
        %v962 = vsel %vm770, %v595, %v930
        %v963 = vsel %vm771, %v599, %v931
        %v964 = vsel %vm772, %v595, %v932
        %v965 = vsel %vm773, %v599, %v933
        %v966 = vsel %vm774, %v595, %v934
        %v967 = vsel %vm775, %v599, %v935
        %v968 = vsel %vm776, %v595, %v936
        %v969 = vsel %vm777, %v599, %v937
        %v970 = vsel %vm778, %v595, %v938
        %v971 = vsel %vm779, %v599, %v939
        %v972 = vsel %vm700, %v645, %v940
        %v973 = vsel %vm701, %v649, %v941
        %v974 = vsel %vm702, %v645, %v942
        %v975 = vsel %vm703, %v649, %v943
        %v976 = vsel %vm704, %v645, %v944
        %v977 = vsel %vm705, %v649, %v945
        %v978 = vsel %vm706, %v645, %v946
        %v979 = vsel %vm707, %v649, %v947
        %v980 = vsel %vm708, %v645, %v948
        %v981 = vsel %vm709, %v649, %v949
        %v982 = vsel %vm710, %v645, %v950
        %v983 = vsel %vm711, %v649, %v951
        %v984 = vsel %vm712, %v645, %v952
        %v985 = vsel %vm713, %v649, %v953
        %v986 = vsel %vm714, %v645, %v954
        %v987 = vsel %vm715, %v649, %v955
        %v988 = vsel %vm716, %v645, %v956
        %v989 = vsel %vm717, %v649, %v957
        %v990 = vsel %vm718, %v645, %v958
        %v991 = vsel %vm719, %v649, %v959
        %v992 = vsel %vm720, %v645, %v960
        %v993 = vsel %vm721, %v649, %v961
        %v994 = vsel %vm722, %v645, %v962
        %v995 = vsel %vm723, %v649, %v963
        %v996 = vsel %vm724, %v645, %v964
        %v997 = vsel %vm725, %v649, %v965
        %v998 = vsel %vm726, %v645, %v966
        %v999 = vsel %vm727, %v649, %v967
        %v1000 = vsel %vm728, %v645, %v968
        %v1001 = vsel %vm729, %v649, %v969
        %v1002 = vsel %vm730, %v645, %v970
        %v1003 = vsel %vm731, %v649, %v971
        %v1004 = vld [vmem:[%s231 + $0x8] sm:$0xff]
        %1005 = vmatprep.subr.mxu0 %v1003
        %1006 = vmatpush1.msra.mxu0 %v1002
        %1007 = vmatprep.subr.mxu0 %v1001
        %1008 = vmatpush1.msra.mxu0 %v1000
        %1009 = vmatprep.subr.mxu0 %v999
        %1010 = vmatpush1.msra.mxu0 %v998
        %1011 = vmatprep.subr.mxu0 %v997
        %1012 = vmatpush1.msra.mxu0 %v996
        %1013 = vmatprep.subr.mxu0 %v995
        %1014 = vmatpush1.msra.mxu0 %v994
        %1015 = vmatprep.subr.mxu0 %v993
        %1016 = vmatpush1.msra.mxu0 %v992
        %1017 = vmatprep.subr.mxu0 %v991
        %1018 = vmatpush1.msra.mxu0 %v990
        %1019 = vmatprep.subr.mxu0 %v989
        %1020 = vmatpush1.msra.mxu0 %v988
        %1021 = vmatprep.subr.mxu0 %v987
        %1022 = vmatpush1.msra.mxu0 %v986
        %1023 = vmatprep.subr.mxu0 %v985
        %1024 = vmatpush1.msra.mxu0 %v984
        %1025 = vmatprep.subr.mxu0 %v983
        %1026 = vmatpush1.msra.mxu0 %v982
        %1027 = vmatprep.subr.mxu0 %v981
        %1028 = vmatpush1.msra.mxu0 %v980
        %1029 = vmatprep.subr.mxu0 %v979
        %1030 = vmatpush1.msra.mxu0 %v978
        %1031 = vmatprep.subr.mxu0 %v977
        %1032 = vmatpush1.msra.mxu0 %v976
        %1033 = vmatprep.subr.mxu0 %v975
        %1034 = vmatpush1.msra.mxu0 %v974
        %1035 = vmatprep.subr.mxu0 %v973
        %1036 = vmatpush1.msra.mxu0 %v972
        %1037 = vmatprep.subr.mxu0 0.0
        %1038 = vmatpush2.msra.mxu0 0.0
        %1039 = vmatprep.subr.mxu0 0.0
        %1040 = vmatpush2.msra.mxu0 0.0
        %1041 = vmatprep.subr.mxu0 0.0
        %1042 = vmatpush2.msra.mxu0 0.0
        %1043 = vmatprep.subr.mxu0 0.0
        %1044 = vmatpush2.msra.mxu0 0.0
        %1045 = vmatprep.subr.mxu0 0.0
        %1046 = vmatpush2.msra.mxu0 0.0
        %1047 = vmatprep.subr.mxu0 0.0
        %1048 = vmatpush2.msra.mxu0 0.0
        %1049 = vmatprep.subr.mxu0 0.0
        %1050 = vmatpush2.msra.mxu0 0.0
        %1051 = vmatprep.subr.mxu0 0.0
        %1052 = vmatpush2.msra.mxu0 0.0
        %1053 = vmatprep.subr.mxu0 0.0
        %1054 = vmatpush2.msra.mxu0 0.0
        %1055 = vmatprep.subr.mxu0 0.0
        %1056 = vmatpush2.msra.mxu0 0.0
        %1057 = vmatprep.subr.mxu0 0.0
        %1058 = vmatpush2.msra.mxu0 0.0
        %1059 = vmatprep.subr.mxu0 0.0
        %1060 = vmatpush2.msra.mxu0 0.0
        %1061 = vmatprep.subr.mxu0 0.0
        %1062 = vmatpush2.msra.mxu0 0.0
        %1063 = vmatprep.subr.mxu0 0.0
        %1064 = vmatpush2.msra.mxu0 0.0
        %1065 = vmatprep.subr.mxu0 0.0
        %1066 = vmatpush2.msra.mxu0 0.0
        %1067 = vmatprep.subr.mxu0 0.0
        %1068 = vmatpush2.msra.mxu0 0.0
        %1069 = vmatprep.mubr.f32.mxu0 0.0
        %1070 = vmatmul.mubr.f32.gmra.mxu0 %v1004
        %v1071 = vpop.f32.mrf.mxu0
        %v1072 = vadd.f32 0.0, %v1071
        %v1073 = vpop.f32.mrf.mxu0
        %v1074 = vadd.f32 0.0, %v1073
        %1075 = vdwg.mxu0
        %1076 = vmatprep.subr.mxu0 %v681
        %1077 = vmatpush1.msra.mxu0 %v680
        %1078 = vmatprep.subr.mxu0 %v679
        %1079 = vmatpush1.msra.mxu0 %v678
        %1080 = vmatprep.subr.mxu0 %v677
        %1081 = vmatpush1.msra.mxu0 %v676
        %1082 = vmatprep.subr.mxu0 %v675
        %1083 = vmatpush1.msra.mxu0 %v674
        %1084 = vmatprep.subr.mxu0 %v673
        %1085 = vmatpush1.msra.mxu0 %v672
        %1086 = vmatprep.subr.mxu0 %v671
        %1087 = vmatpush1.msra.mxu0 %v670
        %1088 = vmatprep.subr.mxu0 %v669
        %1089 = vmatpush1.msra.mxu0 %v668
        %1090 = vmatprep.subr.mxu0 %v667
        %1091 = vmatpush1.msra.mxu0 %v666
        %1092 = vmatprep.subr.mxu0 %v665
        %1093 = vmatpush1.msra.mxu0 %v664
        %1094 = vmatprep.subr.mxu0 %v663
        %1095 = vmatpush1.msra.mxu0 %v662
        %1096 = vmatprep.subr.mxu0 %v661
        %1097 = vmatpush1.msra.mxu0 %v660
        %1098 = vmatprep.subr.mxu0 %v659
        %1099 = vmatpush1.msra.mxu0 %v658
        %1100 = vmatprep.subr.mxu0 %v657
        %1101 = vmatpush1.msra.mxu0 %v656
        %1102 = vmatprep.subr.mxu0 %v655
        %1103 = vmatpush1.msra.mxu0 %v654
        %1104 = vmatprep.subr.mxu0 %v653
        %1105 = vmatpush1.msra.mxu0 %v652
        %1106 = vmatprep.subr.mxu0 %v651
        %1107 = vmatpush1.msra.mxu0 %v650
        %1108 = vmatprep.subr.mxu0 0.0
        %1109 = vmatpush2.msra.mxu0 0.0
        %1110 = vmatprep.subr.mxu0 0.0
        %1111 = vmatpush2.msra.mxu0 0.0
        %1112 = vmatprep.subr.mxu0 0.0
        %1113 = vmatpush2.msra.mxu0 0.0
        %1114 = vmatprep.subr.mxu0 0.0
        %1115 = vmatpush2.msra.mxu0 0.0
        %1116 = vmatprep.subr.mxu0 0.0
        %1117 = vmatpush2.msra.mxu0 0.0
        %1118 = vmatprep.subr.mxu0 0.0
        %1119 = vmatpush2.msra.mxu0 0.0
        %1120 = vmatprep.subr.mxu0 0.0
        %1121 = vmatpush2.msra.mxu0 0.0
        %1122 = vmatprep.subr.mxu0 0.0
        %1123 = vmatpush2.msra.mxu0 0.0
        %1124 = vmatprep.subr.mxu0 0.0
        %1125 = vmatpush2.msra.mxu0 0.0
        %1126 = vmatprep.subr.mxu0 0.0
        %1127 = vmatpush2.msra.mxu0 0.0
        %1128 = vmatprep.subr.mxu0 0.0
        %1129 = vmatpush2.msra.mxu0 0.0
        %1130 = vmatprep.subr.mxu0 0.0
        %1131 = vmatpush2.msra.mxu0 0.0
        %1132 = vmatprep.subr.mxu0 0.0
        %1133 = vmatpush2.msra.mxu0 0.0
        %1134 = vmatprep.subr.mxu0 0.0
        %1135 = vmatpush2.msra.mxu0 0.0
        %1136 = vmatprep.subr.mxu0 0.0
        %1137 = vmatpush2.msra.mxu0 0.0
        %1138 = vmatprep.subr.mxu0 0.0
        %1139 = vmatpush2.msra.mxu0 0.0
        %1140 = vmatprep.mubr.f32.mxu0 0.0
        %1141 = vmatmul.mubr.f32.gmra.mxu0 %v682
        %v1142 = vpop.f32.mrf.mxu0
        %v1143 = vadd.f32 %v1072, %v1142
        %v1144 = vpop.f32.mrf.mxu0
        %v1145 = vadd.f32 %v1074, %v1144
        %1146 = vdwg.mxu0
        %v1147 = vlaneseq
        %v1148 = vshrl.u32 %v1147, 7
        %v1149 = vsub.s32 0, %v1148
        %v1150 = vrot.slane %v265, %v1149
        %v1151 = vlaneseq
        %v1152 = vshrl.u32 %v1151, 7
        %v1153 = vsub.s32 4, %v1152
        %v1154 = vrot.slane %v265, %v1153
        %v1155 = vlaneseq
        %v1156 = vshrl.u32 %v1155, 7
        %v1157 = vsub.s32 0, %v1156
        %v1158 = vrot.slane %v1150, %v1157
        %v1159 = vlaneseq
        %v1160 = vshrl.u32 %v1159, 7
        %v1161 = vsub.s32 0, %v1160
        %v1162 = vrot.slane %v1154, %v1161
        %vm1163 = vcmp.eq.s32.totalorder %v273, %v1158
        %vm1164 = vcmp.eq.s32.totalorder %v273, %v1162
        %vm1165 = vcmp.eq.s32.totalorder %v274, %v1158
        %vm1166 = vcmp.eq.s32.totalorder %v274, %v1162
        %vm1167 = vcmp.eq.s32.totalorder %v275, %v1158
        %vm1168 = vcmp.eq.s32.totalorder %v275, %v1162
        %vm1169 = vcmp.eq.s32.totalorder %v276, %v1158
        %vm1170 = vcmp.eq.s32.totalorder %v276, %v1162
        %vm1171 = vcmp.eq.s32.totalorder %v277, %v1158
        %vm1172 = vcmp.eq.s32.totalorder %v277, %v1162
        %vm1173 = vcmp.eq.s32.totalorder %v278, %v1158
        %vm1174 = vcmp.eq.s32.totalorder %v278, %v1162
        %vm1175 = vcmp.eq.s32.totalorder %v279, %v1158
        %vm1176 = vcmp.eq.s32.totalorder %v279, %v1162
        %vm1177 = vcmp.eq.s32.totalorder %v280, %v1158
        %vm1178 = vcmp.eq.s32.totalorder %v280, %v1162
        %vm1179 = vcmp.eq.s32.totalorder %v281, %v1158
        %vm1180 = vcmp.eq.s32.totalorder %v281, %v1162
        %vm1181 = vcmp.eq.s32.totalorder %v282, %v1158
        %vm1182 = vcmp.eq.s32.totalorder %v282, %v1162
        %vm1183 = vcmp.eq.s32.totalorder %v283, %v1158
        %vm1184 = vcmp.eq.s32.totalorder %v283, %v1162
        %vm1185 = vcmp.eq.s32.totalorder %v284, %v1158
        %vm1186 = vcmp.eq.s32.totalorder %v284, %v1162
        %vm1187 = vcmp.eq.s32.totalorder %v285, %v1158
        %vm1188 = vcmp.eq.s32.totalorder %v285, %v1162
        %vm1189 = vcmp.eq.s32.totalorder %v286, %v1158
        %vm1190 = vcmp.eq.s32.totalorder %v286, %v1162
        %vm1191 = vcmp.eq.s32.totalorder %v287, %v1158
        %vm1192 = vcmp.eq.s32.totalorder %v287, %v1162
        %vm1193 = vcmp.eq.s32.totalorder %v288, %v1158
        %vm1194 = vcmp.eq.s32.totalorder %v288, %v1162
        %v1195 = vlaneseq
        %v1196 = vshrl.u32 %v1195, 7
        %v1197 = vsub.s32 1, %v1196
        %v1198 = vrot.slane %v265, %v1197
        %v1199 = vlaneseq
        %v1200 = vshrl.u32 %v1199, 7
        %v1201 = vsub.s32 5, %v1200
        %v1202 = vrot.slane %v265, %v1201
        %v1203 = vlaneseq
        %v1204 = vshrl.u32 %v1203, 7
        %v1205 = vsub.s32 1, %v1204
        %v1206 = vrot.slane %v1198, %v1205
        %v1207 = vlaneseq
        %v1208 = vshrl.u32 %v1207, 7
        %v1209 = vsub.s32 1, %v1208
        %v1210 = vrot.slane %v1202, %v1209
        %vm1211 = vcmp.eq.s32.totalorder %v273, %v1206
        %vm1212 = vcmp.eq.s32.totalorder %v273, %v1210
        %vm1213 = vcmp.eq.s32.totalorder %v274, %v1206
        %vm1214 = vcmp.eq.s32.totalorder %v274, %v1210
        %vm1215 = vcmp.eq.s32.totalorder %v275, %v1206
        %vm1216 = vcmp.eq.s32.totalorder %v275, %v1210
        %vm1217 = vcmp.eq.s32.totalorder %v276, %v1206
        %vm1218 = vcmp.eq.s32.totalorder %v276, %v1210
        %vm1219 = vcmp.eq.s32.totalorder %v277, %v1206
        %vm1220 = vcmp.eq.s32.totalorder %v277, %v1210
        %vm1221 = vcmp.eq.s32.totalorder %v278, %v1206
        %vm1222 = vcmp.eq.s32.totalorder %v278, %v1210
        %vm1223 = vcmp.eq.s32.totalorder %v279, %v1206
        %vm1224 = vcmp.eq.s32.totalorder %v279, %v1210
        %vm1225 = vcmp.eq.s32.totalorder %v280, %v1206
        %vm1226 = vcmp.eq.s32.totalorder %v280, %v1210
        %vm1227 = vcmp.eq.s32.totalorder %v281, %v1206
        %vm1228 = vcmp.eq.s32.totalorder %v281, %v1210
        %vm1229 = vcmp.eq.s32.totalorder %v282, %v1206
        %vm1230 = vcmp.eq.s32.totalorder %v282, %v1210
        %vm1231 = vcmp.eq.s32.totalorder %v283, %v1206
        %vm1232 = vcmp.eq.s32.totalorder %v283, %v1210
        %vm1233 = vcmp.eq.s32.totalorder %v284, %v1206
        %vm1234 = vcmp.eq.s32.totalorder %v284, %v1210
        %vm1235 = vcmp.eq.s32.totalorder %v285, %v1206
        %vm1236 = vcmp.eq.s32.totalorder %v285, %v1210
        %vm1237 = vcmp.eq.s32.totalorder %v286, %v1206
        %vm1238 = vcmp.eq.s32.totalorder %v286, %v1210
        %vm1239 = vcmp.eq.s32.totalorder %v287, %v1206
        %vm1240 = vcmp.eq.s32.totalorder %v287, %v1210
        %vm1241 = vcmp.eq.s32.totalorder %v288, %v1206
        %vm1242 = vcmp.eq.s32.totalorder %v288, %v1210
        %v1243 = vlaneseq
        %v1244 = vshrl.u32 %v1243, 7
        %v1245 = vsub.s32 2, %v1244
        %v1246 = vrot.slane %v265, %v1245
        %v1247 = vlaneseq
        %v1248 = vshrl.u32 %v1247, 7
        %v1249 = vsub.s32 6, %v1248
        %v1250 = vrot.slane %v265, %v1249
        %v1251 = vlaneseq
        %v1252 = vshrl.u32 %v1251, 7
        %v1253 = vsub.s32 2, %v1252
        %v1254 = vrot.slane %v1246, %v1253
        %v1255 = vlaneseq
        %v1256 = vshrl.u32 %v1255, 7
        %v1257 = vsub.s32 2, %v1256
        %v1258 = vrot.slane %v1250, %v1257
        %vm1259 = vcmp.eq.s32.totalorder %v273, %v1254
        %vm1260 = vcmp.eq.s32.totalorder %v273, %v1258
        %vm1261 = vcmp.eq.s32.totalorder %v274, %v1254
        %vm1262 = vcmp.eq.s32.totalorder %v274, %v1258
        %vm1263 = vcmp.eq.s32.totalorder %v275, %v1254
        %vm1264 = vcmp.eq.s32.totalorder %v275, %v1258
        %vm1265 = vcmp.eq.s32.totalorder %v276, %v1254
        %vm1266 = vcmp.eq.s32.totalorder %v276, %v1258
        %vm1267 = vcmp.eq.s32.totalorder %v277, %v1254
        %vm1268 = vcmp.eq.s32.totalorder %v277, %v1258
        %vm1269 = vcmp.eq.s32.totalorder %v278, %v1254
        %vm1270 = vcmp.eq.s32.totalorder %v278, %v1258
        %vm1271 = vcmp.eq.s32.totalorder %v279, %v1254
        %vm1272 = vcmp.eq.s32.totalorder %v279, %v1258
        %vm1273 = vcmp.eq.s32.totalorder %v280, %v1254
        %vm1274 = vcmp.eq.s32.totalorder %v280, %v1258
        %vm1275 = vcmp.eq.s32.totalorder %v281, %v1254
        %vm1276 = vcmp.eq.s32.totalorder %v281, %v1258
        %vm1277 = vcmp.eq.s32.totalorder %v282, %v1254
        %vm1278 = vcmp.eq.s32.totalorder %v282, %v1258
        %vm1279 = vcmp.eq.s32.totalorder %v283, %v1254
        %vm1280 = vcmp.eq.s32.totalorder %v283, %v1258
        %vm1281 = vcmp.eq.s32.totalorder %v284, %v1254
        %vm1282 = vcmp.eq.s32.totalorder %v284, %v1258
        %vm1283 = vcmp.eq.s32.totalorder %v285, %v1254
        %vm1284 = vcmp.eq.s32.totalorder %v285, %v1258
        %vm1285 = vcmp.eq.s32.totalorder %v286, %v1254
        %vm1286 = vcmp.eq.s32.totalorder %v286, %v1258
        %vm1287 = vcmp.eq.s32.totalorder %v287, %v1254
        %vm1288 = vcmp.eq.s32.totalorder %v287, %v1258
        %vm1289 = vcmp.eq.s32.totalorder %v288, %v1254
        %vm1290 = vcmp.eq.s32.totalorder %v288, %v1258
        %v1291 = vlaneseq
        %v1292 = vshrl.u32 %v1291, 7
        %v1293 = vsub.s32 3, %v1292
        %v1294 = vrot.slane %v265, %v1293
        %v1295 = vlaneseq
        %v1296 = vshrl.u32 %v1295, 7
        %v1297 = vsub.s32 7, %v1296
        %v1298 = vrot.slane %v265, %v1297
        %v1299 = vlaneseq
        %v1300 = vshrl.u32 %v1299, 7
        %v1301 = vsub.s32 3, %v1300
        %v1302 = vrot.slane %v1294, %v1301
        %v1303 = vlaneseq
        %v1304 = vshrl.u32 %v1303, 7
        %v1305 = vsub.s32 3, %v1304
        %v1306 = vrot.slane %v1298, %v1305
        %vm1307 = vcmp.eq.s32.totalorder %v273, %v1302
        %vm1308 = vcmp.eq.s32.totalorder %v273, %v1306
        %vm1309 = vcmp.eq.s32.totalorder %v274, %v1302
        %vm1310 = vcmp.eq.s32.totalorder %v274, %v1306
        %vm1311 = vcmp.eq.s32.totalorder %v275, %v1302
        %vm1312 = vcmp.eq.s32.totalorder %v275, %v1306
        %vm1313 = vcmp.eq.s32.totalorder %v276, %v1302
        %vm1314 = vcmp.eq.s32.totalorder %v276, %v1306
        %vm1315 = vcmp.eq.s32.totalorder %v277, %v1302
        %vm1316 = vcmp.eq.s32.totalorder %v277, %v1306
        %vm1317 = vcmp.eq.s32.totalorder %v278, %v1302
        %vm1318 = vcmp.eq.s32.totalorder %v278, %v1306
        %vm1319 = vcmp.eq.s32.totalorder %v279, %v1302
        %vm1320 = vcmp.eq.s32.totalorder %v279, %v1306
        %vm1321 = vcmp.eq.s32.totalorder %v280, %v1302
        %vm1322 = vcmp.eq.s32.totalorder %v280, %v1306
        %vm1323 = vcmp.eq.s32.totalorder %v281, %v1302
        %vm1324 = vcmp.eq.s32.totalorder %v281, %v1306
        %vm1325 = vcmp.eq.s32.totalorder %v282, %v1302
        %vm1326 = vcmp.eq.s32.totalorder %v282, %v1306
        %vm1327 = vcmp.eq.s32.totalorder %v283, %v1302
        %vm1328 = vcmp.eq.s32.totalorder %v283, %v1306
        %vm1329 = vcmp.eq.s32.totalorder %v284, %v1302
        %vm1330 = vcmp.eq.s32.totalorder %v284, %v1306
        %vm1331 = vcmp.eq.s32.totalorder %v285, %v1302
        %vm1332 = vcmp.eq.s32.totalorder %v285, %v1306
        %vm1333 = vcmp.eq.s32.totalorder %v286, %v1302
        %vm1334 = vcmp.eq.s32.totalorder %v286, %v1306
        %vm1335 = vcmp.eq.s32.totalorder %v287, %v1302
        %vm1336 = vcmp.eq.s32.totalorder %v287, %v1306
        %vm1337 = vcmp.eq.s32.totalorder %v288, %v1302
        %vm1338 = vcmp.eq.s32.totalorder %v288, %v1306
        %v1340 = vlaneseq
        %v1341 = vshrl.u32 %v1340, 7
        %v1342 = vsub.s32 3, %v1341
        %v1343 = vrot.slane %v269, %v1342
        %v1344 = vlaneseq
        %v1345 = vshrl.u32 %v1344, 7
        %v1346 = vsub.s32 7, %v1345
        %v1347 = vrot.slane %v269, %v1346
        %v1350 = vlaneseq
        %v1351 = vshrl.u32 %v1350, 7
        %v1352 = vsub.s32 3, %v1351
        %v1353 = vrot.slane %v1343, %v1352
        %v1354 = vlaneseq
        %v1355 = vshrl.u32 %v1354, 7
        %v1356 = vsub.s32 3, %v1355
        %v1357 = vrot.slane %v1347, %v1356
        %v1358 = vsel %vm1307, %v1353, 0.0
        %v1359 = vsel %vm1308, %v1357, 0.0
        %v1360 = vsel %vm1309, %v1353, 0.0
        %v1361 = vsel %vm1310, %v1357, 0.0
        %v1362 = vsel %vm1311, %v1353, 0.0
        %v1363 = vsel %vm1312, %v1357, 0.0
        %v1364 = vsel %vm1313, %v1353, 0.0
        %v1365 = vsel %vm1314, %v1357, 0.0
        %v1366 = vsel %vm1315, %v1353, 0.0
        %v1367 = vsel %vm1316, %v1357, 0.0
        %v1368 = vsel %vm1317, %v1353, 0.0
        %v1369 = vsel %vm1318, %v1357, 0.0
        %v1370 = vsel %vm1319, %v1353, 0.0
        %v1371 = vsel %vm1320, %v1357, 0.0
        %v1372 = vsel %vm1321, %v1353, 0.0
        %v1373 = vsel %vm1322, %v1357, 0.0
        %v1374 = vsel %vm1323, %v1353, 0.0
        %v1375 = vsel %vm1324, %v1357, 0.0
        %v1376 = vsel %vm1325, %v1353, 0.0
        %v1377 = vsel %vm1326, %v1357, 0.0
        %v1378 = vsel %vm1327, %v1353, 0.0
        %v1379 = vsel %vm1328, %v1357, 0.0
        %v1380 = vsel %vm1329, %v1353, 0.0
        %v1381 = vsel %vm1330, %v1357, 0.0
        %v1382 = vsel %vm1331, %v1353, 0.0
        %v1383 = vsel %vm1332, %v1357, 0.0
        %v1384 = vsel %vm1333, %v1353, 0.0
        %v1385 = vsel %vm1334, %v1357, 0.0
        %v1386 = vsel %vm1335, %v1353, 0.0
        %v1387 = vsel %vm1336, %v1357, 0.0
        %v1388 = vsel %vm1337, %v1353, 0.0
        %v1389 = vsel %vm1338, %v1357, 0.0
        %v1390 = vlaneseq
        %v1391 = vshrl.u32 %v1390, 7
        %v1392 = vsub.s32 2, %v1391
        %v1393 = vrot.slane %v269, %v1392
        %v1394 = vlaneseq
        %v1395 = vshrl.u32 %v1394, 7
        %v1396 = vsub.s32 6, %v1395
        %v1397 = vrot.slane %v269, %v1396
        %v1400 = vlaneseq
        %v1401 = vshrl.u32 %v1400, 7
        %v1402 = vsub.s32 2, %v1401
        %v1403 = vrot.slane %v1393, %v1402
        %v1404 = vlaneseq
        %v1405 = vshrl.u32 %v1404, 7
        %v1406 = vsub.s32 2, %v1405
        %v1407 = vrot.slane %v1397, %v1406
        %v1408 = vsel %vm1259, %v1403, %v1358
        %v1409 = vsel %vm1260, %v1407, %v1359
        %v1410 = vsel %vm1261, %v1403, %v1360
        %v1411 = vsel %vm1262, %v1407, %v1361
        %v1412 = vsel %vm1263, %v1403, %v1362
        %v1413 = vsel %vm1264, %v1407, %v1363
        %v1414 = vsel %vm1265, %v1403, %v1364
        %v1415 = vsel %vm1266, %v1407, %v1365
        %v1416 = vsel %vm1267, %v1403, %v1366
        %v1417 = vsel %vm1268, %v1407, %v1367
        %v1418 = vsel %vm1269, %v1403, %v1368
        %v1419 = vsel %vm1270, %v1407, %v1369
        %v1420 = vsel %vm1271, %v1403, %v1370
        %v1421 = vsel %vm1272, %v1407, %v1371
        %v1422 = vsel %vm1273, %v1403, %v1372
        %v1423 = vsel %vm1274, %v1407, %v1373
        %v1424 = vsel %vm1275, %v1403, %v1374
        %v1425 = vsel %vm1276, %v1407, %v1375
        %v1426 = vsel %vm1277, %v1403, %v1376
        %v1427 = vsel %vm1278, %v1407, %v1377
        %v1428 = vsel %vm1279, %v1403, %v1378
        %v1429 = vsel %vm1280, %v1407, %v1379
        %v1430 = vsel %vm1281, %v1403, %v1380
        %v1431 = vsel %vm1282, %v1407, %v1381
        %v1432 = vsel %vm1283, %v1403, %v1382
        %v1433 = vsel %vm1284, %v1407, %v1383
        %v1434 = vsel %vm1285, %v1403, %v1384
        %v1435 = vsel %vm1286, %v1407, %v1385
        %v1436 = vsel %vm1287, %v1403, %v1386
        %v1437 = vsel %vm1288, %v1407, %v1387
        %v1438 = vsel %vm1289, %v1403, %v1388
        %v1439 = vsel %vm1290, %v1407, %v1389
        %v1440 = vlaneseq
        %v1441 = vshrl.u32 %v1440, 7
        %v1442 = vsub.s32 1, %v1441
        %v1443 = vrot.slane %v269, %v1442
        %v1444 = vlaneseq
        %v1445 = vshrl.u32 %v1444, 7
        %v1446 = vsub.s32 5, %v1445
        %v1447 = vrot.slane %v269, %v1446
        %v1450 = vlaneseq
        %v1451 = vshrl.u32 %v1450, 7
        %v1452 = vsub.s32 1, %v1451
        %v1453 = vrot.slane %v1443, %v1452
        %v1454 = vlaneseq
        %v1455 = vshrl.u32 %v1454, 7
        %v1456 = vsub.s32 1, %v1455
        %v1457 = vrot.slane %v1447, %v1456
        %v1458 = vsel %vm1211, %v1453, %v1408
        %v1459 = vsel %vm1212, %v1457, %v1409
        %v1460 = vsel %vm1213, %v1453, %v1410
        %v1461 = vsel %vm1214, %v1457, %v1411
        %v1462 = vsel %vm1215, %v1453, %v1412
        %v1463 = vsel %vm1216, %v1457, %v1413
        %v1464 = vsel %vm1217, %v1453, %v1414
        %v1465 = vsel %vm1218, %v1457, %v1415
        %v1466 = vsel %vm1219, %v1453, %v1416
        %v1467 = vsel %vm1220, %v1457, %v1417
        %v1468 = vsel %vm1221, %v1453, %v1418
        %v1469 = vsel %vm1222, %v1457, %v1419
        %v1470 = vsel %vm1223, %v1453, %v1420
        %v1471 = vsel %vm1224, %v1457, %v1421
        %v1472 = vsel %vm1225, %v1453, %v1422
        %v1473 = vsel %vm1226, %v1457, %v1423
        %v1474 = vsel %vm1227, %v1453, %v1424
        %v1475 = vsel %vm1228, %v1457, %v1425
        %v1476 = vsel %vm1229, %v1453, %v1426
        %v1477 = vsel %vm1230, %v1457, %v1427
        %v1478 = vsel %vm1231, %v1453, %v1428
        %v1479 = vsel %vm1232, %v1457, %v1429
        %v1480 = vsel %vm1233, %v1453, %v1430
        %v1481 = vsel %vm1234, %v1457, %v1431
        %v1482 = vsel %vm1235, %v1453, %v1432
        %v1483 = vsel %vm1236, %v1457, %v1433
        %v1484 = vsel %vm1237, %v1453, %v1434
        %v1485 = vsel %vm1238, %v1457, %v1435
        %v1486 = vsel %vm1239, %v1453, %v1436
        %v1487 = vsel %vm1240, %v1457, %v1437
        %v1488 = vsel %vm1241, %v1453, %v1438
        %v1489 = vsel %vm1242, %v1457, %v1439
        %v1490 = vlaneseq
        %v1491 = vshrl.u32 %v1490, 7
        %v1492 = vsub.s32 0, %v1491
        %v1493 = vrot.slane %v269, %v1492
        %v1494 = vlaneseq
        %v1495 = vshrl.u32 %v1494, 7
        %v1496 = vsub.s32 4, %v1495
        %v1497 = vrot.slane %v269, %v1496
        %v1500 = vlaneseq
        %v1501 = vshrl.u32 %v1500, 7
        %v1502 = vsub.s32 0, %v1501
        %v1503 = vrot.slane %v1493, %v1502
        %v1504 = vlaneseq
        %v1505 = vshrl.u32 %v1504, 7
        %v1506 = vsub.s32 0, %v1505
        %v1507 = vrot.slane %v1497, %v1506
        %v1508 = vsel %vm1163, %v1503, %v1458
        %v1509 = vsel %vm1164, %v1507, %v1459
        %v1510 = vsel %vm1165, %v1503, %v1460
        %v1511 = vsel %vm1166, %v1507, %v1461
        %v1512 = vsel %vm1167, %v1503, %v1462
        %v1513 = vsel %vm1168, %v1507, %v1463
        %v1514 = vsel %vm1169, %v1503, %v1464
        %v1515 = vsel %vm1170, %v1507, %v1465
        %v1516 = vsel %vm1171, %v1503, %v1466
        %v1517 = vsel %vm1172, %v1507, %v1467
        %v1518 = vsel %vm1173, %v1503, %v1468
        %v1519 = vsel %vm1174, %v1507, %v1469
        %v1520 = vsel %vm1175, %v1503, %v1470
        %v1521 = vsel %vm1176, %v1507, %v1471
        %v1522 = vsel %vm1177, %v1503, %v1472
        %v1523 = vsel %vm1178, %v1507, %v1473
        %v1524 = vsel %vm1179, %v1503, %v1474
        %v1525 = vsel %vm1180, %v1507, %v1475
        %v1526 = vsel %vm1181, %v1503, %v1476
        %v1527 = vsel %vm1182, %v1507, %v1477
        %v1528 = vsel %vm1183, %v1503, %v1478
        %v1529 = vsel %vm1184, %v1507, %v1479
        %v1530 = vsel %vm1185, %v1503, %v1480
        %v1531 = vsel %vm1186, %v1507, %v1481
        %v1532 = vsel %vm1187, %v1503, %v1482
        %v1533 = vsel %vm1188, %v1507, %v1483
        %v1534 = vsel %vm1189, %v1503, %v1484
        %v1535 = vsel %vm1190, %v1507, %v1485
        %v1536 = vsel %vm1191, %v1503, %v1486
        %v1537 = vsel %vm1192, %v1507, %v1487
        %v1538 = vsel %vm1193, %v1503, %v1488
        %v1539 = vsel %vm1194, %v1507, %v1489
        %v1540 = vld [vmem:[%s231 + $0x10] sm:$0xff]
        %1541 = vmatprep.subr.mxu0 %v1539
        %1542 = vmatpush1.msra.mxu0 %v1538
        %1543 = vmatprep.subr.mxu0 %v1537
        %1544 = vmatpush1.msra.mxu0 %v1536
        %1545 = vmatprep.subr.mxu0 %v1535
        %1546 = vmatpush1.msra.mxu0 %v1534
        %1547 = vmatprep.subr.mxu0 %v1533
        %1548 = vmatpush1.msra.mxu0 %v1532
        %1549 = vmatprep.subr.mxu0 %v1531
        %1550 = vmatpush1.msra.mxu0 %v1530
        %1551 = vmatprep.subr.mxu0 %v1529
        %1552 = vmatpush1.msra.mxu0 %v1528
        %1553 = vmatprep.subr.mxu0 %v1527
        %1554 = vmatpush1.msra.mxu0 %v1526
        %1555 = vmatprep.subr.mxu0 %v1525
        %1556 = vmatpush1.msra.mxu0 %v1524
        %1557 = vmatprep.subr.mxu0 %v1523
        %1558 = vmatpush1.msra.mxu0 %v1522
        %1559 = vmatprep.subr.mxu0 %v1521
        %1560 = vmatpush1.msra.mxu0 %v1520
        %1561 = vmatprep.subr.mxu0 %v1519
        %1562 = vmatpush1.msra.mxu0 %v1518
        %1563 = vmatprep.subr.mxu0 %v1517
        %1564 = vmatpush1.msra.mxu0 %v1516
        %1565 = vmatprep.subr.mxu0 %v1515
        %1566 = vmatpush1.msra.mxu0 %v1514
        %1567 = vmatprep.subr.mxu0 %v1513
        %1568 = vmatpush1.msra.mxu0 %v1512
        %1569 = vmatprep.subr.mxu0 %v1511
        %1570 = vmatpush1.msra.mxu0 %v1510
        %1571 = vmatprep.subr.mxu0 %v1509
        %1572 = vmatpush1.msra.mxu0 %v1508
        %1573 = vmatprep.subr.mxu0 0.0
        %1574 = vmatpush2.msra.mxu0 0.0
        %1575 = vmatprep.subr.mxu0 0.0
        %1576 = vmatpush2.msra.mxu0 0.0
        %1577 = vmatprep.subr.mxu0 0.0
        %1578 = vmatpush2.msra.mxu0 0.0
        %1579 = vmatprep.subr.mxu0 0.0
        %1580 = vmatpush2.msra.mxu0 0.0
        %1581 = vmatprep.subr.mxu0 0.0
        %1582 = vmatpush2.msra.mxu0 0.0
        %1583 = vmatprep.subr.mxu0 0.0
        %1584 = vmatpush2.msra.mxu0 0.0
        %1585 = vmatprep.subr.mxu0 0.0
        %1586 = vmatpush2.msra.mxu0 0.0
        %1587 = vmatprep.subr.mxu0 0.0
        %1588 = vmatpush2.msra.mxu0 0.0
        %1589 = vmatprep.subr.mxu0 0.0
        %1590 = vmatpush2.msra.mxu0 0.0
        %1591 = vmatprep.subr.mxu0 0.0
        %1592 = vmatpush2.msra.mxu0 0.0
        %1593 = vmatprep.subr.mxu0 0.0
        %1594 = vmatpush2.msra.mxu0 0.0
        %1595 = vmatprep.subr.mxu0 0.0
        %1596 = vmatpush2.msra.mxu0 0.0
        %1597 = vmatprep.subr.mxu0 0.0
        %1598 = vmatpush2.msra.mxu0 0.0
        %1599 = vmatprep.subr.mxu0 0.0
        %1600 = vmatpush2.msra.mxu0 0.0
        %1601 = vmatprep.subr.mxu0 0.0
        %1602 = vmatpush2.msra.mxu0 0.0
        %1603 = vmatprep.subr.mxu0 0.0
        %1604 = vmatpush2.msra.mxu0 0.0
        %1605 = vmatprep.mubr.f32.mxu0 0.0
        %1606 = vmatmul.mubr.f32.gmra.mxu0 %v1540
        %v1607 = vpop.f32.mrf.mxu0
        %v1608 = vadd.f32 0.0, %v1607
        %v1609 = vpop.f32.mrf.mxu0
        %v1610 = vadd.f32 0.0, %v1609
        %1611 = vdwg.mxu0
        %v1612 = vadd.f32 %v1143, %v1608
        %v1613 = vadd.f32 %v1145, %v1610
        %v1614 = vsub.s32 %v265, 128
        %v1615 = vlaneseq
        %v1616 = vshrl.u32 %v1615, 7
        %v1617 = vsub.s32 0, %v1616
        %v1618 = vrot.slane %v1614, %v1617
        %v1619 = vlaneseq
        %v1620 = vshrl.u32 %v1619, 7
        %v1621 = vsub.s32 4, %v1620
        %v1622 = vrot.slane %v1614, %v1621
        %v1623 = vlaneseq
        %v1624 = vshrl.u32 %v1623, 7
        %v1625 = vsub.s32 0, %v1624
        %v1626 = vrot.slane %v1618, %v1625
        %v1627 = vlaneseq
        %v1628 = vshrl.u32 %v1627, 7
        %v1629 = vsub.s32 0, %v1628
        %v1630 = vrot.slane %v1622, %v1629
        %vm1631 = vcmp.eq.s32.totalorder %v273, %v1626
        %vm1632 = vcmp.eq.s32.totalorder %v273, %v1630
        %vm1633 = vcmp.eq.s32.totalorder %v274, %v1626
        %vm1634 = vcmp.eq.s32.totalorder %v274, %v1630
        %vm1635 = vcmp.eq.s32.totalorder %v275, %v1626
        %vm1636 = vcmp.eq.s32.totalorder %v275, %v1630
        %vm1637 = vcmp.eq.s32.totalorder %v276, %v1626
        %vm1638 = vcmp.eq.s32.totalorder %v276, %v1630
        %vm1639 = vcmp.eq.s32.totalorder %v277, %v1626
        %vm1640 = vcmp.eq.s32.totalorder %v277, %v1630
        %vm1641 = vcmp.eq.s32.totalorder %v278, %v1626
        %vm1642 = vcmp.eq.s32.totalorder %v278, %v1630
        %vm1643 = vcmp.eq.s32.totalorder %v279, %v1626
        %vm1644 = vcmp.eq.s32.totalorder %v279, %v1630
        %vm1645 = vcmp.eq.s32.totalorder %v280, %v1626
        %vm1646 = vcmp.eq.s32.totalorder %v280, %v1630
        %vm1647 = vcmp.eq.s32.totalorder %v281, %v1626
        %vm1648 = vcmp.eq.s32.totalorder %v281, %v1630
        %vm1649 = vcmp.eq.s32.totalorder %v282, %v1626
        %vm1650 = vcmp.eq.s32.totalorder %v282, %v1630
        %vm1651 = vcmp.eq.s32.totalorder %v283, %v1626
        %vm1652 = vcmp.eq.s32.totalorder %v283, %v1630
        %vm1653 = vcmp.eq.s32.totalorder %v284, %v1626
        %vm1654 = vcmp.eq.s32.totalorder %v284, %v1630
        %vm1655 = vcmp.eq.s32.totalorder %v285, %v1626
        %vm1656 = vcmp.eq.s32.totalorder %v285, %v1630
        %vm1657 = vcmp.eq.s32.totalorder %v286, %v1626
        %vm1658 = vcmp.eq.s32.totalorder %v286, %v1630
        %vm1659 = vcmp.eq.s32.totalorder %v287, %v1626
        %vm1660 = vcmp.eq.s32.totalorder %v287, %v1630
        %vm1661 = vcmp.eq.s32.totalorder %v288, %v1626
        %vm1662 = vcmp.eq.s32.totalorder %v288, %v1630
        %v1663 = vlaneseq
        %v1664 = vshrl.u32 %v1663, 7
        %v1665 = vsub.s32 1, %v1664
        %v1666 = vrot.slane %v1614, %v1665
        %v1667 = vlaneseq
        %v1668 = vshrl.u32 %v1667, 7
        %v1669 = vsub.s32 5, %v1668
        %v1670 = vrot.slane %v1614, %v1669
        %v1671 = vlaneseq
        %v1672 = vshrl.u32 %v1671, 7
        %v1673 = vsub.s32 1, %v1672
        %v1674 = vrot.slane %v1666, %v1673
        %v1675 = vlaneseq
        %v1676 = vshrl.u32 %v1675, 7
        %v1677 = vsub.s32 1, %v1676
        %v1678 = vrot.slane %v1670, %v1677
        %vm1679 = vcmp.eq.s32.totalorder %v273, %v1674
        %vm1680 = vcmp.eq.s32.totalorder %v273, %v1678
        %vm1681 = vcmp.eq.s32.totalorder %v274, %v1674
        %vm1682 = vcmp.eq.s32.totalorder %v274, %v1678
        %vm1683 = vcmp.eq.s32.totalorder %v275, %v1674
        %vm1684 = vcmp.eq.s32.totalorder %v275, %v1678
        %vm1685 = vcmp.eq.s32.totalorder %v276, %v1674
        %vm1686 = vcmp.eq.s32.totalorder %v276, %v1678
        %vm1687 = vcmp.eq.s32.totalorder %v277, %v1674
        %vm1688 = vcmp.eq.s32.totalorder %v277, %v1678
        %vm1689 = vcmp.eq.s32.totalorder %v278, %v1674
        %vm1690 = vcmp.eq.s32.totalorder %v278, %v1678
        %vm1691 = vcmp.eq.s32.totalorder %v279, %v1674
        %vm1692 = vcmp.eq.s32.totalorder %v279, %v1678
        %vm1693 = vcmp.eq.s32.totalorder %v280, %v1674
        %vm1694 = vcmp.eq.s32.totalorder %v280, %v1678
        %vm1695 = vcmp.eq.s32.totalorder %v281, %v1674
        %vm1696 = vcmp.eq.s32.totalorder %v281, %v1678
        %vm1697 = vcmp.eq.s32.totalorder %v282, %v1674
        %vm1698 = vcmp.eq.s32.totalorder %v282, %v1678
        %vm1699 = vcmp.eq.s32.totalorder %v283, %v1674
        %vm1700 = vcmp.eq.s32.totalorder %v283, %v1678
        %vm1701 = vcmp.eq.s32.totalorder %v284, %v1674
        %vm1702 = vcmp.eq.s32.totalorder %v284, %v1678
        %vm1703 = vcmp.eq.s32.totalorder %v285, %v1674
        %vm1704 = vcmp.eq.s32.totalorder %v285, %v1678
        %vm1705 = vcmp.eq.s32.totalorder %v286, %v1674
        %vm1706 = vcmp.eq.s32.totalorder %v286, %v1678
        %vm1707 = vcmp.eq.s32.totalorder %v287, %v1674
        %vm1708 = vcmp.eq.s32.totalorder %v287, %v1678
        %vm1709 = vcmp.eq.s32.totalorder %v288, %v1674
        %vm1710 = vcmp.eq.s32.totalorder %v288, %v1678
        %v1711 = vlaneseq
        %v1712 = vshrl.u32 %v1711, 7
        %v1713 = vsub.s32 2, %v1712
        %v1714 = vrot.slane %v1614, %v1713
        %v1715 = vlaneseq
        %v1716 = vshrl.u32 %v1715, 7
        %v1717 = vsub.s32 6, %v1716
        %v1718 = vrot.slane %v1614, %v1717
        %v1719 = vlaneseq
        %v1720 = vshrl.u32 %v1719, 7
        %v1721 = vsub.s32 2, %v1720
        %v1722 = vrot.slane %v1714, %v1721
        %v1723 = vlaneseq
        %v1724 = vshrl.u32 %v1723, 7
        %v1725 = vsub.s32 2, %v1724
        %v1726 = vrot.slane %v1718, %v1725
        %vm1727 = vcmp.eq.s32.totalorder %v273, %v1722
        %vm1728 = vcmp.eq.s32.totalorder %v273, %v1726
        %vm1729 = vcmp.eq.s32.totalorder %v274, %v1722
        %vm1730 = vcmp.eq.s32.totalorder %v274, %v1726
        %vm1731 = vcmp.eq.s32.totalorder %v275, %v1722
        %vm1732 = vcmp.eq.s32.totalorder %v275, %v1726
        %vm1733 = vcmp.eq.s32.totalorder %v276, %v1722
        %vm1734 = vcmp.eq.s32.totalorder %v276, %v1726
        %vm1735 = vcmp.eq.s32.totalorder %v277, %v1722
        %vm1736 = vcmp.eq.s32.totalorder %v277, %v1726
        %vm1737 = vcmp.eq.s32.totalorder %v278, %v1722
        %vm1738 = vcmp.eq.s32.totalorder %v278, %v1726
        %vm1739 = vcmp.eq.s32.totalorder %v279, %v1722
        %vm1740 = vcmp.eq.s32.totalorder %v279, %v1726
        %vm1741 = vcmp.eq.s32.totalorder %v280, %v1722
        %vm1742 = vcmp.eq.s32.totalorder %v280, %v1726
        %vm1743 = vcmp.eq.s32.totalorder %v281, %v1722
        %vm1744 = vcmp.eq.s32.totalorder %v281, %v1726
        %vm1745 = vcmp.eq.s32.totalorder %v282, %v1722
        %vm1746 = vcmp.eq.s32.totalorder %v282, %v1726
        %vm1747 = vcmp.eq.s32.totalorder %v283, %v1722
        %vm1748 = vcmp.eq.s32.totalorder %v283, %v1726
        %vm1749 = vcmp.eq.s32.totalorder %v284, %v1722
        %vm1750 = vcmp.eq.s32.totalorder %v284, %v1726
        %vm1751 = vcmp.eq.s32.totalorder %v285, %v1722
        %vm1752 = vcmp.eq.s32.totalorder %v285, %v1726
        %vm1753 = vcmp.eq.s32.totalorder %v286, %v1722
        %vm1754 = vcmp.eq.s32.totalorder %v286, %v1726
        %vm1755 = vcmp.eq.s32.totalorder %v287, %v1722
        %vm1756 = vcmp.eq.s32.totalorder %v287, %v1726
        %vm1757 = vcmp.eq.s32.totalorder %v288, %v1722
        %vm1758 = vcmp.eq.s32.totalorder %v288, %v1726
        %v1759 = vlaneseq
        %v1760 = vshrl.u32 %v1759, 7
        %v1761 = vsub.s32 3, %v1760
        %v1762 = vrot.slane %v1614, %v1761
        %v1763 = vlaneseq
        %v1764 = vshrl.u32 %v1763, 7
        %v1765 = vsub.s32 7, %v1764
        %v1766 = vrot.slane %v1614, %v1765
        %v1767 = vlaneseq
        %v1768 = vshrl.u32 %v1767, 7
        %v1769 = vsub.s32 3, %v1768
        %v1770 = vrot.slane %v1762, %v1769
        %v1771 = vlaneseq
        %v1772 = vshrl.u32 %v1771, 7
        %v1773 = vsub.s32 3, %v1772
        %v1774 = vrot.slane %v1766, %v1773
        %vm1775 = vcmp.eq.s32.totalorder %v273, %v1770
        %vm1776 = vcmp.eq.s32.totalorder %v273, %v1774
        %vm1777 = vcmp.eq.s32.totalorder %v274, %v1770
        %vm1778 = vcmp.eq.s32.totalorder %v274, %v1774
        %vm1779 = vcmp.eq.s32.totalorder %v275, %v1770
        %vm1780 = vcmp.eq.s32.totalorder %v275, %v1774
        %vm1781 = vcmp.eq.s32.totalorder %v276, %v1770
        %vm1782 = vcmp.eq.s32.totalorder %v276, %v1774
        %vm1783 = vcmp.eq.s32.totalorder %v277, %v1770
        %vm1784 = vcmp.eq.s32.totalorder %v277, %v1774
        %vm1785 = vcmp.eq.s32.totalorder %v278, %v1770
        %vm1786 = vcmp.eq.s32.totalorder %v278, %v1774
        %vm1787 = vcmp.eq.s32.totalorder %v279, %v1770
        %vm1788 = vcmp.eq.s32.totalorder %v279, %v1774
        %vm1789 = vcmp.eq.s32.totalorder %v280, %v1770
        %vm1790 = vcmp.eq.s32.totalorder %v280, %v1774
        %vm1791 = vcmp.eq.s32.totalorder %v281, %v1770
        %vm1792 = vcmp.eq.s32.totalorder %v281, %v1774
        %vm1793 = vcmp.eq.s32.totalorder %v282, %v1770
        %vm1794 = vcmp.eq.s32.totalorder %v282, %v1774
        %vm1795 = vcmp.eq.s32.totalorder %v283, %v1770
        %vm1796 = vcmp.eq.s32.totalorder %v283, %v1774
        %vm1797 = vcmp.eq.s32.totalorder %v284, %v1770
        %vm1798 = vcmp.eq.s32.totalorder %v284, %v1774
        %vm1799 = vcmp.eq.s32.totalorder %v285, %v1770
        %vm1800 = vcmp.eq.s32.totalorder %v285, %v1774
        %vm1801 = vcmp.eq.s32.totalorder %v286, %v1770
        %vm1802 = vcmp.eq.s32.totalorder %v286, %v1774
        %vm1803 = vcmp.eq.s32.totalorder %v287, %v1770
        %vm1804 = vcmp.eq.s32.totalorder %v287, %v1774
        %vm1805 = vcmp.eq.s32.totalorder %v288, %v1770
        %vm1806 = vcmp.eq.s32.totalorder %v288, %v1774
        %v1807 = vsel %vm1775, %v1353, 0.0
        %v1808 = vsel %vm1776, %v1357, 0.0
        %v1809 = vsel %vm1777, %v1353, 0.0
        %v1810 = vsel %vm1778, %v1357, 0.0
        %v1811 = vsel %vm1779, %v1353, 0.0
        %v1812 = vsel %vm1780, %v1357, 0.0
        %v1813 = vsel %vm1781, %v1353, 0.0
        %v1814 = vsel %vm1782, %v1357, 0.0
        %v1815 = vsel %vm1783, %v1353, 0.0
        %v1816 = vsel %vm1784, %v1357, 0.0
        %v1817 = vsel %vm1785, %v1353, 0.0
        %v1818 = vsel %vm1786, %v1357, 0.0
        %v1819 = vsel %vm1787, %v1353, 0.0
        %v1820 = vsel %vm1788, %v1357, 0.0
        %v1821 = vsel %vm1789, %v1353, 0.0
        %v1822 = vsel %vm1790, %v1357, 0.0
        %v1823 = vsel %vm1791, %v1353, 0.0
        %v1824 = vsel %vm1792, %v1357, 0.0
        %v1825 = vsel %vm1793, %v1353, 0.0
        %v1826 = vsel %vm1794, %v1357, 0.0
        %v1827 = vsel %vm1795, %v1353, 0.0
        %v1828 = vsel %vm1796, %v1357, 0.0
        %v1829 = vsel %vm1797, %v1353, 0.0
        %v1830 = vsel %vm1798, %v1357, 0.0
        %v1831 = vsel %vm1799, %v1353, 0.0
        %v1832 = vsel %vm1800, %v1357, 0.0
        %v1833 = vsel %vm1801, %v1353, 0.0
        %v1834 = vsel %vm1802, %v1357, 0.0
        %v1835 = vsel %vm1803, %v1353, 0.0
        %v1836 = vsel %vm1804, %v1357, 0.0
        %v1837 = vsel %vm1805, %v1353, 0.0
        %v1838 = vsel %vm1806, %v1357, 0.0
        %v1839 = vsel %vm1727, %v1403, %v1807
        %v1840 = vsel %vm1728, %v1407, %v1808
        %v1841 = vsel %vm1729, %v1403, %v1809
        %v1842 = vsel %vm1730, %v1407, %v1810
        %v1843 = vsel %vm1731, %v1403, %v1811
        %v1844 = vsel %vm1732, %v1407, %v1812
        %v1845 = vsel %vm1733, %v1403, %v1813
        %v1846 = vsel %vm1734, %v1407, %v1814
        %v1847 = vsel %vm1735, %v1403, %v1815
        %v1848 = vsel %vm1736, %v1407, %v1816
        %v1849 = vsel %vm1737, %v1403, %v1817
        %v1850 = vsel %vm1738, %v1407, %v1818
        %v1851 = vsel %vm1739, %v1403, %v1819
        %v1852 = vsel %vm1740, %v1407, %v1820
        %v1853 = vsel %vm1741, %v1403, %v1821
        %v1854 = vsel %vm1742, %v1407, %v1822
        %v1855 = vsel %vm1743, %v1403, %v1823
        %v1856 = vsel %vm1744, %v1407, %v1824
        %v1857 = vsel %vm1745, %v1403, %v1825
        %v1858 = vsel %vm1746, %v1407, %v1826
        %v1859 = vsel %vm1747, %v1403, %v1827
        %v1860 = vsel %vm1748, %v1407, %v1828
        %v1861 = vsel %vm1749, %v1403, %v1829
        %v1862 = vsel %vm1750, %v1407, %v1830
        %v1863 = vsel %vm1751, %v1403, %v1831
        %v1864 = vsel %vm1752, %v1407, %v1832
        %v1865 = vsel %vm1753, %v1403, %v1833
        %v1866 = vsel %vm1754, %v1407, %v1834
        %v1867 = vsel %vm1755, %v1403, %v1835
        %v1868 = vsel %vm1756, %v1407, %v1836
        %v1869 = vsel %vm1757, %v1403, %v1837
        %v1870 = vsel %vm1758, %v1407, %v1838
        %v1871 = vsel %vm1679, %v1453, %v1839
        %v1872 = vsel %vm1680, %v1457, %v1840
        %v1873 = vsel %vm1681, %v1453, %v1841
        %v1874 = vsel %vm1682, %v1457, %v1842
        %v1875 = vsel %vm1683, %v1453, %v1843
        %v1876 = vsel %vm1684, %v1457, %v1844
        %v1877 = vsel %vm1685, %v1453, %v1845
        %v1878 = vsel %vm1686, %v1457, %v1846
        %v1879 = vsel %vm1687, %v1453, %v1847
        %v1880 = vsel %vm1688, %v1457, %v1848
        %v1881 = vsel %vm1689, %v1453, %v1849
        %v1882 = vsel %vm1690, %v1457, %v1850
        %v1883 = vsel %vm1691, %v1453, %v1851
        %v1884 = vsel %vm1692, %v1457, %v1852
        %v1885 = vsel %vm1693, %v1453, %v1853
        %v1886 = vsel %vm1694, %v1457, %v1854
        %v1887 = vsel %vm1695, %v1453, %v1855
        %v1888 = vsel %vm1696, %v1457, %v1856
        %v1889 = vsel %vm1697, %v1453, %v1857
        %v1890 = vsel %vm1698, %v1457, %v1858
        %v1891 = vsel %vm1699, %v1453, %v1859
        %v1892 = vsel %vm1700, %v1457, %v1860
        %v1893 = vsel %vm1701, %v1453, %v1861
        %v1894 = vsel %vm1702, %v1457, %v1862
        %v1895 = vsel %vm1703, %v1453, %v1863
        %v1896 = vsel %vm1704, %v1457, %v1864
        %v1897 = vsel %vm1705, %v1453, %v1865
        %v1898 = vsel %vm1706, %v1457, %v1866
        %v1899 = vsel %vm1707, %v1453, %v1867
        %v1900 = vsel %vm1708, %v1457, %v1868
        %v1901 = vsel %vm1709, %v1453, %v1869
        %v1902 = vsel %vm1710, %v1457, %v1870
        %v1903 = vsel %vm1631, %v1503, %v1871
        %v1904 = vsel %vm1632, %v1507, %v1872
        %v1905 = vsel %vm1633, %v1503, %v1873
        %v1906 = vsel %vm1634, %v1507, %v1874
        %v1907 = vsel %vm1635, %v1503, %v1875
        %v1908 = vsel %vm1636, %v1507, %v1876
        %v1909 = vsel %vm1637, %v1503, %v1877
        %v1910 = vsel %vm1638, %v1507, %v1878
        %v1911 = vsel %vm1639, %v1503, %v1879
        %v1912 = vsel %vm1640, %v1507, %v1880
        %v1913 = vsel %vm1641, %v1503, %v1881
        %v1914 = vsel %vm1642, %v1507, %v1882
        %v1915 = vsel %vm1643, %v1503, %v1883
        %v1916 = vsel %vm1644, %v1507, %v1884
        %v1917 = vsel %vm1645, %v1503, %v1885
        %v1918 = vsel %vm1646, %v1507, %v1886
        %v1919 = vsel %vm1647, %v1503, %v1887
        %v1920 = vsel %vm1648, %v1507, %v1888
        %v1921 = vsel %vm1649, %v1503, %v1889
        %v1922 = vsel %vm1650, %v1507, %v1890
        %v1923 = vsel %vm1651, %v1503, %v1891
        %v1924 = vsel %vm1652, %v1507, %v1892
        %v1925 = vsel %vm1653, %v1503, %v1893
        %v1926 = vsel %vm1654, %v1507, %v1894
        %v1927 = vsel %vm1655, %v1503, %v1895
        %v1928 = vsel %vm1656, %v1507, %v1896
        %v1929 = vsel %vm1657, %v1503, %v1897
        %v1930 = vsel %vm1658, %v1507, %v1898
        %v1931 = vsel %vm1659, %v1503, %v1899
        %v1932 = vsel %vm1660, %v1507, %v1900
        %v1933 = vsel %vm1661, %v1503, %v1901
        %v1934 = vsel %vm1662, %v1507, %v1902
        %v1935 = vld [vmem:[%s231 + $0x18] sm:$0xff]
        %1936 = vmatprep.subr.mxu0 %v1934
        %1937 = vmatpush1.msra.mxu0 %v1933
        %1938 = vmatprep.subr.mxu0 %v1932
        %1939 = vmatpush1.msra.mxu0 %v1931
        %1940 = vmatprep.subr.mxu0 %v1930
        %1941 = vmatpush1.msra.mxu0 %v1929
        %1942 = vmatprep.subr.mxu0 %v1928
        %1943 = vmatpush1.msra.mxu0 %v1927
        %1944 = vmatprep.subr.mxu0 %v1926
        %1945 = vmatpush1.msra.mxu0 %v1925
        %1946 = vmatprep.subr.mxu0 %v1924
        %1947 = vmatpush1.msra.mxu0 %v1923
        %1948 = vmatprep.subr.mxu0 %v1922
        %1949 = vmatpush1.msra.mxu0 %v1921
        %1950 = vmatprep.subr.mxu0 %v1920
        %1951 = vmatpush1.msra.mxu0 %v1919
        %1952 = vmatprep.subr.mxu0 %v1918
        %1953 = vmatpush1.msra.mxu0 %v1917
        %1954 = vmatprep.subr.mxu0 %v1916
        %1955 = vmatpush1.msra.mxu0 %v1915
        %1956 = vmatprep.subr.mxu0 %v1914
        %1957 = vmatpush1.msra.mxu0 %v1913
        %1958 = vmatprep.subr.mxu0 %v1912
        %1959 = vmatpush1.msra.mxu0 %v1911
        %1960 = vmatprep.subr.mxu0 %v1910
        %1961 = vmatpush1.msra.mxu0 %v1909
        %1962 = vmatprep.subr.mxu0 %v1908
        %1963 = vmatpush1.msra.mxu0 %v1907
        %1964 = vmatprep.subr.mxu0 %v1906
        %1965 = vmatpush1.msra.mxu0 %v1905
        %1966 = vmatprep.subr.mxu0 %v1904
        %1967 = vmatpush1.msra.mxu0 %v1903
        %1968 = vmatprep.subr.mxu0 0.0
        %1969 = vmatpush2.msra.mxu0 0.0
        %1970 = vmatprep.subr.mxu0 0.0
        %1971 = vmatpush2.msra.mxu0 0.0
        %1972 = vmatprep.subr.mxu0 0.0
        %1973 = vmatpush2.msra.mxu0 0.0
        %1974 = vmatprep.subr.mxu0 0.0
        %1975 = vmatpush2.msra.mxu0 0.0
        %1976 = vmatprep.subr.mxu0 0.0
        %1977 = vmatpush2.msra.mxu0 0.0
        %1978 = vmatprep.subr.mxu0 0.0
        %1979 = vmatpush2.msra.mxu0 0.0
        %1980 = vmatprep.subr.mxu0 0.0
        %1981 = vmatpush2.msra.mxu0 0.0
        %1982 = vmatprep.subr.mxu0 0.0
        %1983 = vmatpush2.msra.mxu0 0.0
        %1984 = vmatprep.subr.mxu0 0.0
        %1985 = vmatpush2.msra.mxu0 0.0
        %1986 = vmatprep.subr.mxu0 0.0
        %1987 = vmatpush2.msra.mxu0 0.0
        %1988 = vmatprep.subr.mxu0 0.0
        %1989 = vmatpush2.msra.mxu0 0.0
        %1990 = vmatprep.subr.mxu0 0.0
        %1991 = vmatpush2.msra.mxu0 0.0
        %1992 = vmatprep.subr.mxu0 0.0
        %1993 = vmatpush2.msra.mxu0 0.0
        %1994 = vmatprep.subr.mxu0 0.0
        %1995 = vmatpush2.msra.mxu0 0.0
        %1996 = vmatprep.subr.mxu0 0.0
        %1997 = vmatpush2.msra.mxu0 0.0
        %1998 = vmatprep.subr.mxu0 0.0
        %1999 = vmatpush2.msra.mxu0 0.0
        %2000 = vmatprep.mubr.f32.mxu0 0.0
        %2001 = vmatmul.mubr.f32.gmra.mxu0 %v1935
        %v2002 = vpop.f32.mrf.mxu0
        %v2003 = vadd.f32 0.0, %v2002
        %v2004 = vpop.f32.mrf.mxu0
        %v2005 = vadd.f32 0.0, %v2004
        %2006 = vdwg.mxu0
        %v2007 = vadd.f32 %v1612, %v2003
        %v2008 = vadd.f32 %v1613, %v2005
        %v2009 = vlaneseq
        %v2010 = vshrl.u32 %v2009, 7
        %v2011 = vsub.s32 0, %v2010
        %v2012 = vrot.slane %v266, %v2011
        %v2013 = vlaneseq
        %v2014 = vshrl.u32 %v2013, 7
        %v2015 = vsub.s32 4, %v2014
        %v2016 = vrot.slane %v266, %v2015
        %v2017 = vlaneseq
        %v2018 = vshrl.u32 %v2017, 7
        %v2019 = vsub.s32 0, %v2018
        %v2020 = vrot.slane %v2012, %v2019
        %v2021 = vlaneseq
        %v2022 = vshrl.u32 %v2021, 7
        %v2023 = vsub.s32 0, %v2022
        %v2024 = vrot.slane %v2016, %v2023
        %vm2025 = vcmp.eq.s32.totalorder %v273, %v2020
        %vm2026 = vcmp.eq.s32.totalorder %v273, %v2024
        %vm2027 = vcmp.eq.s32.totalorder %v274, %v2020
        %vm2028 = vcmp.eq.s32.totalorder %v274, %v2024
        %vm2029 = vcmp.eq.s32.totalorder %v275, %v2020
        %vm2030 = vcmp.eq.s32.totalorder %v275, %v2024
        %vm2031 = vcmp.eq.s32.totalorder %v276, %v2020
        %vm2032 = vcmp.eq.s32.totalorder %v276, %v2024
        %vm2033 = vcmp.eq.s32.totalorder %v277, %v2020
        %vm2034 = vcmp.eq.s32.totalorder %v277, %v2024
        %vm2035 = vcmp.eq.s32.totalorder %v278, %v2020
        %vm2036 = vcmp.eq.s32.totalorder %v278, %v2024
        %vm2037 = vcmp.eq.s32.totalorder %v279, %v2020
        %vm2038 = vcmp.eq.s32.totalorder %v279, %v2024
        %vm2039 = vcmp.eq.s32.totalorder %v280, %v2020
        %vm2040 = vcmp.eq.s32.totalorder %v280, %v2024
        %vm2041 = vcmp.eq.s32.totalorder %v281, %v2020
        %vm2042 = vcmp.eq.s32.totalorder %v281, %v2024
        %vm2043 = vcmp.eq.s32.totalorder %v282, %v2020
        %vm2044 = vcmp.eq.s32.totalorder %v282, %v2024
        %vm2045 = vcmp.eq.s32.totalorder %v283, %v2020
        %vm2046 = vcmp.eq.s32.totalorder %v283, %v2024
        %vm2047 = vcmp.eq.s32.totalorder %v284, %v2020
        %vm2048 = vcmp.eq.s32.totalorder %v284, %v2024
        %vm2049 = vcmp.eq.s32.totalorder %v285, %v2020
        %vm2050 = vcmp.eq.s32.totalorder %v285, %v2024
        %vm2051 = vcmp.eq.s32.totalorder %v286, %v2020
        %vm2052 = vcmp.eq.s32.totalorder %v286, %v2024
        %vm2053 = vcmp.eq.s32.totalorder %v287, %v2020
        %vm2054 = vcmp.eq.s32.totalorder %v287, %v2024
        %vm2055 = vcmp.eq.s32.totalorder %v288, %v2020
        %vm2056 = vcmp.eq.s32.totalorder %v288, %v2024
        %v2057 = vlaneseq
        %v2058 = vshrl.u32 %v2057, 7
        %v2059 = vsub.s32 1, %v2058
        %v2060 = vrot.slane %v266, %v2059
        %v2061 = vlaneseq
        %v2062 = vshrl.u32 %v2061, 7
        %v2063 = vsub.s32 5, %v2062
        %v2064 = vrot.slane %v266, %v2063
        %v2065 = vlaneseq
        %v2066 = vshrl.u32 %v2065, 7
        %v2067 = vsub.s32 1, %v2066
        %v2068 = vrot.slane %v2060, %v2067
        %v2069 = vlaneseq
        %v2070 = vshrl.u32 %v2069, 7
        %v2071 = vsub.s32 1, %v2070
        %v2072 = vrot.slane %v2064, %v2071
        %vm2073 = vcmp.eq.s32.totalorder %v273, %v2068
        %vm2074 = vcmp.eq.s32.totalorder %v273, %v2072
        %vm2075 = vcmp.eq.s32.totalorder %v274, %v2068
        %vm2076 = vcmp.eq.s32.totalorder %v274, %v2072
        %vm2077 = vcmp.eq.s32.totalorder %v275, %v2068
        %vm2078 = vcmp.eq.s32.totalorder %v275, %v2072
        %vm2079 = vcmp.eq.s32.totalorder %v276, %v2068
        %vm2080 = vcmp.eq.s32.totalorder %v276, %v2072
        %vm2081 = vcmp.eq.s32.totalorder %v277, %v2068
        %vm2082 = vcmp.eq.s32.totalorder %v277, %v2072
        %vm2083 = vcmp.eq.s32.totalorder %v278, %v2068
        %vm2084 = vcmp.eq.s32.totalorder %v278, %v2072
        %vm2085 = vcmp.eq.s32.totalorder %v279, %v2068
        %vm2086 = vcmp.eq.s32.totalorder %v279, %v2072
        %vm2087 = vcmp.eq.s32.totalorder %v280, %v2068
        %vm2088 = vcmp.eq.s32.totalorder %v280, %v2072
        %vm2089 = vcmp.eq.s32.totalorder %v281, %v2068
        %vm2090 = vcmp.eq.s32.totalorder %v281, %v2072
        %vm2091 = vcmp.eq.s32.totalorder %v282, %v2068
        %vm2092 = vcmp.eq.s32.totalorder %v282, %v2072
        %vm2093 = vcmp.eq.s32.totalorder %v283, %v2068
        %vm2094 = vcmp.eq.s32.totalorder %v283, %v2072
        %vm2095 = vcmp.eq.s32.totalorder %v284, %v2068
        %vm2096 = vcmp.eq.s32.totalorder %v284, %v2072
        %vm2097 = vcmp.eq.s32.totalorder %v285, %v2068
        %vm2098 = vcmp.eq.s32.totalorder %v285, %v2072
        %vm2099 = vcmp.eq.s32.totalorder %v286, %v2068
        %vm2100 = vcmp.eq.s32.totalorder %v286, %v2072
        %vm2101 = vcmp.eq.s32.totalorder %v287, %v2068
        %vm2102 = vcmp.eq.s32.totalorder %v287, %v2072
        %vm2103 = vcmp.eq.s32.totalorder %v288, %v2068
        %vm2104 = vcmp.eq.s32.totalorder %v288, %v2072
        %v2105 = vlaneseq
        %v2106 = vshrl.u32 %v2105, 7
        %v2107 = vsub.s32 2, %v2106
        %v2108 = vrot.slane %v266, %v2107
        %v2109 = vlaneseq
        %v2110 = vshrl.u32 %v2109, 7
        %v2111 = vsub.s32 6, %v2110
        %v2112 = vrot.slane %v266, %v2111
        %v2113 = vlaneseq
        %v2114 = vshrl.u32 %v2113, 7
        %v2115 = vsub.s32 2, %v2114
        %v2116 = vrot.slane %v2108, %v2115
        %v2117 = vlaneseq
        %v2118 = vshrl.u32 %v2117, 7
        %v2119 = vsub.s32 2, %v2118
        %v2120 = vrot.slane %v2112, %v2119
        %vm2121 = vcmp.eq.s32.totalorder %v273, %v2116
        %vm2122 = vcmp.eq.s32.totalorder %v273, %v2120
        %vm2123 = vcmp.eq.s32.totalorder %v274, %v2116
        %vm2124 = vcmp.eq.s32.totalorder %v274, %v2120
        %vm2125 = vcmp.eq.s32.totalorder %v275, %v2116
        %vm2126 = vcmp.eq.s32.totalorder %v275, %v2120
        %vm2127 = vcmp.eq.s32.totalorder %v276, %v2116
        %vm2128 = vcmp.eq.s32.totalorder %v276, %v2120
        %vm2129 = vcmp.eq.s32.totalorder %v277, %v2116
        %vm2130 = vcmp.eq.s32.totalorder %v277, %v2120
        %vm2131 = vcmp.eq.s32.totalorder %v278, %v2116
        %vm2132 = vcmp.eq.s32.totalorder %v278, %v2120
        %vm2133 = vcmp.eq.s32.totalorder %v279, %v2116
        %vm2134 = vcmp.eq.s32.totalorder %v279, %v2120
        %vm2135 = vcmp.eq.s32.totalorder %v280, %v2116
        %vm2136 = vcmp.eq.s32.totalorder %v280, %v2120
        %vm2137 = vcmp.eq.s32.totalorder %v281, %v2116
        %vm2138 = vcmp.eq.s32.totalorder %v281, %v2120
        %vm2139 = vcmp.eq.s32.totalorder %v282, %v2116
        %vm2140 = vcmp.eq.s32.totalorder %v282, %v2120
        %vm2141 = vcmp.eq.s32.totalorder %v283, %v2116
        %vm2142 = vcmp.eq.s32.totalorder %v283, %v2120
        %vm2143 = vcmp.eq.s32.totalorder %v284, %v2116
        %vm2144 = vcmp.eq.s32.totalorder %v284, %v2120
        %vm2145 = vcmp.eq.s32.totalorder %v285, %v2116
        %vm2146 = vcmp.eq.s32.totalorder %v285, %v2120
        %vm2147 = vcmp.eq.s32.totalorder %v286, %v2116
        %vm2148 = vcmp.eq.s32.totalorder %v286, %v2120
        %vm2149 = vcmp.eq.s32.totalorder %v287, %v2116
        %vm2150 = vcmp.eq.s32.totalorder %v287, %v2120
        %vm2151 = vcmp.eq.s32.totalorder %v288, %v2116
        %vm2152 = vcmp.eq.s32.totalorder %v288, %v2120
        %v2153 = vlaneseq
        %v2154 = vshrl.u32 %v2153, 7
        %v2155 = vsub.s32 3, %v2154
        %v2156 = vrot.slane %v266, %v2155
        %v2157 = vlaneseq
        %v2158 = vshrl.u32 %v2157, 7
        %v2159 = vsub.s32 7, %v2158
        %v2160 = vrot.slane %v266, %v2159
        %v2161 = vlaneseq
        %v2162 = vshrl.u32 %v2161, 7
        %v2163 = vsub.s32 3, %v2162
        %v2164 = vrot.slane %v2156, %v2163
        %v2165 = vlaneseq
        %v2166 = vshrl.u32 %v2165, 7
        %v2167 = vsub.s32 3, %v2166
        %v2168 = vrot.slane %v2160, %v2167
        %vm2169 = vcmp.eq.s32.totalorder %v273, %v2164
        %vm2170 = vcmp.eq.s32.totalorder %v273, %v2168
        %vm2171 = vcmp.eq.s32.totalorder %v274, %v2164
        %vm2172 = vcmp.eq.s32.totalorder %v274, %v2168
        %vm2173 = vcmp.eq.s32.totalorder %v275, %v2164
        %vm2174 = vcmp.eq.s32.totalorder %v275, %v2168
        %vm2175 = vcmp.eq.s32.totalorder %v276, %v2164
        %vm2176 = vcmp.eq.s32.totalorder %v276, %v2168
        %vm2177 = vcmp.eq.s32.totalorder %v277, %v2164
        %vm2178 = vcmp.eq.s32.totalorder %v277, %v2168
        %vm2179 = vcmp.eq.s32.totalorder %v278, %v2164
        %vm2180 = vcmp.eq.s32.totalorder %v278, %v2168
        %vm2181 = vcmp.eq.s32.totalorder %v279, %v2164
        %vm2182 = vcmp.eq.s32.totalorder %v279, %v2168
        %vm2183 = vcmp.eq.s32.totalorder %v280, %v2164
        %vm2184 = vcmp.eq.s32.totalorder %v280, %v2168
        %vm2185 = vcmp.eq.s32.totalorder %v281, %v2164
        %vm2186 = vcmp.eq.s32.totalorder %v281, %v2168
        %vm2187 = vcmp.eq.s32.totalorder %v282, %v2164
        %vm2188 = vcmp.eq.s32.totalorder %v282, %v2168
        %vm2189 = vcmp.eq.s32.totalorder %v283, %v2164
        %vm2190 = vcmp.eq.s32.totalorder %v283, %v2168
        %vm2191 = vcmp.eq.s32.totalorder %v284, %v2164
        %vm2192 = vcmp.eq.s32.totalorder %v284, %v2168
        %vm2193 = vcmp.eq.s32.totalorder %v285, %v2164
        %vm2194 = vcmp.eq.s32.totalorder %v285, %v2168
        %vm2195 = vcmp.eq.s32.totalorder %v286, %v2164
        %vm2196 = vcmp.eq.s32.totalorder %v286, %v2168
        %vm2197 = vcmp.eq.s32.totalorder %v287, %v2164
        %vm2198 = vcmp.eq.s32.totalorder %v287, %v2168
        %vm2199 = vcmp.eq.s32.totalorder %v288, %v2164
        %vm2200 = vcmp.eq.s32.totalorder %v288, %v2168
        %v2202 = vlaneseq
        %v2203 = vshrl.u32 %v2202, 7
        %v2204 = vsub.s32 3, %v2203
        %v2205 = vrot.slane %v270, %v2204
        %v2206 = vlaneseq
        %v2207 = vshrl.u32 %v2206, 7
        %v2208 = vsub.s32 7, %v2207
        %v2209 = vrot.slane %v270, %v2208
        %v2212 = vlaneseq
        %v2213 = vshrl.u32 %v2212, 7
        %v2214 = vsub.s32 3, %v2213
        %v2215 = vrot.slane %v2205, %v2214
        %v2216 = vlaneseq
        %v2217 = vshrl.u32 %v2216, 7
        %v2218 = vsub.s32 3, %v2217
        %v2219 = vrot.slane %v2209, %v2218
        %v2220 = vsel %vm2169, %v2215, 0.0
        %v2221 = vsel %vm2170, %v2219, 0.0
        %v2222 = vsel %vm2171, %v2215, 0.0
        %v2223 = vsel %vm2172, %v2219, 0.0
        %v2224 = vsel %vm2173, %v2215, 0.0
        %v2225 = vsel %vm2174, %v2219, 0.0
        %v2226 = vsel %vm2175, %v2215, 0.0
        %v2227 = vsel %vm2176, %v2219, 0.0
        %v2228 = vsel %vm2177, %v2215, 0.0
        %v2229 = vsel %vm2178, %v2219, 0.0
        %v2230 = vsel %vm2179, %v2215, 0.0
        %v2231 = vsel %vm2180, %v2219, 0.0
        %v2232 = vsel %vm2181, %v2215, 0.0
        %v2233 = vsel %vm2182, %v2219, 0.0
        %v2234 = vsel %vm2183, %v2215, 0.0
        %v2235 = vsel %vm2184, %v2219, 0.0
        %v2236 = vsel %vm2185, %v2215, 0.0
        %v2237 = vsel %vm2186, %v2219, 0.0
        %v2238 = vsel %vm2187, %v2215, 0.0
        %v2239 = vsel %vm2188, %v2219, 0.0
        %v2240 = vsel %vm2189, %v2215, 0.0
        %v2241 = vsel %vm2190, %v2219, 0.0
        %v2242 = vsel %vm2191, %v2215, 0.0
        %v2243 = vsel %vm2192, %v2219, 0.0
        %v2244 = vsel %vm2193, %v2215, 0.0
        %v2245 = vsel %vm2194, %v2219, 0.0
        %v2246 = vsel %vm2195, %v2215, 0.0
        %v2247 = vsel %vm2196, %v2219, 0.0
        %v2248 = vsel %vm2197, %v2215, 0.0
        %v2249 = vsel %vm2198, %v2219, 0.0
        %v2250 = vsel %vm2199, %v2215, 0.0
        %v2251 = vsel %vm2200, %v2219, 0.0
        %v2252 = vlaneseq
        %v2253 = vshrl.u32 %v2252, 7
        %v2254 = vsub.s32 2, %v2253
        %v2255 = vrot.slane %v270, %v2254
        %v2256 = vlaneseq
        %v2257 = vshrl.u32 %v2256, 7
        %v2258 = vsub.s32 6, %v2257
        %v2259 = vrot.slane %v270, %v2258
        %v2262 = vlaneseq
        %v2263 = vshrl.u32 %v2262, 7
        %v2264 = vsub.s32 2, %v2263
        %v2265 = vrot.slane %v2255, %v2264
        %v2266 = vlaneseq
        %v2267 = vshrl.u32 %v2266, 7
        %v2268 = vsub.s32 2, %v2267
        %v2269 = vrot.slane %v2259, %v2268
        %v2270 = vsel %vm2121, %v2265, %v2220
        %v2271 = vsel %vm2122, %v2269, %v2221
        %v2272 = vsel %vm2123, %v2265, %v2222
        %v2273 = vsel %vm2124, %v2269, %v2223
        %v2274 = vsel %vm2125, %v2265, %v2224
        %v2275 = vsel %vm2126, %v2269, %v2225
        %v2276 = vsel %vm2127, %v2265, %v2226
        %v2277 = vsel %vm2128, %v2269, %v2227
        %v2278 = vsel %vm2129, %v2265, %v2228
        %v2279 = vsel %vm2130, %v2269, %v2229
        %v2280 = vsel %vm2131, %v2265, %v2230
        %v2281 = vsel %vm2132, %v2269, %v2231
        %v2282 = vsel %vm2133, %v2265, %v2232
        %v2283 = vsel %vm2134, %v2269, %v2233
        %v2284 = vsel %vm2135, %v2265, %v2234
        %v2285 = vsel %vm2136, %v2269, %v2235
        %v2286 = vsel %vm2137, %v2265, %v2236
        %v2287 = vsel %vm2138, %v2269, %v2237
        %v2288 = vsel %vm2139, %v2265, %v2238
        %v2289 = vsel %vm2140, %v2269, %v2239
        %v2290 = vsel %vm2141, %v2265, %v2240
        %v2291 = vsel %vm2142, %v2269, %v2241
        %v2292 = vsel %vm2143, %v2265, %v2242
        %v2293 = vsel %vm2144, %v2269, %v2243
        %v2294 = vsel %vm2145, %v2265, %v2244
        %v2295 = vsel %vm2146, %v2269, %v2245
        %v2296 = vsel %vm2147, %v2265, %v2246
        %v2297 = vsel %vm2148, %v2269, %v2247
        %v2298 = vsel %vm2149, %v2265, %v2248
        %v2299 = vsel %vm2150, %v2269, %v2249
        %v2300 = vsel %vm2151, %v2265, %v2250
        %v2301 = vsel %vm2152, %v2269, %v2251
        %v2302 = vlaneseq
        %v2303 = vshrl.u32 %v2302, 7
        %v2304 = vsub.s32 1, %v2303
        %v2305 = vrot.slane %v270, %v2304
        %v2306 = vlaneseq
        %v2307 = vshrl.u32 %v2306, 7
        %v2308 = vsub.s32 5, %v2307
        %v2309 = vrot.slane %v270, %v2308
        %v2312 = vlaneseq
        %v2313 = vshrl.u32 %v2312, 7
        %v2314 = vsub.s32 1, %v2313
        %v2315 = vrot.slane %v2305, %v2314
        %v2316 = vlaneseq
        %v2317 = vshrl.u32 %v2316, 7
        %v2318 = vsub.s32 1, %v2317
        %v2319 = vrot.slane %v2309, %v2318
        %v2320 = vsel %vm2073, %v2315, %v2270
        %v2321 = vsel %vm2074, %v2319, %v2271
        %v2322 = vsel %vm2075, %v2315, %v2272
        %v2323 = vsel %vm2076, %v2319, %v2273
        %v2324 = vsel %vm2077, %v2315, %v2274
        %v2325 = vsel %vm2078, %v2319, %v2275
        %v2326 = vsel %vm2079, %v2315, %v2276
        %v2327 = vsel %vm2080, %v2319, %v2277
        %v2328 = vsel %vm2081, %v2315, %v2278
        %v2329 = vsel %vm2082, %v2319, %v2279
        %v2330 = vsel %vm2083, %v2315, %v2280
        %v2331 = vsel %vm2084, %v2319, %v2281
        %v2332 = vsel %vm2085, %v2315, %v2282
        %v2333 = vsel %vm2086, %v2319, %v2283
        %v2334 = vsel %vm2087, %v2315, %v2284
        %v2335 = vsel %vm2088, %v2319, %v2285
        %v2336 = vsel %vm2089, %v2315, %v2286
        %v2337 = vsel %vm2090, %v2319, %v2287
        %v2338 = vsel %vm2091, %v2315, %v2288
        %v2339 = vsel %vm2092, %v2319, %v2289
        %v2340 = vsel %vm2093, %v2315, %v2290
        %v2341 = vsel %vm2094, %v2319, %v2291
        %v2342 = vsel %vm2095, %v2315, %v2292
        %v2343 = vsel %vm2096, %v2319, %v2293
        %v2344 = vsel %vm2097, %v2315, %v2294
        %v2345 = vsel %vm2098, %v2319, %v2295
        %v2346 = vsel %vm2099, %v2315, %v2296
        %v2347 = vsel %vm2100, %v2319, %v2297
        %v2348 = vsel %vm2101, %v2315, %v2298
        %v2349 = vsel %vm2102, %v2319, %v2299
        %v2350 = vsel %vm2103, %v2315, %v2300
        %v2351 = vsel %vm2104, %v2319, %v2301
        %v2352 = vlaneseq
        %v2353 = vshrl.u32 %v2352, 7
        %v2354 = vsub.s32 0, %v2353
        %v2355 = vrot.slane %v270, %v2354
        %v2356 = vlaneseq
        %v2357 = vshrl.u32 %v2356, 7
        %v2358 = vsub.s32 4, %v2357
        %v2359 = vrot.slane %v270, %v2358
        %v2362 = vlaneseq
        %v2363 = vshrl.u32 %v2362, 7
        %v2364 = vsub.s32 0, %v2363
        %v2365 = vrot.slane %v2355, %v2364
        %v2366 = vlaneseq
        %v2367 = vshrl.u32 %v2366, 7
        %v2368 = vsub.s32 0, %v2367
        %v2369 = vrot.slane %v2359, %v2368
        %v2370 = vsel %vm2025, %v2365, %v2320
        %v2371 = vsel %vm2026, %v2369, %v2321
        %v2372 = vsel %vm2027, %v2365, %v2322
        %v2373 = vsel %vm2028, %v2369, %v2323
        %v2374 = vsel %vm2029, %v2365, %v2324
        %v2375 = vsel %vm2030, %v2369, %v2325
        %v2376 = vsel %vm2031, %v2365, %v2326
        %v2377 = vsel %vm2032, %v2369, %v2327
        %v2378 = vsel %vm2033, %v2365, %v2328
        %v2379 = vsel %vm2034, %v2369, %v2329
        %v2380 = vsel %vm2035, %v2365, %v2330
        %v2381 = vsel %vm2036, %v2369, %v2331
        %v2382 = vsel %vm2037, %v2365, %v2332
        %v2383 = vsel %vm2038, %v2369, %v2333
        %v2384 = vsel %vm2039, %v2365, %v2334
        %v2385 = vsel %vm2040, %v2369, %v2335
        %v2386 = vsel %vm2041, %v2365, %v2336
        %v2387 = vsel %vm2042, %v2369, %v2337
        %v2388 = vsel %vm2043, %v2365, %v2338
        %v2389 = vsel %vm2044, %v2369, %v2339
        %v2390 = vsel %vm2045, %v2365, %v2340
        %v2391 = vsel %vm2046, %v2369, %v2341
        %v2392 = vsel %vm2047, %v2365, %v2342
        %v2393 = vsel %vm2048, %v2369, %v2343
        %v2394 = vsel %vm2049, %v2365, %v2344
        %v2395 = vsel %vm2050, %v2369, %v2345
        %v2396 = vsel %vm2051, %v2365, %v2346
        %v2397 = vsel %vm2052, %v2369, %v2347
        %v2398 = vsel %vm2053, %v2365, %v2348
        %v2399 = vsel %vm2054, %v2369, %v2349
        %v2400 = vsel %vm2055, %v2365, %v2350
        %v2401 = vsel %vm2056, %v2369, %v2351
        %v2402 = vld [vmem:[%s231 + $0x20] sm:$0xff]
        %2403 = vmatprep.subr.mxu0 %v2401
        %2404 = vmatpush1.msra.mxu0 %v2400
        %2405 = vmatprep.subr.mxu0 %v2399
        %2406 = vmatpush1.msra.mxu0 %v2398
        %2407 = vmatprep.subr.mxu0 %v2397
        %2408 = vmatpush1.msra.mxu0 %v2396
        %2409 = vmatprep.subr.mxu0 %v2395
        %2410 = vmatpush1.msra.mxu0 %v2394
        %2411 = vmatprep.subr.mxu0 %v2393
        %2412 = vmatpush1.msra.mxu0 %v2392
        %2413 = vmatprep.subr.mxu0 %v2391
        %2414 = vmatpush1.msra.mxu0 %v2390
        %2415 = vmatprep.subr.mxu0 %v2389
        %2416 = vmatpush1.msra.mxu0 %v2388
        %2417 = vmatprep.subr.mxu0 %v2387
        %2418 = vmatpush1.msra.mxu0 %v2386
        %2419 = vmatprep.subr.mxu0 %v2385
        %2420 = vmatpush1.msra.mxu0 %v2384
        %2421 = vmatprep.subr.mxu0 %v2383
        %2422 = vmatpush1.msra.mxu0 %v2382
        %2423 = vmatprep.subr.mxu0 %v2381
        %2424 = vmatpush1.msra.mxu0 %v2380
        %2425 = vmatprep.subr.mxu0 %v2379
        %2426 = vmatpush1.msra.mxu0 %v2378
        %2427 = vmatprep.subr.mxu0 %v2377
        %2428 = vmatpush1.msra.mxu0 %v2376
        %2429 = vmatprep.subr.mxu0 %v2375
        %2430 = vmatpush1.msra.mxu0 %v2374
        %2431 = vmatprep.subr.mxu0 %v2373
        %2432 = vmatpush1.msra.mxu0 %v2372
        %2433 = vmatprep.subr.mxu0 %v2371
        %2434 = vmatpush1.msra.mxu0 %v2370
        %2435 = vmatprep.subr.mxu0 0.0
        %2436 = vmatpush2.msra.mxu0 0.0
        %2437 = vmatprep.subr.mxu0 0.0
        %2438 = vmatpush2.msra.mxu0 0.0
        %2439 = vmatprep.subr.mxu0 0.0
        %2440 = vmatpush2.msra.mxu0 0.0
        %2441 = vmatprep.subr.mxu0 0.0
        %2442 = vmatpush2.msra.mxu0 0.0
        %2443 = vmatprep.subr.mxu0 0.0
        %2444 = vmatpush2.msra.mxu0 0.0
        %2445 = vmatprep.subr.mxu0 0.0
        %2446 = vmatpush2.msra.mxu0 0.0
        %2447 = vmatprep.subr.mxu0 0.0
        %2448 = vmatpush2.msra.mxu0 0.0
        %2449 = vmatprep.subr.mxu0 0.0
        %2450 = vmatpush2.msra.mxu0 0.0
        %2451 = vmatprep.subr.mxu0 0.0
        %2452 = vmatpush2.msra.mxu0 0.0
        %2453 = vmatprep.subr.mxu0 0.0
        %2454 = vmatpush2.msra.mxu0 0.0
        %2455 = vmatprep.subr.mxu0 0.0
        %2456 = vmatpush2.msra.mxu0 0.0
        %2457 = vmatprep.subr.mxu0 0.0
        %2458 = vmatpush2.msra.mxu0 0.0
        %2459 = vmatprep.subr.mxu0 0.0
        %2460 = vmatpush2.msra.mxu0 0.0
        %2461 = vmatprep.subr.mxu0 0.0
        %2462 = vmatpush2.msra.mxu0 0.0
        %2463 = vmatprep.subr.mxu0 0.0
        %2464 = vmatpush2.msra.mxu0 0.0
        %2465 = vmatprep.subr.mxu0 0.0
        %2466 = vmatpush2.msra.mxu0 0.0
        %2467 = vmatprep.mubr.f32.mxu0 0.0
        %2468 = vmatmul.mubr.f32.gmra.mxu0 %v2402
        %v2469 = vpop.f32.mrf.mxu0
        %v2470 = vadd.f32 0.0, %v2469
        %v2471 = vpop.f32.mrf.mxu0
        %v2472 = vadd.f32 0.0, %v2471
        %2473 = vdwg.mxu0
        %v2474 = vadd.f32 %v2007, %v2470
        %v2475 = vadd.f32 %v2008, %v2472
        %v2476 = vsub.s32 %v266, 128
        %v2477 = vlaneseq
        %v2478 = vshrl.u32 %v2477, 7
        %v2479 = vsub.s32 0, %v2478
        %v2480 = vrot.slane %v2476, %v2479
        %v2481 = vlaneseq
        %v2482 = vshrl.u32 %v2481, 7
        %v2483 = vsub.s32 4, %v2482
        %v2484 = vrot.slane %v2476, %v2483
        %v2485 = vlaneseq
        %v2486 = vshrl.u32 %v2485, 7
        %v2487 = vsub.s32 0, %v2486
        %v2488 = vrot.slane %v2480, %v2487
        %v2489 = vlaneseq
        %v2490 = vshrl.u32 %v2489, 7
        %v2491 = vsub.s32 0, %v2490
        %v2492 = vrot.slane %v2484, %v2491
        %vm2493 = vcmp.eq.s32.totalorder %v273, %v2488
        %vm2494 = vcmp.eq.s32.totalorder %v273, %v2492
        %vm2495 = vcmp.eq.s32.totalorder %v274, %v2488
        %vm2496 = vcmp.eq.s32.totalorder %v274, %v2492
        %vm2497 = vcmp.eq.s32.totalorder %v275, %v2488
        %vm2498 = vcmp.eq.s32.totalorder %v275, %v2492
        %vm2499 = vcmp.eq.s32.totalorder %v276, %v2488
        %vm2500 = vcmp.eq.s32.totalorder %v276, %v2492
        %vm2501 = vcmp.eq.s32.totalorder %v277, %v2488
        %vm2502 = vcmp.eq.s32.totalorder %v277, %v2492
        %vm2503 = vcmp.eq.s32.totalorder %v278, %v2488
        %vm2504 = vcmp.eq.s32.totalorder %v278, %v2492
        %vm2505 = vcmp.eq.s32.totalorder %v279, %v2488
        %vm2506 = vcmp.eq.s32.totalorder %v279, %v2492
        %vm2507 = vcmp.eq.s32.totalorder %v280, %v2488
        %vm2508 = vcmp.eq.s32.totalorder %v280, %v2492
        %vm2509 = vcmp.eq.s32.totalorder %v281, %v2488
        %vm2510 = vcmp.eq.s32.totalorder %v281, %v2492
        %vm2511 = vcmp.eq.s32.totalorder %v282, %v2488
        %vm2512 = vcmp.eq.s32.totalorder %v282, %v2492
        %vm2513 = vcmp.eq.s32.totalorder %v283, %v2488
        %vm2514 = vcmp.eq.s32.totalorder %v283, %v2492
        %vm2515 = vcmp.eq.s32.totalorder %v284, %v2488
        %vm2516 = vcmp.eq.s32.totalorder %v284, %v2492
        %vm2517 = vcmp.eq.s32.totalorder %v285, %v2488
        %vm2518 = vcmp.eq.s32.totalorder %v285, %v2492
        %vm2519 = vcmp.eq.s32.totalorder %v286, %v2488
        %vm2520 = vcmp.eq.s32.totalorder %v286, %v2492
        %vm2521 = vcmp.eq.s32.totalorder %v287, %v2488
        %vm2522 = vcmp.eq.s32.totalorder %v287, %v2492
        %vm2523 = vcmp.eq.s32.totalorder %v288, %v2488
        %vm2524 = vcmp.eq.s32.totalorder %v288, %v2492
        %v2525 = vlaneseq
        %v2526 = vshrl.u32 %v2525, 7
        %v2527 = vsub.s32 1, %v2526
        %v2528 = vrot.slane %v2476, %v2527
        %v2529 = vlaneseq
        %v2530 = vshrl.u32 %v2529, 7
        %v2531 = vsub.s32 5, %v2530
        %v2532 = vrot.slane %v2476, %v2531
        %v2533 = vlaneseq
        %v2534 = vshrl.u32 %v2533, 7
        %v2535 = vsub.s32 1, %v2534
        %v2536 = vrot.slane %v2528, %v2535
        %v2537 = vlaneseq
        %v2538 = vshrl.u32 %v2537, 7
        %v2539 = vsub.s32 1, %v2538
        %v2540 = vrot.slane %v2532, %v2539
        %vm2541 = vcmp.eq.s32.totalorder %v273, %v2536
        %vm2542 = vcmp.eq.s32.totalorder %v273, %v2540
        %vm2543 = vcmp.eq.s32.totalorder %v274, %v2536
        %vm2544 = vcmp.eq.s32.totalorder %v274, %v2540
        %vm2545 = vcmp.eq.s32.totalorder %v275, %v2536
        %vm2546 = vcmp.eq.s32.totalorder %v275, %v2540
        %vm2547 = vcmp.eq.s32.totalorder %v276, %v2536
        %vm2548 = vcmp.eq.s32.totalorder %v276, %v2540
        %vm2549 = vcmp.eq.s32.totalorder %v277, %v2536
        %vm2550 = vcmp.eq.s32.totalorder %v277, %v2540
        %vm2551 = vcmp.eq.s32.totalorder %v278, %v2536
        %vm2552 = vcmp.eq.s32.totalorder %v278, %v2540
        %vm2553 = vcmp.eq.s32.totalorder %v279, %v2536
        %vm2554 = vcmp.eq.s32.totalorder %v279, %v2540
        %vm2555 = vcmp.eq.s32.totalorder %v280, %v2536
        %vm2556 = vcmp.eq.s32.totalorder %v280, %v2540
        %vm2557 = vcmp.eq.s32.totalorder %v281, %v2536
        %vm2558 = vcmp.eq.s32.totalorder %v281, %v2540
        %vm2559 = vcmp.eq.s32.totalorder %v282, %v2536
        %vm2560 = vcmp.eq.s32.totalorder %v282, %v2540
        %vm2561 = vcmp.eq.s32.totalorder %v283, %v2536
        %vm2562 = vcmp.eq.s32.totalorder %v283, %v2540
        %vm2563 = vcmp.eq.s32.totalorder %v284, %v2536
        %vm2564 = vcmp.eq.s32.totalorder %v284, %v2540
        %vm2565 = vcmp.eq.s32.totalorder %v285, %v2536
        %vm2566 = vcmp.eq.s32.totalorder %v285, %v2540
        %vm2567 = vcmp.eq.s32.totalorder %v286, %v2536
        %vm2568 = vcmp.eq.s32.totalorder %v286, %v2540
        %vm2569 = vcmp.eq.s32.totalorder %v287, %v2536
        %vm2570 = vcmp.eq.s32.totalorder %v287, %v2540
        %vm2571 = vcmp.eq.s32.totalorder %v288, %v2536
        %vm2572 = vcmp.eq.s32.totalorder %v288, %v2540
        %v2573 = vlaneseq
        %v2574 = vshrl.u32 %v2573, 7
        %v2575 = vsub.s32 2, %v2574
        %v2576 = vrot.slane %v2476, %v2575
        %v2577 = vlaneseq
        %v2578 = vshrl.u32 %v2577, 7
        %v2579 = vsub.s32 6, %v2578
        %v2580 = vrot.slane %v2476, %v2579
        %v2581 = vlaneseq
        %v2582 = vshrl.u32 %v2581, 7
        %v2583 = vsub.s32 2, %v2582
        %v2584 = vrot.slane %v2576, %v2583
        %v2585 = vlaneseq
        %v2586 = vshrl.u32 %v2585, 7
        %v2587 = vsub.s32 2, %v2586
        %v2588 = vrot.slane %v2580, %v2587
        %vm2589 = vcmp.eq.s32.totalorder %v273, %v2584
        %vm2590 = vcmp.eq.s32.totalorder %v273, %v2588
        %vm2591 = vcmp.eq.s32.totalorder %v274, %v2584
        %vm2592 = vcmp.eq.s32.totalorder %v274, %v2588
        %vm2593 = vcmp.eq.s32.totalorder %v275, %v2584
        %vm2594 = vcmp.eq.s32.totalorder %v275, %v2588
        %vm2595 = vcmp.eq.s32.totalorder %v276, %v2584
        %vm2596 = vcmp.eq.s32.totalorder %v276, %v2588
        %vm2597 = vcmp.eq.s32.totalorder %v277, %v2584
        %vm2598 = vcmp.eq.s32.totalorder %v277, %v2588
        %vm2599 = vcmp.eq.s32.totalorder %v278, %v2584
        %vm2600 = vcmp.eq.s32.totalorder %v278, %v2588
        %vm2601 = vcmp.eq.s32.totalorder %v279, %v2584
        %vm2602 = vcmp.eq.s32.totalorder %v279, %v2588
        %vm2603 = vcmp.eq.s32.totalorder %v280, %v2584
        %vm2604 = vcmp.eq.s32.totalorder %v280, %v2588
        %vm2605 = vcmp.eq.s32.totalorder %v281, %v2584
        %vm2606 = vcmp.eq.s32.totalorder %v281, %v2588
        %vm2607 = vcmp.eq.s32.totalorder %v282, %v2584
        %vm2608 = vcmp.eq.s32.totalorder %v282, %v2588
        %vm2609 = vcmp.eq.s32.totalorder %v283, %v2584
        %vm2610 = vcmp.eq.s32.totalorder %v283, %v2588
        %vm2611 = vcmp.eq.s32.totalorder %v284, %v2584
        %vm2612 = vcmp.eq.s32.totalorder %v284, %v2588
        %vm2613 = vcmp.eq.s32.totalorder %v285, %v2584
        %vm2614 = vcmp.eq.s32.totalorder %v285, %v2588
        %vm2615 = vcmp.eq.s32.totalorder %v286, %v2584
        %vm2616 = vcmp.eq.s32.totalorder %v286, %v2588
        %vm2617 = vcmp.eq.s32.totalorder %v287, %v2584
        %vm2618 = vcmp.eq.s32.totalorder %v287, %v2588
        %vm2619 = vcmp.eq.s32.totalorder %v288, %v2584
        %vm2620 = vcmp.eq.s32.totalorder %v288, %v2588
        %v2621 = vlaneseq
        %v2622 = vshrl.u32 %v2621, 7
        %v2623 = vsub.s32 3, %v2622
        %v2624 = vrot.slane %v2476, %v2623
        %v2625 = vlaneseq
        %v2626 = vshrl.u32 %v2625, 7
        %v2627 = vsub.s32 7, %v2626
        %v2628 = vrot.slane %v2476, %v2627
        %v2629 = vlaneseq
        %v2630 = vshrl.u32 %v2629, 7
        %v2631 = vsub.s32 3, %v2630
        %v2632 = vrot.slane %v2624, %v2631
        %v2633 = vlaneseq
        %v2634 = vshrl.u32 %v2633, 7
        %v2635 = vsub.s32 3, %v2634
        %v2636 = vrot.slane %v2628, %v2635
        %vm2637 = vcmp.eq.s32.totalorder %v273, %v2632
        %vm2638 = vcmp.eq.s32.totalorder %v273, %v2636
        %vm2639 = vcmp.eq.s32.totalorder %v274, %v2632
        %vm2640 = vcmp.eq.s32.totalorder %v274, %v2636
        %vm2641 = vcmp.eq.s32.totalorder %v275, %v2632
        %vm2642 = vcmp.eq.s32.totalorder %v275, %v2636
        %vm2643 = vcmp.eq.s32.totalorder %v276, %v2632
        %vm2644 = vcmp.eq.s32.totalorder %v276, %v2636
        %vm2645 = vcmp.eq.s32.totalorder %v277, %v2632
        %vm2646 = vcmp.eq.s32.totalorder %v277, %v2636
        %vm2647 = vcmp.eq.s32.totalorder %v278, %v2632
        %vm2648 = vcmp.eq.s32.totalorder %v278, %v2636
        %vm2649 = vcmp.eq.s32.totalorder %v279, %v2632
        %vm2650 = vcmp.eq.s32.totalorder %v279, %v2636
        %vm2651 = vcmp.eq.s32.totalorder %v280, %v2632
        %vm2652 = vcmp.eq.s32.totalorder %v280, %v2636
        %vm2653 = vcmp.eq.s32.totalorder %v281, %v2632
        %vm2654 = vcmp.eq.s32.totalorder %v281, %v2636
        %vm2655 = vcmp.eq.s32.totalorder %v282, %v2632
        %vm2656 = vcmp.eq.s32.totalorder %v282, %v2636
        %vm2657 = vcmp.eq.s32.totalorder %v283, %v2632
        %vm2658 = vcmp.eq.s32.totalorder %v283, %v2636
        %vm2659 = vcmp.eq.s32.totalorder %v284, %v2632
        %vm2660 = vcmp.eq.s32.totalorder %v284, %v2636
        %vm2661 = vcmp.eq.s32.totalorder %v285, %v2632
        %vm2662 = vcmp.eq.s32.totalorder %v285, %v2636
        %vm2663 = vcmp.eq.s32.totalorder %v286, %v2632
        %vm2664 = vcmp.eq.s32.totalorder %v286, %v2636
        %vm2665 = vcmp.eq.s32.totalorder %v287, %v2632
        %vm2666 = vcmp.eq.s32.totalorder %v287, %v2636
        %vm2667 = vcmp.eq.s32.totalorder %v288, %v2632
        %vm2668 = vcmp.eq.s32.totalorder %v288, %v2636
        %v2669 = vsel %vm2637, %v2215, 0.0
        %v2670 = vsel %vm2638, %v2219, 0.0
        %v2671 = vsel %vm2639, %v2215, 0.0
        %v2672 = vsel %vm2640, %v2219, 0.0
        %v2673 = vsel %vm2641, %v2215, 0.0
        %v2674 = vsel %vm2642, %v2219, 0.0
        %v2675 = vsel %vm2643, %v2215, 0.0
        %v2676 = vsel %vm2644, %v2219, 0.0
        %v2677 = vsel %vm2645, %v2215, 0.0
        %v2678 = vsel %vm2646, %v2219, 0.0
        %v2679 = vsel %vm2647, %v2215, 0.0
        %v2680 = vsel %vm2648, %v2219, 0.0
        %v2681 = vsel %vm2649, %v2215, 0.0
        %v2682 = vsel %vm2650, %v2219, 0.0
        %v2683 = vsel %vm2651, %v2215, 0.0
        %v2684 = vsel %vm2652, %v2219, 0.0
        %v2685 = vsel %vm2653, %v2215, 0.0
        %v2686 = vsel %vm2654, %v2219, 0.0
        %v2687 = vsel %vm2655, %v2215, 0.0
        %v2688 = vsel %vm2656, %v2219, 0.0
        %v2689 = vsel %vm2657, %v2215, 0.0
        %v2690 = vsel %vm2658, %v2219, 0.0
        %v2691 = vsel %vm2659, %v2215, 0.0
        %v2692 = vsel %vm2660, %v2219, 0.0
        %v2693 = vsel %vm2661, %v2215, 0.0
        %v2694 = vsel %vm2662, %v2219, 0.0
        %v2695 = vsel %vm2663, %v2215, 0.0
        %v2696 = vsel %vm2664, %v2219, 0.0
        %v2697 = vsel %vm2665, %v2215, 0.0
        %v2698 = vsel %vm2666, %v2219, 0.0
        %v2699 = vsel %vm2667, %v2215, 0.0
        %v2700 = vsel %vm2668, %v2219, 0.0
        %v2701 = vsel %vm2589, %v2265, %v2669
        %v2702 = vsel %vm2590, %v2269, %v2670
        %v2703 = vsel %vm2591, %v2265, %v2671
        %v2704 = vsel %vm2592, %v2269, %v2672
        %v2705 = vsel %vm2593, %v2265, %v2673
        %v2706 = vsel %vm2594, %v2269, %v2674
        %v2707 = vsel %vm2595, %v2265, %v2675
        %v2708 = vsel %vm2596, %v2269, %v2676
        %v2709 = vsel %vm2597, %v2265, %v2677
        %v2710 = vsel %vm2598, %v2269, %v2678
        %v2711 = vsel %vm2599, %v2265, %v2679
        %v2712 = vsel %vm2600, %v2269, %v2680
        %v2713 = vsel %vm2601, %v2265, %v2681
        %v2714 = vsel %vm2602, %v2269, %v2682
        %v2715 = vsel %vm2603, %v2265, %v2683
        %v2716 = vsel %vm2604, %v2269, %v2684
        %v2717 = vsel %vm2605, %v2265, %v2685
        %v2718 = vsel %vm2606, %v2269, %v2686
        %v2719 = vsel %vm2607, %v2265, %v2687
        %v2720 = vsel %vm2608, %v2269, %v2688
        %v2721 = vsel %vm2609, %v2265, %v2689
        %v2722 = vsel %vm2610, %v2269, %v2690
        %v2723 = vsel %vm2611, %v2265, %v2691
        %v2724 = vsel %vm2612, %v2269, %v2692
        %v2725 = vsel %vm2613, %v2265, %v2693
        %v2726 = vsel %vm2614, %v2269, %v2694
        %v2727 = vsel %vm2615, %v2265, %v2695
        %v2728 = vsel %vm2616, %v2269, %v2696
        %v2729 = vsel %vm2617, %v2265, %v2697
        %v2730 = vsel %vm2618, %v2269, %v2698
        %v2731 = vsel %vm2619, %v2265, %v2699
        %v2732 = vsel %vm2620, %v2269, %v2700
        %v2733 = vsel %vm2541, %v2315, %v2701
        %v2734 = vsel %vm2542, %v2319, %v2702
        %v2735 = vsel %vm2543, %v2315, %v2703
        %v2736 = vsel %vm2544, %v2319, %v2704
        %v2737 = vsel %vm2545, %v2315, %v2705
        %v2738 = vsel %vm2546, %v2319, %v2706
        %v2739 = vsel %vm2547, %v2315, %v2707
        %v2740 = vsel %vm2548, %v2319, %v2708
        %v2741 = vsel %vm2549, %v2315, %v2709
        %v2742 = vsel %vm2550, %v2319, %v2710
        %v2743 = vsel %vm2551, %v2315, %v2711
        %v2744 = vsel %vm2552, %v2319, %v2712
        %v2745 = vsel %vm2553, %v2315, %v2713
        %v2746 = vsel %vm2554, %v2319, %v2714
        %v2747 = vsel %vm2555, %v2315, %v2715
        %v2748 = vsel %vm2556, %v2319, %v2716
        %v2749 = vsel %vm2557, %v2315, %v2717
        %v2750 = vsel %vm2558, %v2319, %v2718
        %v2751 = vsel %vm2559, %v2315, %v2719
        %v2752 = vsel %vm2560, %v2319, %v2720
        %v2753 = vsel %vm2561, %v2315, %v2721
        %v2754 = vsel %vm2562, %v2319, %v2722
        %v2755 = vsel %vm2563, %v2315, %v2723
        %v2756 = vsel %vm2564, %v2319, %v2724
        %v2757 = vsel %vm2565, %v2315, %v2725
        %v2758 = vsel %vm2566, %v2319, %v2726
        %v2759 = vsel %vm2567, %v2315, %v2727
        %v2760 = vsel %vm2568, %v2319, %v2728
        %v2761 = vsel %vm2569, %v2315, %v2729
        %v2762 = vsel %vm2570, %v2319, %v2730
        %v2763 = vsel %vm2571, %v2315, %v2731
        %v2764 = vsel %vm2572, %v2319, %v2732
        %v2765 = vsel %vm2493, %v2365, %v2733
        %v2766 = vsel %vm2494, %v2369, %v2734
        %v2767 = vsel %vm2495, %v2365, %v2735
        %v2768 = vsel %vm2496, %v2369, %v2736
        %v2769 = vsel %vm2497, %v2365, %v2737
        %v2770 = vsel %vm2498, %v2369, %v2738
        %v2771 = vsel %vm2499, %v2365, %v2739
        %v2772 = vsel %vm2500, %v2369, %v2740
        %v2773 = vsel %vm2501, %v2365, %v2741
        %v2774 = vsel %vm2502, %v2369, %v2742
        %v2775 = vsel %vm2503, %v2365, %v2743
        %v2776 = vsel %vm2504, %v2369, %v2744
        %v2777 = vsel %vm2505, %v2365, %v2745
        %v2778 = vsel %vm2506, %v2369, %v2746
        %v2779 = vsel %vm2507, %v2365, %v2747
        %v2780 = vsel %vm2508, %v2369, %v2748
        %v2781 = vsel %vm2509, %v2365, %v2749
        %v2782 = vsel %vm2510, %v2369, %v2750
        %v2783 = vsel %vm2511, %v2365, %v2751
        %v2784 = vsel %vm2512, %v2369, %v2752
        %v2785 = vsel %vm2513, %v2365, %v2753
        %v2786 = vsel %vm2514, %v2369, %v2754
        %v2787 = vsel %vm2515, %v2365, %v2755
        %v2788 = vsel %vm2516, %v2369, %v2756
        %v2789 = vsel %vm2517, %v2365, %v2757
        %v2790 = vsel %vm2518, %v2369, %v2758
        %v2791 = vsel %vm2519, %v2365, %v2759
        %v2792 = vsel %vm2520, %v2369, %v2760
        %v2793 = vsel %vm2521, %v2365, %v2761
        %v2794 = vsel %vm2522, %v2369, %v2762
        %v2795 = vsel %vm2523, %v2365, %v2763
        %v2796 = vsel %vm2524, %v2369, %v2764
        %v2797 = vld [vmem:[%s231 + $0x28] sm:$0xff]
        %2798 = vmatprep.subr.mxu0 %v2796
        %2799 = vmatpush1.msra.mxu0 %v2795
        %2800 = vmatprep.subr.mxu0 %v2794
        %2801 = vmatpush1.msra.mxu0 %v2793
        %2802 = vmatprep.subr.mxu0 %v2792
        %2803 = vmatpush1.msra.mxu0 %v2791
        %2804 = vmatprep.subr.mxu0 %v2790
        %2805 = vmatpush1.msra.mxu0 %v2789
        %2806 = vmatprep.subr.mxu0 %v2788
        %2807 = vmatpush1.msra.mxu0 %v2787
        %2808 = vmatprep.subr.mxu0 %v2786
        %2809 = vmatpush1.msra.mxu0 %v2785
        %2810 = vmatprep.subr.mxu0 %v2784
        %2811 = vmatpush1.msra.mxu0 %v2783
        %2812 = vmatprep.subr.mxu0 %v2782
        %2813 = vmatpush1.msra.mxu0 %v2781
        %2814 = vmatprep.subr.mxu0 %v2780
        %2815 = vmatpush1.msra.mxu0 %v2779
        %2816 = vmatprep.subr.mxu0 %v2778
        %2817 = vmatpush1.msra.mxu0 %v2777
        %2818 = vmatprep.subr.mxu0 %v2776
        %2819 = vmatpush1.msra.mxu0 %v2775
        %2820 = vmatprep.subr.mxu0 %v2774
        %2821 = vmatpush1.msra.mxu0 %v2773
        %2822 = vmatprep.subr.mxu0 %v2772
        %2823 = vmatpush1.msra.mxu0 %v2771
        %2824 = vmatprep.subr.mxu0 %v2770
        %2825 = vmatpush1.msra.mxu0 %v2769
        %2826 = vmatprep.subr.mxu0 %v2768
        %2827 = vmatpush1.msra.mxu0 %v2767
        %2828 = vmatprep.subr.mxu0 %v2766
        %2829 = vmatpush1.msra.mxu0 %v2765
        %2830 = vmatprep.subr.mxu0 0.0
        %2831 = vmatpush2.msra.mxu0 0.0
        %2832 = vmatprep.subr.mxu0 0.0
        %2833 = vmatpush2.msra.mxu0 0.0
        %2834 = vmatprep.subr.mxu0 0.0
        %2835 = vmatpush2.msra.mxu0 0.0
        %2836 = vmatprep.subr.mxu0 0.0
        %2837 = vmatpush2.msra.mxu0 0.0
        %2838 = vmatprep.subr.mxu0 0.0
        %2839 = vmatpush2.msra.mxu0 0.0
        %2840 = vmatprep.subr.mxu0 0.0
        %2841 = vmatpush2.msra.mxu0 0.0
        %2842 = vmatprep.subr.mxu0 0.0
        %2843 = vmatpush2.msra.mxu0 0.0
        %2844 = vmatprep.subr.mxu0 0.0
        %2845 = vmatpush2.msra.mxu0 0.0
        %2846 = vmatprep.subr.mxu0 0.0
        %2847 = vmatpush2.msra.mxu0 0.0
        %2848 = vmatprep.subr.mxu0 0.0
        %2849 = vmatpush2.msra.mxu0 0.0
        %2850 = vmatprep.subr.mxu0 0.0
        %2851 = vmatpush2.msra.mxu0 0.0
        %2852 = vmatprep.subr.mxu0 0.0
        %2853 = vmatpush2.msra.mxu0 0.0
        %2854 = vmatprep.subr.mxu0 0.0
        %2855 = vmatpush2.msra.mxu0 0.0
        %2856 = vmatprep.subr.mxu0 0.0
        %2857 = vmatpush2.msra.mxu0 0.0
        %2858 = vmatprep.subr.mxu0 0.0
        %2859 = vmatpush2.msra.mxu0 0.0
        %2860 = vmatprep.subr.mxu0 0.0
        %2861 = vmatpush2.msra.mxu0 0.0
        %2862 = vmatprep.mubr.f32.mxu0 0.0
        %2863 = vmatmul.mubr.f32.gmra.mxu0 %v2797
        %v2864 = vpop.f32.mrf.mxu0
        %v2865 = vadd.f32 0.0, %v2864
        %v2866 = vpop.f32.mrf.mxu0
        %v2867 = vadd.f32 0.0, %v2866
        %2868 = vdwg.mxu0
        %v2869 = vadd.f32 %v2474, %v2865
        %v2870 = vadd.f32 %v2475, %v2867
        %v2871 = vlaneseq
        %v2872 = vshrl.u32 %v2871, 7
        %v2873 = vsub.s32 0, %v2872
        %v2874 = vrot.slane %v267, %v2873
        %v2875 = vlaneseq
        %v2876 = vshrl.u32 %v2875, 7
        %v2877 = vsub.s32 4, %v2876
        %v2878 = vrot.slane %v267, %v2877
        %v2879 = vlaneseq
        %v2880 = vshrl.u32 %v2879, 7
        %v2881 = vsub.s32 0, %v2880
        %v2882 = vrot.slane %v2874, %v2881
        %v2883 = vlaneseq
        %v2884 = vshrl.u32 %v2883, 7
        %v2885 = vsub.s32 0, %v2884
        %v2886 = vrot.slane %v2878, %v2885
        %vm2887 = vcmp.eq.s32.totalorder %v273, %v2882
        %vm2888 = vcmp.eq.s32.totalorder %v273, %v2886
        %vm2889 = vcmp.eq.s32.totalorder %v274, %v2882
        %vm2890 = vcmp.eq.s32.totalorder %v274, %v2886
        %vm2891 = vcmp.eq.s32.totalorder %v275, %v2882
        %vm2892 = vcmp.eq.s32.totalorder %v275, %v2886
        %vm2893 = vcmp.eq.s32.totalorder %v276, %v2882
        %vm2894 = vcmp.eq.s32.totalorder %v276, %v2886
        %vm2895 = vcmp.eq.s32.totalorder %v277, %v2882
        %vm2896 = vcmp.eq.s32.totalorder %v277, %v2886
        %vm2897 = vcmp.eq.s32.totalorder %v278, %v2882
        %vm2898 = vcmp.eq.s32.totalorder %v278, %v2886
        %vm2899 = vcmp.eq.s32.totalorder %v279, %v2882
        %vm2900 = vcmp.eq.s32.totalorder %v279, %v2886
        %vm2901 = vcmp.eq.s32.totalorder %v280, %v2882
        %vm2902 = vcmp.eq.s32.totalorder %v280, %v2886
        %vm2903 = vcmp.eq.s32.totalorder %v281, %v2882
        %vm2904 = vcmp.eq.s32.totalorder %v281, %v2886
        %vm2905 = vcmp.eq.s32.totalorder %v282, %v2882
        %vm2906 = vcmp.eq.s32.totalorder %v282, %v2886
        %vm2907 = vcmp.eq.s32.totalorder %v283, %v2882
        %vm2908 = vcmp.eq.s32.totalorder %v283, %v2886
        %vm2909 = vcmp.eq.s32.totalorder %v284, %v2882
        %vm2910 = vcmp.eq.s32.totalorder %v284, %v2886
        %vm2911 = vcmp.eq.s32.totalorder %v285, %v2882
        %vm2912 = vcmp.eq.s32.totalorder %v285, %v2886
        %vm2913 = vcmp.eq.s32.totalorder %v286, %v2882
        %vm2914 = vcmp.eq.s32.totalorder %v286, %v2886
        %vm2915 = vcmp.eq.s32.totalorder %v287, %v2882
        %vm2916 = vcmp.eq.s32.totalorder %v287, %v2886
        %vm2917 = vcmp.eq.s32.totalorder %v288, %v2882
        %vm2918 = vcmp.eq.s32.totalorder %v288, %v2886
        %v2919 = vlaneseq
        %v2920 = vshrl.u32 %v2919, 7
        %v2921 = vsub.s32 1, %v2920
        %v2922 = vrot.slane %v267, %v2921
        %v2923 = vlaneseq
        %v2924 = vshrl.u32 %v2923, 7
        %v2925 = vsub.s32 5, %v2924
        %v2926 = vrot.slane %v267, %v2925
        %v2927 = vlaneseq
        %v2928 = vshrl.u32 %v2927, 7
        %v2929 = vsub.s32 1, %v2928
        %v2930 = vrot.slane %v2922, %v2929
        %v2931 = vlaneseq
        %v2932 = vshrl.u32 %v2931, 7
        %v2933 = vsub.s32 1, %v2932
        %v2934 = vrot.slane %v2926, %v2933
        %vm2935 = vcmp.eq.s32.totalorder %v273, %v2930
        %vm2936 = vcmp.eq.s32.totalorder %v273, %v2934
        %vm2937 = vcmp.eq.s32.totalorder %v274, %v2930
        %vm2938 = vcmp.eq.s32.totalorder %v274, %v2934
        %vm2939 = vcmp.eq.s32.totalorder %v275, %v2930
        %vm2940 = vcmp.eq.s32.totalorder %v275, %v2934
        %vm2941 = vcmp.eq.s32.totalorder %v276, %v2930
        %vm2942 = vcmp.eq.s32.totalorder %v276, %v2934
        %vm2943 = vcmp.eq.s32.totalorder %v277, %v2930
        %vm2944 = vcmp.eq.s32.totalorder %v277, %v2934
        %vm2945 = vcmp.eq.s32.totalorder %v278, %v2930
        %vm2946 = vcmp.eq.s32.totalorder %v278, %v2934
        %vm2947 = vcmp.eq.s32.totalorder %v279, %v2930
        %vm2948 = vcmp.eq.s32.totalorder %v279, %v2934
        %vm2949 = vcmp.eq.s32.totalorder %v280, %v2930
        %vm2950 = vcmp.eq.s32.totalorder %v280, %v2934
        %vm2951 = vcmp.eq.s32.totalorder %v281, %v2930
        %vm2952 = vcmp.eq.s32.totalorder %v281, %v2934
        %vm2953 = vcmp.eq.s32.totalorder %v282, %v2930
        %vm2954 = vcmp.eq.s32.totalorder %v282, %v2934
        %vm2955 = vcmp.eq.s32.totalorder %v283, %v2930
        %vm2956 = vcmp.eq.s32.totalorder %v283, %v2934
        %vm2957 = vcmp.eq.s32.totalorder %v284, %v2930
        %vm2958 = vcmp.eq.s32.totalorder %v284, %v2934
        %vm2959 = vcmp.eq.s32.totalorder %v285, %v2930
        %vm2960 = vcmp.eq.s32.totalorder %v285, %v2934
        %vm2961 = vcmp.eq.s32.totalorder %v286, %v2930
        %vm2962 = vcmp.eq.s32.totalorder %v286, %v2934
        %vm2963 = vcmp.eq.s32.totalorder %v287, %v2930
        %vm2964 = vcmp.eq.s32.totalorder %v287, %v2934
        %vm2965 = vcmp.eq.s32.totalorder %v288, %v2930
        %vm2966 = vcmp.eq.s32.totalorder %v288, %v2934
        %v2967 = vlaneseq
        %v2968 = vshrl.u32 %v2967, 7
        %v2969 = vsub.s32 2, %v2968
        %v2970 = vrot.slane %v267, %v2969
        %v2971 = vlaneseq
        %v2972 = vshrl.u32 %v2971, 7
        %v2973 = vsub.s32 6, %v2972
        %v2974 = vrot.slane %v267, %v2973
        %v2975 = vlaneseq
        %v2976 = vshrl.u32 %v2975, 7
        %v2977 = vsub.s32 2, %v2976
        %v2978 = vrot.slane %v2970, %v2977
        %v2979 = vlaneseq
        %v2980 = vshrl.u32 %v2979, 7
        %v2981 = vsub.s32 2, %v2980
        %v2982 = vrot.slane %v2974, %v2981
        %vm2983 = vcmp.eq.s32.totalorder %v273, %v2978
        %vm2984 = vcmp.eq.s32.totalorder %v273, %v2982
        %vm2985 = vcmp.eq.s32.totalorder %v274, %v2978
        %vm2986 = vcmp.eq.s32.totalorder %v274, %v2982
        %vm2987 = vcmp.eq.s32.totalorder %v275, %v2978
        %vm2988 = vcmp.eq.s32.totalorder %v275, %v2982
        %vm2989 = vcmp.eq.s32.totalorder %v276, %v2978
        %vm2990 = vcmp.eq.s32.totalorder %v276, %v2982
        %vm2991 = vcmp.eq.s32.totalorder %v277, %v2978
        %vm2992 = vcmp.eq.s32.totalorder %v277, %v2982
        %vm2993 = vcmp.eq.s32.totalorder %v278, %v2978
        %vm2994 = vcmp.eq.s32.totalorder %v278, %v2982
        %vm2995 = vcmp.eq.s32.totalorder %v279, %v2978
        %vm2996 = vcmp.eq.s32.totalorder %v279, %v2982
        %vm2997 = vcmp.eq.s32.totalorder %v280, %v2978
        %vm2998 = vcmp.eq.s32.totalorder %v280, %v2982
        %vm2999 = vcmp.eq.s32.totalorder %v281, %v2978
        %vm3000 = vcmp.eq.s32.totalorder %v281, %v2982
        %vm3001 = vcmp.eq.s32.totalorder %v282, %v2978
        %vm3002 = vcmp.eq.s32.totalorder %v282, %v2982
        %vm3003 = vcmp.eq.s32.totalorder %v283, %v2978
        %vm3004 = vcmp.eq.s32.totalorder %v283, %v2982
        %vm3005 = vcmp.eq.s32.totalorder %v284, %v2978
        %vm3006 = vcmp.eq.s32.totalorder %v284, %v2982
        %vm3007 = vcmp.eq.s32.totalorder %v285, %v2978
        %vm3008 = vcmp.eq.s32.totalorder %v285, %v2982
        %vm3009 = vcmp.eq.s32.totalorder %v286, %v2978
        %vm3010 = vcmp.eq.s32.totalorder %v286, %v2982
        %vm3011 = vcmp.eq.s32.totalorder %v287, %v2978
        %vm3012 = vcmp.eq.s32.totalorder %v287, %v2982
        %vm3013 = vcmp.eq.s32.totalorder %v288, %v2978
        %vm3014 = vcmp.eq.s32.totalorder %v288, %v2982
        %v3015 = vlaneseq
        %v3016 = vshrl.u32 %v3015, 7
        %v3017 = vsub.s32 3, %v3016
        %v3018 = vrot.slane %v267, %v3017
        %v3019 = vlaneseq
        %v3020 = vshrl.u32 %v3019, 7
        %v3021 = vsub.s32 7, %v3020
        %v3022 = vrot.slane %v267, %v3021
        %v3023 = vlaneseq
        %v3024 = vshrl.u32 %v3023, 7
        %v3025 = vsub.s32 3, %v3024
        %v3026 = vrot.slane %v3018, %v3025
        %v3027 = vlaneseq
        %v3028 = vshrl.u32 %v3027, 7
        %v3029 = vsub.s32 3, %v3028
        %v3030 = vrot.slane %v3022, %v3029
        %vm3031 = vcmp.eq.s32.totalorder %v273, %v3026
        %vm3032 = vcmp.eq.s32.totalorder %v273, %v3030
        %vm3033 = vcmp.eq.s32.totalorder %v274, %v3026
        %vm3034 = vcmp.eq.s32.totalorder %v274, %v3030
        %vm3035 = vcmp.eq.s32.totalorder %v275, %v3026
        %vm3036 = vcmp.eq.s32.totalorder %v275, %v3030
        %vm3037 = vcmp.eq.s32.totalorder %v276, %v3026
        %vm3038 = vcmp.eq.s32.totalorder %v276, %v3030
        %vm3039 = vcmp.eq.s32.totalorder %v277, %v3026
        %vm3040 = vcmp.eq.s32.totalorder %v277, %v3030
        %vm3041 = vcmp.eq.s32.totalorder %v278, %v3026
        %vm3042 = vcmp.eq.s32.totalorder %v278, %v3030
        %vm3043 = vcmp.eq.s32.totalorder %v279, %v3026
        %vm3044 = vcmp.eq.s32.totalorder %v279, %v3030
        %vm3045 = vcmp.eq.s32.totalorder %v280, %v3026
        %vm3046 = vcmp.eq.s32.totalorder %v280, %v3030
        %vm3047 = vcmp.eq.s32.totalorder %v281, %v3026
        %vm3048 = vcmp.eq.s32.totalorder %v281, %v3030
        %vm3049 = vcmp.eq.s32.totalorder %v282, %v3026
        %vm3050 = vcmp.eq.s32.totalorder %v282, %v3030
        %vm3051 = vcmp.eq.s32.totalorder %v283, %v3026
        %vm3052 = vcmp.eq.s32.totalorder %v283, %v3030
        %vm3053 = vcmp.eq.s32.totalorder %v284, %v3026
        %vm3054 = vcmp.eq.s32.totalorder %v284, %v3030
        %vm3055 = vcmp.eq.s32.totalorder %v285, %v3026
        %vm3056 = vcmp.eq.s32.totalorder %v285, %v3030
        %vm3057 = vcmp.eq.s32.totalorder %v286, %v3026
        %vm3058 = vcmp.eq.s32.totalorder %v286, %v3030
        %vm3059 = vcmp.eq.s32.totalorder %v287, %v3026
        %vm3060 = vcmp.eq.s32.totalorder %v287, %v3030
        %vm3061 = vcmp.eq.s32.totalorder %v288, %v3026
        %vm3062 = vcmp.eq.s32.totalorder %v288, %v3030
        %v3064 = vlaneseq
        %v3065 = vshrl.u32 %v3064, 7
        %v3066 = vsub.s32 3, %v3065
        %v3067 = vrot.slane %v271, %v3066
        %v3068 = vlaneseq
        %v3069 = vshrl.u32 %v3068, 7
        %v3070 = vsub.s32 7, %v3069
        %v3071 = vrot.slane %v271, %v3070
        %v3074 = vlaneseq
        %v3075 = vshrl.u32 %v3074, 7
        %v3076 = vsub.s32 3, %v3075
        %v3077 = vrot.slane %v3067, %v3076
        %v3078 = vlaneseq
        %v3079 = vshrl.u32 %v3078, 7
        %v3080 = vsub.s32 3, %v3079
        %v3081 = vrot.slane %v3071, %v3080
        %v3082 = vsel %vm3031, %v3077, 0.0
        %v3083 = vsel %vm3032, %v3081, 0.0
        %v3084 = vsel %vm3033, %v3077, 0.0
        %v3085 = vsel %vm3034, %v3081, 0.0
        %v3086 = vsel %vm3035, %v3077, 0.0
        %v3087 = vsel %vm3036, %v3081, 0.0
        %v3088 = vsel %vm3037, %v3077, 0.0
        %v3089 = vsel %vm3038, %v3081, 0.0
        %v3090 = vsel %vm3039, %v3077, 0.0
        %v3091 = vsel %vm3040, %v3081, 0.0
        %v3092 = vsel %vm3041, %v3077, 0.0
        %v3093 = vsel %vm3042, %v3081, 0.0
        %v3094 = vsel %vm3043, %v3077, 0.0
        %v3095 = vsel %vm3044, %v3081, 0.0
        %v3096 = vsel %vm3045, %v3077, 0.0
        %v3097 = vsel %vm3046, %v3081, 0.0
        %v3098 = vsel %vm3047, %v3077, 0.0
        %v3099 = vsel %vm3048, %v3081, 0.0
        %v3100 = vsel %vm3049, %v3077, 0.0
        %v3101 = vsel %vm3050, %v3081, 0.0
        %v3102 = vsel %vm3051, %v3077, 0.0
        %v3103 = vsel %vm3052, %v3081, 0.0
        %v3104 = vsel %vm3053, %v3077, 0.0
        %v3105 = vsel %vm3054, %v3081, 0.0
        %v3106 = vsel %vm3055, %v3077, 0.0
        %v3107 = vsel %vm3056, %v3081, 0.0
        %v3108 = vsel %vm3057, %v3077, 0.0
        %v3109 = vsel %vm3058, %v3081, 0.0
        %v3110 = vsel %vm3059, %v3077, 0.0
        %v3111 = vsel %vm3060, %v3081, 0.0
        %v3112 = vsel %vm3061, %v3077, 0.0
        %v3113 = vsel %vm3062, %v3081, 0.0
        %v3114 = vlaneseq
        %v3115 = vshrl.u32 %v3114, 7
        %v3116 = vsub.s32 2, %v3115
        %v3117 = vrot.slane %v271, %v3116
        %v3118 = vlaneseq
        %v3119 = vshrl.u32 %v3118, 7
        %v3120 = vsub.s32 6, %v3119
        %v3121 = vrot.slane %v271, %v3120
        %v3124 = vlaneseq
        %v3125 = vshrl.u32 %v3124, 7
        %v3126 = vsub.s32 2, %v3125
        %v3127 = vrot.slane %v3117, %v3126
        %v3128 = vlaneseq
        %v3129 = vshrl.u32 %v3128, 7
        %v3130 = vsub.s32 2, %v3129
        %v3131 = vrot.slane %v3121, %v3130
        %v3132 = vsel %vm2983, %v3127, %v3082
        %v3133 = vsel %vm2984, %v3131, %v3083
        %v3134 = vsel %vm2985, %v3127, %v3084
        %v3135 = vsel %vm2986, %v3131, %v3085
        %v3136 = vsel %vm2987, %v3127, %v3086
        %v3137 = vsel %vm2988, %v3131, %v3087
        %v3138 = vsel %vm2989, %v3127, %v3088
        %v3139 = vsel %vm2990, %v3131, %v3089
        %v3140 = vsel %vm2991, %v3127, %v3090
        %v3141 = vsel %vm2992, %v3131, %v3091
        %v3142 = vsel %vm2993, %v3127, %v3092
        %v3143 = vsel %vm2994, %v3131, %v3093
        %v3144 = vsel %vm2995, %v3127, %v3094
        %v3145 = vsel %vm2996, %v3131, %v3095
        %v3146 = vsel %vm2997, %v3127, %v3096
        %v3147 = vsel %vm2998, %v3131, %v3097
        %v3148 = vsel %vm2999, %v3127, %v3098
        %v3149 = vsel %vm3000, %v3131, %v3099
        %v3150 = vsel %vm3001, %v3127, %v3100
        %v3151 = vsel %vm3002, %v3131, %v3101
        %v3152 = vsel %vm3003, %v3127, %v3102
        %v3153 = vsel %vm3004, %v3131, %v3103
        %v3154 = vsel %vm3005, %v3127, %v3104
        %v3155 = vsel %vm3006, %v3131, %v3105
        %v3156 = vsel %vm3007, %v3127, %v3106
        %v3157 = vsel %vm3008, %v3131, %v3107
        %v3158 = vsel %vm3009, %v3127, %v3108
        %v3159 = vsel %vm3010, %v3131, %v3109
        %v3160 = vsel %vm3011, %v3127, %v3110
        %v3161 = vsel %vm3012, %v3131, %v3111
        %v3162 = vsel %vm3013, %v3127, %v3112
        %v3163 = vsel %vm3014, %v3131, %v3113
        %v3164 = vlaneseq
        %v3165 = vshrl.u32 %v3164, 7
        %v3166 = vsub.s32 1, %v3165
        %v3167 = vrot.slane %v271, %v3166
        %v3168 = vlaneseq
        %v3169 = vshrl.u32 %v3168, 7
        %v3170 = vsub.s32 5, %v3169
        %v3171 = vrot.slane %v271, %v3170
        %v3174 = vlaneseq
        %v3175 = vshrl.u32 %v3174, 7
        %v3176 = vsub.s32 1, %v3175
        %v3177 = vrot.slane %v3167, %v3176
        %v3178 = vlaneseq
        %v3179 = vshrl.u32 %v3178, 7
        %v3180 = vsub.s32 1, %v3179
        %v3181 = vrot.slane %v3171, %v3180
        %v3182 = vsel %vm2935, %v3177, %v3132
        %v3183 = vsel %vm2936, %v3181, %v3133
        %v3184 = vsel %vm2937, %v3177, %v3134
        %v3185 = vsel %vm2938, %v3181, %v3135
        %v3186 = vsel %vm2939, %v3177, %v3136
        %v3187 = vsel %vm2940, %v3181, %v3137
        %v3188 = vsel %vm2941, %v3177, %v3138
        %v3189 = vsel %vm2942, %v3181, %v3139
        %v3190 = vsel %vm2943, %v3177, %v3140
        %v3191 = vsel %vm2944, %v3181, %v3141
        %v3192 = vsel %vm2945, %v3177, %v3142
        %v3193 = vsel %vm2946, %v3181, %v3143
        %v3194 = vsel %vm2947, %v3177, %v3144
        %v3195 = vsel %vm2948, %v3181, %v3145
        %v3196 = vsel %vm2949, %v3177, %v3146
        %v3197 = vsel %vm2950, %v3181, %v3147
        %v3198 = vsel %vm2951, %v3177, %v3148
        %v3199 = vsel %vm2952, %v3181, %v3149
        %v3200 = vsel %vm2953, %v3177, %v3150
        %v3201 = vsel %vm2954, %v3181, %v3151
        %v3202 = vsel %vm2955, %v3177, %v3152
        %v3203 = vsel %vm2956, %v3181, %v3153
        %v3204 = vsel %vm2957, %v3177, %v3154
        %v3205 = vsel %vm2958, %v3181, %v3155
        %v3206 = vsel %vm2959, %v3177, %v3156
        %v3207 = vsel %vm2960, %v3181, %v3157
        %v3208 = vsel %vm2961, %v3177, %v3158
        %v3209 = vsel %vm2962, %v3181, %v3159
        %v3210 = vsel %vm2963, %v3177, %v3160
        %v3211 = vsel %vm2964, %v3181, %v3161
        %v3212 = vsel %vm2965, %v3177, %v3162
        %v3213 = vsel %vm2966, %v3181, %v3163
        %v3214 = vlaneseq
        %v3215 = vshrl.u32 %v3214, 7
        %v3216 = vsub.s32 0, %v3215
        %v3217 = vrot.slane %v271, %v3216
        %v3218 = vlaneseq
        %v3219 = vshrl.u32 %v3218, 7
        %v3220 = vsub.s32 4, %v3219
        %v3221 = vrot.slane %v271, %v3220
        %v3224 = vlaneseq
        %v3225 = vshrl.u32 %v3224, 7
        %v3226 = vsub.s32 0, %v3225
        %v3227 = vrot.slane %v3217, %v3226
        %v3228 = vlaneseq
        %v3229 = vshrl.u32 %v3228, 7
        %v3230 = vsub.s32 0, %v3229
        %v3231 = vrot.slane %v3221, %v3230
        %v3232 = vsel %vm2887, %v3227, %v3182
        %v3233 = vsel %vm2888, %v3231, %v3183
        %v3234 = vsel %vm2889, %v3227, %v3184
        %v3235 = vsel %vm2890, %v3231, %v3185
        %v3236 = vsel %vm2891, %v3227, %v3186
        %v3237 = vsel %vm2892, %v3231, %v3187
        %v3238 = vsel %vm2893, %v3227, %v3188
        %v3239 = vsel %vm2894, %v3231, %v3189
        %v3240 = vsel %vm2895, %v3227, %v3190
        %v3241 = vsel %vm2896, %v3231, %v3191
        %v3242 = vsel %vm2897, %v3227, %v3192
        %v3243 = vsel %vm2898, %v3231, %v3193
        %v3244 = vsel %vm2899, %v3227, %v3194
        %v3245 = vsel %vm2900, %v3231, %v3195
        %v3246 = vsel %vm2901, %v3227, %v3196
        %v3247 = vsel %vm2902, %v3231, %v3197
        %v3248 = vsel %vm2903, %v3227, %v3198
        %v3249 = vsel %vm2904, %v3231, %v3199
        %v3250 = vsel %vm2905, %v3227, %v3200
        %v3251 = vsel %vm2906, %v3231, %v3201
        %v3252 = vsel %vm2907, %v3227, %v3202
        %v3253 = vsel %vm2908, %v3231, %v3203
        %v3254 = vsel %vm2909, %v3227, %v3204
        %v3255 = vsel %vm2910, %v3231, %v3205
        %v3256 = vsel %vm2911, %v3227, %v3206
        %v3257 = vsel %vm2912, %v3231, %v3207
        %v3258 = vsel %vm2913, %v3227, %v3208
        %v3259 = vsel %vm2914, %v3231, %v3209
        %v3260 = vsel %vm2915, %v3227, %v3210
        %v3261 = vsel %vm2916, %v3231, %v3211
        %v3262 = vsel %vm2917, %v3227, %v3212
        %v3263 = vsel %vm2918, %v3231, %v3213
        %v3264 = vld [vmem:[%s231 + $0x30] sm:$0xff]
        %3265 = vmatprep.subr.mxu0 %v3263
        %3266 = vmatpush1.msra.mxu0 %v3262
        %3267 = vmatprep.subr.mxu0 %v3261
        %3268 = vmatpush1.msra.mxu0 %v3260
        %3269 = vmatprep.subr.mxu0 %v3259
        %3270 = vmatpush1.msra.mxu0 %v3258
        %3271 = vmatprep.subr.mxu0 %v3257
        %3272 = vmatpush1.msra.mxu0 %v3256
        %3273 = vmatprep.subr.mxu0 %v3255
        %3274 = vmatpush1.msra.mxu0 %v3254
        %3275 = vmatprep.subr.mxu0 %v3253
        %3276 = vmatpush1.msra.mxu0 %v3252
        %3277 = vmatprep.subr.mxu0 %v3251
        %3278 = vmatpush1.msra.mxu0 %v3250
        %3279 = vmatprep.subr.mxu0 %v3249
        %3280 = vmatpush1.msra.mxu0 %v3248
        %3281 = vmatprep.subr.mxu0 %v3247
        %3282 = vmatpush1.msra.mxu0 %v3246
        %3283 = vmatprep.subr.mxu0 %v3245
        %3284 = vmatpush1.msra.mxu0 %v3244
        %3285 = vmatprep.subr.mxu0 %v3243
        %3286 = vmatpush1.msra.mxu0 %v3242
        %3287 = vmatprep.subr.mxu0 %v3241
        %3288 = vmatpush1.msra.mxu0 %v3240
        %3289 = vmatprep.subr.mxu0 %v3239
        %3290 = vmatpush1.msra.mxu0 %v3238
        %3291 = vmatprep.subr.mxu0 %v3237
        %3292 = vmatpush1.msra.mxu0 %v3236
        %3293 = vmatprep.subr.mxu0 %v3235
        %3294 = vmatpush1.msra.mxu0 %v3234
        %3295 = vmatprep.subr.mxu0 %v3233
        %3296 = vmatpush1.msra.mxu0 %v3232
        %3297 = vmatprep.subr.mxu0 0.0
        %3298 = vmatpush2.msra.mxu0 0.0
        %3299 = vmatprep.subr.mxu0 0.0
        %3300 = vmatpush2.msra.mxu0 0.0
        %3301 = vmatprep.subr.mxu0 0.0
        %3302 = vmatpush2.msra.mxu0 0.0
        %3303 = vmatprep.subr.mxu0 0.0
        %3304 = vmatpush2.msra.mxu0 0.0
        %3305 = vmatprep.subr.mxu0 0.0
        %3306 = vmatpush2.msra.mxu0 0.0
        %3307 = vmatprep.subr.mxu0 0.0
        %3308 = vmatpush2.msra.mxu0 0.0
        %3309 = vmatprep.subr.mxu0 0.0
        %3310 = vmatpush2.msra.mxu0 0.0
        %3311 = vmatprep.subr.mxu0 0.0
        %3312 = vmatpush2.msra.mxu0 0.0
        %3313 = vmatprep.subr.mxu0 0.0
        %3314 = vmatpush2.msra.mxu0 0.0
        %3315 = vmatprep.subr.mxu0 0.0
        %3316 = vmatpush2.msra.mxu0 0.0
        %3317 = vmatprep.subr.mxu0 0.0
        %3318 = vmatpush2.msra.mxu0 0.0
        %3319 = vmatprep.subr.mxu0 0.0
        %3320 = vmatpush2.msra.mxu0 0.0
        %3321 = vmatprep.subr.mxu0 0.0
        %3322 = vmatpush2.msra.mxu0 0.0
        %3323 = vmatprep.subr.mxu0 0.0
        %3324 = vmatpush2.msra.mxu0 0.0
        %3325 = vmatprep.subr.mxu0 0.0
        %3326 = vmatpush2.msra.mxu0 0.0
        %3327 = vmatprep.subr.mxu0 0.0
        %3328 = vmatpush2.msra.mxu0 0.0
        %3329 = vmatprep.mubr.f32.mxu0 0.0
        %3330 = vmatmul.mubr.f32.gmra.mxu0 %v3264
        %v3331 = vpop.f32.mrf.mxu0
        %v3332 = vadd.f32 0.0, %v3331
        %v3333 = vpop.f32.mrf.mxu0
        %v3334 = vadd.f32 0.0, %v3333
        %3335 = vdwg.mxu0
        %v3336 = vadd.f32 %v2869, %v3332
        %v3337 = vadd.f32 %v2870, %v3334
        %v3338 = vsub.s32 %v267, 128
        %v3339 = vlaneseq
        %v3340 = vshrl.u32 %v3339, 7
        %v3341 = vsub.s32 0, %v3340
        %v3342 = vrot.slane %v3338, %v3341
        %v3343 = vlaneseq
        %v3344 = vshrl.u32 %v3343, 7
        %v3345 = vsub.s32 4, %v3344
        %v3346 = vrot.slane %v3338, %v3345
        %v3347 = vlaneseq
        %v3348 = vshrl.u32 %v3347, 7
        %v3349 = vsub.s32 0, %v3348
        %v3350 = vrot.slane %v3342, %v3349
        %v3351 = vlaneseq
        %v3352 = vshrl.u32 %v3351, 7
        %v3353 = vsub.s32 0, %v3352
        %v3354 = vrot.slane %v3346, %v3353
        %vm3355 = vcmp.eq.s32.totalorder %v273, %v3350
        %vm3356 = vcmp.eq.s32.totalorder %v273, %v3354
        %vm3357 = vcmp.eq.s32.totalorder %v274, %v3350
        %vm3358 = vcmp.eq.s32.totalorder %v274, %v3354
        %vm3359 = vcmp.eq.s32.totalorder %v275, %v3350
        %vm3360 = vcmp.eq.s32.totalorder %v275, %v3354
        %vm3361 = vcmp.eq.s32.totalorder %v276, %v3350
        %vm3362 = vcmp.eq.s32.totalorder %v276, %v3354
        %vm3363 = vcmp.eq.s32.totalorder %v277, %v3350
        %vm3364 = vcmp.eq.s32.totalorder %v277, %v3354
        %vm3365 = vcmp.eq.s32.totalorder %v278, %v3350
        %vm3366 = vcmp.eq.s32.totalorder %v278, %v3354
        %vm3367 = vcmp.eq.s32.totalorder %v279, %v3350
        %vm3368 = vcmp.eq.s32.totalorder %v279, %v3354
        %vm3369 = vcmp.eq.s32.totalorder %v280, %v3350
        %vm3370 = vcmp.eq.s32.totalorder %v280, %v3354
        %vm3371 = vcmp.eq.s32.totalorder %v281, %v3350
        %vm3372 = vcmp.eq.s32.totalorder %v281, %v3354
        %vm3373 = vcmp.eq.s32.totalorder %v282, %v3350
        %vm3374 = vcmp.eq.s32.totalorder %v282, %v3354
        %vm3375 = vcmp.eq.s32.totalorder %v283, %v3350
        %vm3376 = vcmp.eq.s32.totalorder %v283, %v3354
        %vm3377 = vcmp.eq.s32.totalorder %v284, %v3350
        %vm3378 = vcmp.eq.s32.totalorder %v284, %v3354
        %vm3379 = vcmp.eq.s32.totalorder %v285, %v3350
        %vm3380 = vcmp.eq.s32.totalorder %v285, %v3354
        %vm3381 = vcmp.eq.s32.totalorder %v286, %v3350
        %vm3382 = vcmp.eq.s32.totalorder %v286, %v3354
        %vm3383 = vcmp.eq.s32.totalorder %v287, %v3350
        %vm3384 = vcmp.eq.s32.totalorder %v287, %v3354
        %vm3385 = vcmp.eq.s32.totalorder %v288, %v3350
        %vm3386 = vcmp.eq.s32.totalorder %v288, %v3354
        %v3387 = vlaneseq
        %v3388 = vshrl.u32 %v3387, 7
        %v3389 = vsub.s32 1, %v3388
        %v3390 = vrot.slane %v3338, %v3389
        %v3391 = vlaneseq
        %v3392 = vshrl.u32 %v3391, 7
        %v3393 = vsub.s32 5, %v3392
        %v3394 = vrot.slane %v3338, %v3393
        %v3395 = vlaneseq
        %v3396 = vshrl.u32 %v3395, 7
        %v3397 = vsub.s32 1, %v3396
        %v3398 = vrot.slane %v3390, %v3397
        %v3399 = vlaneseq
        %v3400 = vshrl.u32 %v3399, 7
        %v3401 = vsub.s32 1, %v3400
        %v3402 = vrot.slane %v3394, %v3401
        %vm3403 = vcmp.eq.s32.totalorder %v273, %v3398
        %vm3404 = vcmp.eq.s32.totalorder %v273, %v3402
        %vm3405 = vcmp.eq.s32.totalorder %v274, %v3398
        %vm3406 = vcmp.eq.s32.totalorder %v274, %v3402
        %vm3407 = vcmp.eq.s32.totalorder %v275, %v3398
        %vm3408 = vcmp.eq.s32.totalorder %v275, %v3402
        %vm3409 = vcmp.eq.s32.totalorder %v276, %v3398
        %vm3410 = vcmp.eq.s32.totalorder %v276, %v3402
        %vm3411 = vcmp.eq.s32.totalorder %v277, %v3398
        %vm3412 = vcmp.eq.s32.totalorder %v277, %v3402
        %vm3413 = vcmp.eq.s32.totalorder %v278, %v3398
        %vm3414 = vcmp.eq.s32.totalorder %v278, %v3402
        %vm3415 = vcmp.eq.s32.totalorder %v279, %v3398
        %vm3416 = vcmp.eq.s32.totalorder %v279, %v3402
        %vm3417 = vcmp.eq.s32.totalorder %v280, %v3398
        %vm3418 = vcmp.eq.s32.totalorder %v280, %v3402
        %vm3419 = vcmp.eq.s32.totalorder %v281, %v3398
        %vm3420 = vcmp.eq.s32.totalorder %v281, %v3402
        %vm3421 = vcmp.eq.s32.totalorder %v282, %v3398
        %vm3422 = vcmp.eq.s32.totalorder %v282, %v3402
        %vm3423 = vcmp.eq.s32.totalorder %v283, %v3398
        %vm3424 = vcmp.eq.s32.totalorder %v283, %v3402
        %vm3425 = vcmp.eq.s32.totalorder %v284, %v3398
        %vm3426 = vcmp.eq.s32.totalorder %v284, %v3402
        %vm3427 = vcmp.eq.s32.totalorder %v285, %v3398
        %vm3428 = vcmp.eq.s32.totalorder %v285, %v3402
        %vm3429 = vcmp.eq.s32.totalorder %v286, %v3398
        %vm3430 = vcmp.eq.s32.totalorder %v286, %v3402
        %vm3431 = vcmp.eq.s32.totalorder %v287, %v3398
        %vm3432 = vcmp.eq.s32.totalorder %v287, %v3402
        %vm3433 = vcmp.eq.s32.totalorder %v288, %v3398
        %vm3434 = vcmp.eq.s32.totalorder %v288, %v3402
        %v3435 = vlaneseq
        %v3436 = vshrl.u32 %v3435, 7
        %v3437 = vsub.s32 2, %v3436
        %v3438 = vrot.slane %v3338, %v3437
        %v3439 = vlaneseq
        %v3440 = vshrl.u32 %v3439, 7
        %v3441 = vsub.s32 6, %v3440
        %v3442 = vrot.slane %v3338, %v3441
        %v3443 = vlaneseq
        %v3444 = vshrl.u32 %v3443, 7
        %v3445 = vsub.s32 2, %v3444
        %v3446 = vrot.slane %v3438, %v3445
        %v3447 = vlaneseq
        %v3448 = vshrl.u32 %v3447, 7
        %v3449 = vsub.s32 2, %v3448
        %v3450 = vrot.slane %v3442, %v3449
        %vm3451 = vcmp.eq.s32.totalorder %v273, %v3446
        %vm3452 = vcmp.eq.s32.totalorder %v273, %v3450
        %vm3453 = vcmp.eq.s32.totalorder %v274, %v3446
        %vm3454 = vcmp.eq.s32.totalorder %v274, %v3450
        %vm3455 = vcmp.eq.s32.totalorder %v275, %v3446
        %vm3456 = vcmp.eq.s32.totalorder %v275, %v3450
        %vm3457 = vcmp.eq.s32.totalorder %v276, %v3446
        %vm3458 = vcmp.eq.s32.totalorder %v276, %v3450
        %vm3459 = vcmp.eq.s32.totalorder %v277, %v3446
        %vm3460 = vcmp.eq.s32.totalorder %v277, %v3450
        %vm3461 = vcmp.eq.s32.totalorder %v278, %v3446
        %vm3462 = vcmp.eq.s32.totalorder %v278, %v3450
        %vm3463 = vcmp.eq.s32.totalorder %v279, %v3446
        %vm3464 = vcmp.eq.s32.totalorder %v279, %v3450
        %vm3465 = vcmp.eq.s32.totalorder %v280, %v3446
        %vm3466 = vcmp.eq.s32.totalorder %v280, %v3450
        %vm3467 = vcmp.eq.s32.totalorder %v281, %v3446
        %vm3468 = vcmp.eq.s32.totalorder %v281, %v3450
        %vm3469 = vcmp.eq.s32.totalorder %v282, %v3446
        %vm3470 = vcmp.eq.s32.totalorder %v282, %v3450
        %vm3471 = vcmp.eq.s32.totalorder %v283, %v3446
        %vm3472 = vcmp.eq.s32.totalorder %v283, %v3450
        %vm3473 = vcmp.eq.s32.totalorder %v284, %v3446
        %vm3474 = vcmp.eq.s32.totalorder %v284, %v3450
        %vm3475 = vcmp.eq.s32.totalorder %v285, %v3446
        %vm3476 = vcmp.eq.s32.totalorder %v285, %v3450
        %vm3477 = vcmp.eq.s32.totalorder %v286, %v3446
        %vm3478 = vcmp.eq.s32.totalorder %v286, %v3450
        %vm3479 = vcmp.eq.s32.totalorder %v287, %v3446
        %vm3480 = vcmp.eq.s32.totalorder %v287, %v3450
        %vm3481 = vcmp.eq.s32.totalorder %v288, %v3446
        %vm3482 = vcmp.eq.s32.totalorder %v288, %v3450
        %v3483 = vlaneseq
        %v3484 = vshrl.u32 %v3483, 7
        %v3485 = vsub.s32 3, %v3484
        %v3486 = vrot.slane %v3338, %v3485
        %v3487 = vlaneseq
        %v3488 = vshrl.u32 %v3487, 7
        %v3489 = vsub.s32 7, %v3488
        %v3490 = vrot.slane %v3338, %v3489
        %v3491 = vlaneseq
        %v3492 = vshrl.u32 %v3491, 7
        %v3493 = vsub.s32 3, %v3492
        %v3494 = vrot.slane %v3486, %v3493
        %v3495 = vlaneseq
        %v3496 = vshrl.u32 %v3495, 7
        %v3497 = vsub.s32 3, %v3496
        %v3498 = vrot.slane %v3490, %v3497
        %vm3499 = vcmp.eq.s32.totalorder %v273, %v3494
        %vm3500 = vcmp.eq.s32.totalorder %v273, %v3498
        %vm3501 = vcmp.eq.s32.totalorder %v274, %v3494
        %vm3502 = vcmp.eq.s32.totalorder %v274, %v3498
        %vm3503 = vcmp.eq.s32.totalorder %v275, %v3494
        %vm3504 = vcmp.eq.s32.totalorder %v275, %v3498
        %vm3505 = vcmp.eq.s32.totalorder %v276, %v3494
        %vm3506 = vcmp.eq.s32.totalorder %v276, %v3498
        %vm3507 = vcmp.eq.s32.totalorder %v277, %v3494
        %vm3508 = vcmp.eq.s32.totalorder %v277, %v3498
        %vm3509 = vcmp.eq.s32.totalorder %v278, %v3494
        %vm3510 = vcmp.eq.s32.totalorder %v278, %v3498
        %vm3511 = vcmp.eq.s32.totalorder %v279, %v3494
        %vm3512 = vcmp.eq.s32.totalorder %v279, %v3498
        %vm3513 = vcmp.eq.s32.totalorder %v280, %v3494
        %vm3514 = vcmp.eq.s32.totalorder %v280, %v3498
        %vm3515 = vcmp.eq.s32.totalorder %v281, %v3494
        %vm3516 = vcmp.eq.s32.totalorder %v281, %v3498
        %vm3517 = vcmp.eq.s32.totalorder %v282, %v3494
        %vm3518 = vcmp.eq.s32.totalorder %v282, %v3498
        %vm3519 = vcmp.eq.s32.totalorder %v283, %v3494
        %vm3520 = vcmp.eq.s32.totalorder %v283, %v3498
        %vm3521 = vcmp.eq.s32.totalorder %v284, %v3494
        %vm3522 = vcmp.eq.s32.totalorder %v284, %v3498
        %vm3523 = vcmp.eq.s32.totalorder %v285, %v3494
        %vm3524 = vcmp.eq.s32.totalorder %v285, %v3498
        %vm3525 = vcmp.eq.s32.totalorder %v286, %v3494
        %vm3526 = vcmp.eq.s32.totalorder %v286, %v3498
        %vm3527 = vcmp.eq.s32.totalorder %v287, %v3494
        %vm3528 = vcmp.eq.s32.totalorder %v287, %v3498
        %vm3529 = vcmp.eq.s32.totalorder %v288, %v3494
        %vm3530 = vcmp.eq.s32.totalorder %v288, %v3498
        %v3531 = vsel %vm3499, %v3077, 0.0
        %v3532 = vsel %vm3500, %v3081, 0.0
        %v3533 = vsel %vm3501, %v3077, 0.0
        %v3534 = vsel %vm3502, %v3081, 0.0
        %v3535 = vsel %vm3503, %v3077, 0.0
        %v3536 = vsel %vm3504, %v3081, 0.0
        %v3537 = vsel %vm3505, %v3077, 0.0
        %v3538 = vsel %vm3506, %v3081, 0.0
        %v3539 = vsel %vm3507, %v3077, 0.0
        %v3540 = vsel %vm3508, %v3081, 0.0
        %v3541 = vsel %vm3509, %v3077, 0.0
        %v3542 = vsel %vm3510, %v3081, 0.0
        %v3543 = vsel %vm3511, %v3077, 0.0
        %v3544 = vsel %vm3512, %v3081, 0.0
        %v3545 = vsel %vm3513, %v3077, 0.0
        %v3546 = vsel %vm3514, %v3081, 0.0
        %v3547 = vsel %vm3515, %v3077, 0.0
        %v3548 = vsel %vm3516, %v3081, 0.0
        %v3549 = vsel %vm3517, %v3077, 0.0
        %v3550 = vsel %vm3518, %v3081, 0.0
        %v3551 = vsel %vm3519, %v3077, 0.0
        %v3552 = vsel %vm3520, %v3081, 0.0
        %v3553 = vsel %vm3521, %v3077, 0.0
        %v3554 = vsel %vm3522, %v3081, 0.0
        %v3555 = vsel %vm3523, %v3077, 0.0
        %v3556 = vsel %vm3524, %v3081, 0.0
        %v3557 = vsel %vm3525, %v3077, 0.0
        %v3558 = vsel %vm3526, %v3081, 0.0
        %v3559 = vsel %vm3527, %v3077, 0.0
        %v3560 = vsel %vm3528, %v3081, 0.0
        %v3561 = vsel %vm3529, %v3077, 0.0
        %v3562 = vsel %vm3530, %v3081, 0.0
        %v3563 = vsel %vm3451, %v3127, %v3531
        %v3564 = vsel %vm3452, %v3131, %v3532
        %v3565 = vsel %vm3453, %v3127, %v3533
        %v3566 = vsel %vm3454, %v3131, %v3534
        %v3567 = vsel %vm3455, %v3127, %v3535
        %v3568 = vsel %vm3456, %v3131, %v3536
        %v3569 = vsel %vm3457, %v3127, %v3537
        %v3570 = vsel %vm3458, %v3131, %v3538
        %v3571 = vsel %vm3459, %v3127, %v3539
        %v3572 = vsel %vm3460, %v3131, %v3540
        %v3573 = vsel %vm3461, %v3127, %v3541
        %v3574 = vsel %vm3462, %v3131, %v3542
        %v3575 = vsel %vm3463, %v3127, %v3543
        %v3576 = vsel %vm3464, %v3131, %v3544
        %v3577 = vsel %vm3465, %v3127, %v3545
        %v3578 = vsel %vm3466, %v3131, %v3546
        %v3579 = vsel %vm3467, %v3127, %v3547
        %v3580 = vsel %vm3468, %v3131, %v3548
        %v3581 = vsel %vm3469, %v3127, %v3549
        %v3582 = vsel %vm3470, %v3131, %v3550
        %v3583 = vsel %vm3471, %v3127, %v3551
        %v3584 = vsel %vm3472, %v3131, %v3552
        %v3585 = vsel %vm3473, %v3127, %v3553
        %v3586 = vsel %vm3474, %v3131, %v3554
        %v3587 = vsel %vm3475, %v3127, %v3555
        %v3588 = vsel %vm3476, %v3131, %v3556
        %v3589 = vsel %vm3477, %v3127, %v3557
        %v3590 = vsel %vm3478, %v3131, %v3558
        %v3591 = vsel %vm3479, %v3127, %v3559
        %v3592 = vsel %vm3480, %v3131, %v3560
        %v3593 = vsel %vm3481, %v3127, %v3561
        %v3594 = vsel %vm3482, %v3131, %v3562
        %v3595 = vsel %vm3403, %v3177, %v3563
        %v3596 = vsel %vm3404, %v3181, %v3564
        %v3597 = vsel %vm3405, %v3177, %v3565
        %v3598 = vsel %vm3406, %v3181, %v3566
        %v3599 = vsel %vm3407, %v3177, %v3567
        %v3600 = vsel %vm3408, %v3181, %v3568
        %v3601 = vsel %vm3409, %v3177, %v3569
        %v3602 = vsel %vm3410, %v3181, %v3570
        %v3603 = vsel %vm3411, %v3177, %v3571
        %v3604 = vsel %vm3412, %v3181, %v3572
        %v3605 = vsel %vm3413, %v3177, %v3573
        %v3606 = vsel %vm3414, %v3181, %v3574
        %v3607 = vsel %vm3415, %v3177, %v3575
        %v3608 = vsel %vm3416, %v3181, %v3576
        %v3609 = vsel %vm3417, %v3177, %v3577
        %v3610 = vsel %vm3418, %v3181, %v3578
        %v3611 = vsel %vm3419, %v3177, %v3579
        %v3612 = vsel %vm3420, %v3181, %v3580
        %v3613 = vsel %vm3421, %v3177, %v3581
        %v3614 = vsel %vm3422, %v3181, %v3582
        %v3615 = vsel %vm3423, %v3177, %v3583
        %v3616 = vsel %vm3424, %v3181, %v3584
        %v3617 = vsel %vm3425, %v3177, %v3585
        %v3618 = vsel %vm3426, %v3181, %v3586
        %v3619 = vsel %vm3427, %v3177, %v3587
        %v3620 = vsel %vm3428, %v3181, %v3588
        %v3621 = vsel %vm3429, %v3177, %v3589
        %v3622 = vsel %vm3430, %v3181, %v3590
        %v3623 = vsel %vm3431, %v3177, %v3591
        %v3624 = vsel %vm3432, %v3181, %v3592
        %v3625 = vsel %vm3433, %v3177, %v3593
        %v3626 = vsel %vm3434, %v3181, %v3594
        %v3627 = vsel %vm3355, %v3227, %v3595
        %v3628 = vsel %vm3356, %v3231, %v3596
        %v3629 = vsel %vm3357, %v3227, %v3597
        %v3630 = vsel %vm3358, %v3231, %v3598
        %v3631 = vsel %vm3359, %v3227, %v3599
        %v3632 = vsel %vm3360, %v3231, %v3600
        %v3633 = vsel %vm3361, %v3227, %v3601
        %v3634 = vsel %vm3362, %v3231, %v3602
        %v3635 = vsel %vm3363, %v3227, %v3603
        %v3636 = vsel %vm3364, %v3231, %v3604
        %v3637 = vsel %vm3365, %v3227, %v3605
        %v3638 = vsel %vm3366, %v3231, %v3606
        %v3639 = vsel %vm3367, %v3227, %v3607
        %v3640 = vsel %vm3368, %v3231, %v3608
        %v3641 = vsel %vm3369, %v3227, %v3609
        %v3642 = vsel %vm3370, %v3231, %v3610
        %v3643 = vsel %vm3371, %v3227, %v3611
        %v3644 = vsel %vm3372, %v3231, %v3612
        %v3645 = vsel %vm3373, %v3227, %v3613
        %v3646 = vsel %vm3374, %v3231, %v3614
        %v3647 = vsel %vm3375, %v3227, %v3615
        %v3648 = vsel %vm3376, %v3231, %v3616
        %v3649 = vsel %vm3377, %v3227, %v3617
        %v3650 = vsel %vm3378, %v3231, %v3618
        %v3651 = vsel %vm3379, %v3227, %v3619
        %v3652 = vsel %vm3380, %v3231, %v3620
        %v3653 = vsel %vm3381, %v3227, %v3621
        %v3654 = vsel %vm3382, %v3231, %v3622
        %v3655 = vsel %vm3383, %v3227, %v3623
        %v3656 = vsel %vm3384, %v3231, %v3624
        %v3657 = vsel %vm3385, %v3227, %v3625
        %v3658 = vsel %vm3386, %v3231, %v3626
        %v3659 = vld [vmem:[%s231 + $0x38] sm:$0xff]
        %3660 = vmatprep.subr.mxu0 %v3658
        %3661 = vmatpush1.msra.mxu0 %v3657
        %3662 = vmatprep.subr.mxu0 %v3656
        %3663 = vmatpush1.msra.mxu0 %v3655
        %3664 = vmatprep.subr.mxu0 %v3654
        %3665 = vmatpush1.msra.mxu0 %v3653
        %3666 = vmatprep.subr.mxu0 %v3652
        %3667 = vmatpush1.msra.mxu0 %v3651
        %3668 = vmatprep.subr.mxu0 %v3650
        %3669 = vmatpush1.msra.mxu0 %v3649
        %3670 = vmatprep.subr.mxu0 %v3648
        %3671 = vmatpush1.msra.mxu0 %v3647
        %3672 = vmatprep.subr.mxu0 %v3646
        %3673 = vmatpush1.msra.mxu0 %v3645
        %3674 = vmatprep.subr.mxu0 %v3644
        %3675 = vmatpush1.msra.mxu0 %v3643
        %3676 = vmatprep.subr.mxu0 %v3642
        %3677 = vmatpush1.msra.mxu0 %v3641
        %3678 = vmatprep.subr.mxu0 %v3640
        %3679 = vmatpush1.msra.mxu0 %v3639
        %3680 = vmatprep.subr.mxu0 %v3638
        %3681 = vmatpush1.msra.mxu0 %v3637
        %3682 = vmatprep.subr.mxu0 %v3636
        %3683 = vmatpush1.msra.mxu0 %v3635
        %3684 = vmatprep.subr.mxu0 %v3634
        %3685 = vmatpush1.msra.mxu0 %v3633
        %3686 = vmatprep.subr.mxu0 %v3632
        %3687 = vmatpush1.msra.mxu0 %v3631
        %3688 = vmatprep.subr.mxu0 %v3630
        %3689 = vmatpush1.msra.mxu0 %v3629
        %3690 = vmatprep.subr.mxu0 %v3628
        %3691 = vmatpush1.msra.mxu0 %v3627
        %3692 = vmatprep.subr.mxu0 0.0
        %3693 = vmatpush2.msra.mxu0 0.0
        %3694 = vmatprep.subr.mxu0 0.0
        %3695 = vmatpush2.msra.mxu0 0.0
        %3696 = vmatprep.subr.mxu0 0.0
        %3697 = vmatpush2.msra.mxu0 0.0
        %3698 = vmatprep.subr.mxu0 0.0
        %3699 = vmatpush2.msra.mxu0 0.0
        %3700 = vmatprep.subr.mxu0 0.0
        %3701 = vmatpush2.msra.mxu0 0.0
        %3702 = vmatprep.subr.mxu0 0.0
        %3703 = vmatpush2.msra.mxu0 0.0
        %3704 = vmatprep.subr.mxu0 0.0
        %3705 = vmatpush2.msra.mxu0 0.0
        %3706 = vmatprep.subr.mxu0 0.0
        %3707 = vmatpush2.msra.mxu0 0.0
        %3708 = vmatprep.subr.mxu0 0.0
        %3709 = vmatpush2.msra.mxu0 0.0
        %3710 = vmatprep.subr.mxu0 0.0
        %3711 = vmatpush2.msra.mxu0 0.0
        %3712 = vmatprep.subr.mxu0 0.0
        %3713 = vmatpush2.msra.mxu0 0.0
        %3714 = vmatprep.subr.mxu0 0.0
        %3715 = vmatpush2.msra.mxu0 0.0
        %3716 = vmatprep.subr.mxu0 0.0
        %3717 = vmatpush2.msra.mxu0 0.0
        %3718 = vmatprep.subr.mxu0 0.0
        %3719 = vmatpush2.msra.mxu0 0.0
        %3720 = vmatprep.subr.mxu0 0.0
        %3721 = vmatpush2.msra.mxu0 0.0
        %3722 = vmatprep.subr.mxu0 0.0
        %3723 = vmatpush2.msra.mxu0 0.0
        %3724 = vmatprep.mubr.f32.mxu0 0.0
        %3725 = vmatmul.mubr.f32.gmra.mxu0 %v3659
        %v3726 = vpop.f32.mrf.mxu0
        %v3727 = vadd.f32 0.0, %v3726
        %v3728 = vpop.f32.mrf.mxu0
        %v3729 = vadd.f32 0.0, %v3728
        %3730 = vdwg.mxu0
        %v3731 = vadd.f32 %v3336, %v3727
        %v3732 = vadd.f32 %v3337, %v3729
        %3733 = vst [vmem:[%s263] sm:$0xff] %v3731
        %3734 = vst [vmem:[%s263 + $0x8] sm:$0xff] %v3732
        %s3735 = sand.u32 %s109, 1
        %s3736 = scalar_lea.sflag [#allocation4], %s3735
        %s3737 = sand.u32 %s109, 1
        %s3738 = smul.addr %s3737, 16
        %s3739 = scalar_lea.vmem [#allocation8], %s3738
        // Predicated region
        $region45: #{tpu_custom_call.1} parent=31 // pred_check
          %p3740 = pneg %p119
        $region46: #{tpu_custom_call.1} parent=31 // pred_check_branch
          %3742 = sbr.rel (%p3740) target = $region48
        $region47: #{tpu_custom_call.1} parent=31 // pred_region
          %s3744 = ssub.s32 256, 256
          %3745 = vsyncadd %s3736, %s3744
          %s3746 = smul.addr %s23, 2
          %s3747 = smul.addr %s3746, 128
          %s3748 = scalar_lea.hbm %s3, %s3747
          %s3750 = sshll.u32 %s3739, 4
          %s3751 = int_to_ptr.vmem [resolvable:$true] %s3750
          %3753 = dma.vmem_to_hbm [thread:$0]  %s3751, 256, %s3748, %s3736
        $region48: #{tpu_custom_call.1} parent=31 // pred_fallthru
          _
      $region32: #{tpu_custom_call.1} parent=5 // pred_fallthru
        _
      %p3754 = scmp.le.s32.totalorder 2, %s18
      // Predicated region
      $region49: #{tpu_custom_call.1} parent=5 // pred_check
        %p3755 = pneg %p3754
      $region50: #{tpu_custom_call.1} parent=5 // pred_check_branch
        %3757 = sbr.rel (%p3755) target = $region52
      $region51: #{tpu_custom_call.1} parent=5 // pred_region
        %s3758 = ssub.s32 %s18, 2
        // Predicated region
        $region53: #{tpu_custom_call.1} parent=51 // pred_check
          %p3759 = pneg %p125
        $region54: #{tpu_custom_call.1} parent=51 // pred_check_branch
          %3761 = sbr.rel (%p3759) target = $region56
        $region55: #{tpu_custom_call.1} parent=51 // pred_region
          %s3762 = sand.u32 %s110, 1
          %s3763 = scalar_lea.sflag [#allocation4], %s3762
          %s3764 = sand.u32 %s110, 1
          %s3765 = smul.addr %s3764, 16
          %s3766 = scalar_lea.vmem [#allocation8], %s3765
          %3767 = dma.done %s3763, 256
        $region56: #{tpu_custom_call.1} parent=51 // pred_fallthru
          _
      $region52: #{tpu_custom_call.1} parent=5 // pred_fallthru
        _
    $region6: #{tpu_custom_call.1} parent=1 // loop_footer
      %s22 = sadd.s32 1, %s18
    $region7: #{tpu_custom_call.1} parent=1 // loop_footer_branch
      %17 = sbr.rel target = $region3
    $region8: #{tpu_custom_call.1} parent=1 // loop_exit
      _
    %3768 = vsyncpa [#allocation3], 1
    %s3769 = scalar_lea.sflag [#allocation3], 1
    %3770 = vsyncpa %s3769, 1
    %3771 = vsyncpa [#allocation6], 1
    %s3772 = scalar_lea.sflag [#allocation6], 1
    %3773 = vsyncpa %s3772, 1
    %3774 = vsyncpa [#allocation4], 1
    %s3775 = scalar_lea.sflag [#allocation4], 1
    %3776 = vsyncpa %s3775, 1

</llo_original>
